<compile_context>
chip_gen: v7x
topology: tpu7x:2x2x1
jax: 0.10.0
libtpu: 0.0.40
codegen_flags: <defaults>
</compile_context>

<pallas_src>
import math
import functools

import jax
import jax.numpy as jnp
from jax.experimental import pallas as pl
from jax.experimental.pallas import tpu as pltpu

# bf16 weight streaming with f32 accumulation (set to jnp.float32 for a
# bit-faithful f32 reference path).
WEIGHT_DTYPE = jnp.bfloat16


def _pick_tb(B, N, tile_rows):
    """Largest divisor TB of B such that TB*N <= tile_rows (>=1)."""
    tb = 1
    for c in range(1, B + 1):
        if B % c == 0 and c * N <= tile_rows:
            tb = c
    return tb


# --------------------------------------------------------------------------
# Kernel 1: encode  (pre_conv + hoisted TE/TTKMN terms + feat_proj + pos-enc)
# --------------------------------------------------------------------------
def _encode_kernel(s_ref, x_ref, m_ref, enh_ref, gauss_ref, fpw_ref, pe_ref,
                   fpb_ref, o_ref, *, K, Cpre, offs):
    """s_ref: flat f32 SMEM conv params; x/m: (TB, N, L); enh: (TB, 1, L);
    gauss: (TB, K, L) hoisted Gaussian kernels; fpw: (K+1, hid) gate-folded
    feat_proj weights; pe: (N, hid); fpb: (1, hid); o: (TB, N, hid)."""
    x = x_ref[...]
    m = m_ref[...]
    TB, N, L = x.shape
    hid = o_ref.shape[-1]

    def s(name, i=0):
        return s_ref[offs[name] + i]

    # ---- pre_conv: Conv1d(1,Cpre,k=3,pad=1) -> ReLU -> Conv1d(Cpre,1,k=1)
    # (zero-padded shifts via slices+concat; small L so the copies are cheap.
    #  At lane-aligned L prefer pltpu.roll + boundary mask.)
    zcol = jnp.zeros((TB, N, 1), jnp.float32)
    xm1 = jnp.concatenate([zcol, x[:, :, :L - 1]], axis=2)       # x[l-1]
    xp1 = jnp.concatenate([x[:, :, 1:], zcol], axis=2)           # x[l+1]
    conv = jnp.full(x.shape, s("c2b"), jnp.float32)
    for c in range(Cpre):
        h = (s("c1w", 3 * c) * xm1 + s("c1w", 3 * c + 1) * x
             + s("c1w", 3 * c + 2) * xp1 + s("c1b", c))
        conv = conv + s("c2w", c) * jnp.maximum(h, 0.0)

    # te_proj1d(_TE(t)) is identical across N -> hoisted to enh (TB, 1, L)
    xe = conv + enh_ref[...]                                     # Xf_enh

    # ---- TTKMN pooling fused with feat_proj (gate folded into fpw rows) and
    #      positional encoding; Gaussian kernels hoisted (shared across N).
    z = jnp.broadcast_to((pe_ref[...] + fpb_ref[...])[None, :, :], (TB, N, hid))
    for kk in range(K):
        w = gauss_ref[:, kk:kk + 1, :] * m                       # (TB, N, L)
        a = w / (jnp.sum(w, axis=2, keepdims=True) + 1e-8)
        hk = jnp.sum(a * xe, axis=2, keepdims=True)              # (TB, N, 1)
        z = z + hk * fpw_ref[kk:kk + 1, :]
    flag = (jnp.sum(m, axis=2, keepdims=True) > 0.0).astype(jnp.float32)
    z = z + flag * fpw_ref[K:K + 1, :]
    o_ref[...] = z


def pallas_encode(conv_scalars, X3, M3, enh, gauss, fpw, pe, fpb, *,
                  TB, K, Cpre, offs):
    B, N, L = X3.shape
    hid = fpw.shape[1]
    kern = functools.partial(_encode_kernel, K=K, Cpre=Cpre, offs=offs)
    return pl.pallas_call(
        kern,
        grid=(B // TB,),
        out_shape=jax.ShapeDtypeStruct((B, N, hid), jnp.float32),
        in_specs=[
            pl.BlockSpec(memory_space=pltpu.MemorySpace.SMEM),
            pl.BlockSpec((TB, N, L), lambda b: (b, 0, 0)),
            pl.BlockSpec((TB, N, L), lambda b: (b, 0, 0)),
            pl.BlockSpec((TB, 1, L), lambda b: (b, 0, 0)),
            pl.BlockSpec((TB, K, L), lambda b: (b, 0, 0)),
            pl.BlockSpec((K + 1, hid), lambda b: (0, 0)),
            pl.BlockSpec((N, hid), lambda b: (0, 0)),
            pl.BlockSpec((1, hid), lambda b: (0, 0)),
        ],
        out_specs=pl.BlockSpec((TB, N, hid), lambda b: (b, 0, 0)),
        compiler_params=pltpu.CompilerParams(dimension_semantics=("parallel",)),
    )(conv_scalars, X3, M3, enh, gauss, fpw, pe, fpb)


# --------------------------------------------------------------------------
# Kernel 2: all FreqBlocks (grid = (batch tiles, layers)) + var_agg epilogue
# --------------------------------------------------------------------------
def _freq_stack_kernel(z_ref, ffwd_ref, finv_ref, maskm_ref,
                       ln1w_ref, ln1b_ref, wq_ref, bq_ref, wk_ref, bk_ref,
                       wv_ref, bv_ref, wr_ref, br_ref, wp_ref, bp_ref,
                       ln2w_ref, ln2b_ref, wm1_ref, bm1_ref, wm2_ref, bm2_ref,
                       vaw_ref, vab_ref, o_ref, *, r2):
    l = pl.program_id(1)
    TB, N, hid = o_ref.shape
    BN = TB * N
    R = wr_ref.shape[1]
    wdt = wq_ref.dtype                       # bf16 weight stream, f32 accum
    scale = 1.0 / math.sqrt(r2)

    @pl.when(l == 0)
    def _():                                 # init the resident carry block
        o_ref[...] = z_ref[...]

    x = o_ref[...].reshape(BN, hid)          # carried layer state (f32)

    def layernorm(v, w, b):                  # f32 statistics
        mu = jnp.mean(v, axis=-1, keepdims=True)
        var = jnp.mean((v - mu) ** 2, axis=-1, keepdims=True)
        return (v - mu) * jax.lax.rsqrt(var + 1e-5) * w + b

    xn = layernorm(x, ln1w_ref[...], ln1b_ref[...])
    # rfft(norm='forward') + cat(real,-imag)[:D]  == xn @ ffwd (exact real DFT)
    fx = jnp.dot(xn, ffwd_ref[...], preferred_element_type=jnp.float32)

    fxc = fx.astype(wdt)
    q = jnp.dot(fxc, wq_ref[...], preferred_element_type=jnp.float32) + bq_ref[...]
    k = jnp.dot(fxc, wk_ref[...], preferred_element_type=jnp.float32) + bk_ref[...]
    v = jnp.dot(fxc, wv_ref[...], preferred_element_type=jnp.float32) + bv_ref[...]

    # one lane-dense RFF projection for ALL heads (block-diagonal weights).
    # NOTE: at production dh/r2 >= 128, switch to true per-head matmuls.
    pq = jnp.dot(q.astype(wdt), wr_ref[...], preferred_element_type=jnp.float32) + br_ref[...]
    pk = jnp.dot(k.astype(wdt), wr_ref[...], preferred_element_type=jnp.float32) + br_ref[...]
    cq = (jnp.cos(pq) * scale).reshape(TB, N, R)
    sq = (jnp.sin(pq) * scale).reshape(TB, N, R)
    ck = (jnp.cos(pk) * scale).reshape(TB, N, R)
    sk = (jnp.sin(pk) * scale).reshape(TB, N, R)
    v3 = v.reshape(TB, N, hid)

    # batched (over the tile's batches) linear attention; heads handled via the
    # head-block mask on phi_k^T V (cos/sin kept separate, no concatenation).
    maskm = maskm_ref[...]                                   # (R, hid), f32 0/1
    vb = v3.astype(wdt)
    mc = jnp.einsum('bnr,bnd->brd', ck.astype(wdt), vb,
                    preferred_element_type=jnp.float32) * maskm
    ms = jnp.einsum('bnr,bnd->brd', sk.astype(wdt), vb,
                    preferred_element_type=jnp.float32) * maskm
    num = (jnp.einsum('bnr,brd->bnd', cq.astype(wdt), mc.astype(wdt),
                      preferred_element_type=jnp.float32)
           + jnp.einsum('bnr,brd->bnd', sq.astype(wdt), ms.astype(wdt),
                        preferred_element_type=jnp.float32))
    e = (cq * jnp.sum(ck, axis=1, keepdims=True)
         + sq * jnp.sum(sk, axis=1, keepdims=True))          # (TB, N, R), f32
    den = jnp.dot(e.reshape(BN, R), maskm,
                  preferred_element_type=jnp.float32)        # per-head denom
    attn = (num.reshape(BN, hid)
            * pl.reciprocal(den + 1e-6, approx=True)).astype(wdt)

    po = jnp.dot(attn, wp_ref[...], preferred_element_type=jnp.float32) + bp_ref[...]
    # irfft(complex(r,-i), n=D, norm='forward')  == po @ finv (exact real DFT)
    y = jnp.dot(po, finv_ref[...], preferred_element_type=jnp.float32)
    x1 = x + y

    xn2 = layernorm(x1, ln2w_ref[...], ln2b_ref[...])
    h = jnp.maximum(jnp.dot(xn2.astype(wdt), wm1_ref[...],
                            preferred_element_type=jnp.float32) + bm1_ref[...], 0.0)
    x2 = x1 + jnp.dot(h.astype(wdt), wm2_ref[...],
                      preferred_element_type=jnp.float32) + bm2_ref[...]

    last = pl.num_programs(1) - 1

    @pl.when(l != last)
    def _():
        o_ref[...] = x2.reshape(TB, N, hid)

    @pl.when(l == last)
    def _():
        zo = (jnp.dot(x2, vaw_ref[...], preferred_element_type=jnp.float32)
              + vab_ref[...])
        o_ref[...] = zo.reshape(TB, N, hid)


def pallas_freq_stack(z, stk, ffwd, finv, maskm, vaw, vab, *, TB, r2, nlayer):
    B, N, hid = z.shape
    R = maskm.shape[0]
    mlp = stk["wm1"].shape[-1]

    def lay_mat(d1, d2):   # (nlayer, d1, d2) -> kernel ref (d1, d2)
        return pl.BlockSpec((None, d1, d2), lambda b, l: (l, 0, 0))

    def lay_vec(d):        # (nlayer, 1, d)  -> kernel ref (1, d)
        return pl.BlockSpec((None, 1, d), lambda b, l: (l, 0, 0))

    def tile3(d1, d2):
        return pl.BlockSpec((TB, d1, d2), lambda b, l: (b, 0, 0))

    def const2(d1, d2):
        return pl.BlockSpec((d1, d2), lambda b, l: (0, 0))

    in_specs = [
        tile3(N, hid),                               # z_in
        const2(hid, hid), const2(hid, hid),          # ffwd / finv (f32 DFT)
        const2(R, hid),                              # head-block mask
        lay_vec(hid), lay_vec(hid),                  # ln1 w/b
        lay_mat(hid, hid), lay_vec(hid),             # q
        lay_mat(hid, hid), lay_vec(hid),             # k
        lay_mat(hid, hid), lay_vec(hid),             # v
        lay_mat(hid, R), lay_vec(R),                 # block-diag RFF W / b
        lay_mat(hid, hid), lay_vec(hid),             # proj
        lay_vec(hid), lay_vec(hid),                  # ln2 w/b
        lay_mat(hid, mlp), lay_vec(mlp),             # mlp1
        lay_mat(mlp, hid), lay_vec(hid),             # mlp2
        const2(hid, hid), const2(1, hid),            # var_agg w / b
    ]
    kern = functools.partial(_freq_stack_kernel, r2=r2)
    # TODO(synk): at production sizes set vmem_limit_bytes explicitly
    # (re-derive for v7x's 64 MiB VMEM) and consider fp8 for wm1/wm2 on v7x.
    return pl.pallas_call(
        kern,
        grid=(B // TB, nlayer),
        out_shape=jax.ShapeDtypeStruct((B, N, hid), jnp.float32),
        in_specs=in_specs,
        out_specs=pl.BlockSpec((TB, N, hid), lambda b, l: (b, 0, 0)),
        compiler_params=pltpu.CompilerParams(
            dimension_semantics=("parallel", "arbitrary")),
    )(z, ffwd, finv, maskm,
      stk["ln1w"], stk["ln1b"], stk["wq"], stk["bq"], stk["wk"], stk["bk"],
      stk["wv"], stk["bv"], stk["wrblk"], stk["brff"], stk["wp"], stk["bp"],
      stk["ln2w"], stk["ln2b"], stk["wm1"], stk["bm1"], stk["wm2"], stk["bm2"],
      vaw, vab)


# --------------------------------------------------------------------------
# Kernel 3: decoder (3-layer MLP; zf@W1_h shared across Lp, te@W1_t prefolded)
# --------------------------------------------------------------------------
def _decoder_kernel(z_ref, t1_ref, w1h_ref, w2_ref, b2_ref, w3_ref, b3_ref,
                    o_ref):
    TB, N, hid = z_ref.shape
    Lp = t1_ref.shape[1]
    z2d = z_ref[...].reshape(TB * N, hid)
    # layer 1: zf part computed ONCE per (b,n); te part + b1 prefolded in T1
    A = jnp.dot(z2d, w1h_ref[...], preferred_element_type=jnp.float32)
    h1 = jnp.maximum(A.reshape(TB, N, 1, hid) + t1_ref[...][:, None, :, :], 0.0)
    # layer 2: shared (hid, hid) weights on the (b,n,l) product
    h1f = h1.reshape(TB * N * Lp, hid)
    h2 = jnp.maximum(jnp.dot(h1f, w2_ref[...],
                             preferred_element_type=jnp.float32) + b2_ref[...], 0.0)
    # layer 3: hid -> 1 projection as multiply + lane reduce, output (TB,N,Lp)
    h2r = h2.reshape(TB, N, Lp, hid)
    y = jnp.sum(h2r * w3_ref[...], axis=-1) + b3_ref[...]
    o_ref[...] = y


def pallas_decoder(zf, T1, w1h, w2, b2, w3row, b3, *, TB):
    B, N, hid = zf.shape
    Lp = T1.shape[1]
    return pl.pallas_call(
        _decoder_kernel,
        grid=(B // TB,),
        out_shape=jax.ShapeDtypeStruct((B, N, Lp), jnp.float32),
        in_specs=[
            pl.BlockSpec((TB, N, hid), lambda b: (b, 0, 0)),
            pl.BlockSpec((TB, Lp, hid), lambda b: (b, 0, 0)),
            pl.BlockSpec((hid, hid), lambda b: (0, 0)),
            pl.BlockSpec((hid, hid), lambda b: (0, 0)),
            pl.BlockSpec((1, hid), lambda b: (0, 0)),
            pl.BlockSpec((1, hid), lambda b: (0, 0)),
            pl.BlockSpec((1, 1), lambda b: (0, 0)),
        ],
        out_specs=pl.BlockSpec((TB, N, Lp), lambda b: (b, 0, 0)),
        compiler_params=pltpu.CompilerParams(dimension_semantics=("parallel",)),
    )(zf, T1, w1h, w2, b2, w3row, b3)


# --------------------------------------------------------------------------
# Parameter preparation (plain JAX glue)
# --------------------------------------------------------------------------
def pack_conv_scalars(p, Cpre):
    arrs = [p["conv1_w"].reshape(-1), p["conv1_b"], p["conv2_w"], p["conv2_b"]]
    names = ["c1w", "c1b", "c2w", "c2b"]
    offs, o = {}, 0
    for nm, a in zip(names, arrs):
        offs[nm] = o
        o += a.shape[0]
    flat = jnp.concatenate([a.astype(jnp.float32).reshape(-1) for a in arrs])
    return flat, offs


def _rff_block_diag(w):
    """(heads, dh, r2) -> block-diagonal (heads*dh, heads*r2)."""
    heads, dh, r2 = w.shape
    eye = jnp.eye(heads, dtype=w.dtype)
    return jnp.einsum("hij,hg->higj", w, eye).reshape(heads * dh, heads * r2)


def stack_block_params(blocks, wdtype):
    mats = ("wq", "wk", "wv", "wp", "wm1", "wm2")
    vecs = ("ln1w", "ln1b", "bq", "bk", "bv", "bp", "ln2w", "ln2b", "bm1", "bm2")
    stk = {k: jnp.stack([blk[k] for blk in blocks]).astype(wdtype) for k in mats}
    stk.update({k: jnp.stack([blk[k][None, :] for blk in blocks]) for k in vecs})
    stk["wrblk"] = jnp.stack([_rff_block_diag(blk["wrff"])
                              for blk in blocks]).astype(wdtype)
    stk["brff"] = jnp.stack([blk["brff"].reshape(1, -1) for blk in blocks])
    return stk


def head_block_mask(hid, heads, r2):
    R = heads * r2
    dh = hid // heads
    rh = jnp.arange(R) // r2
    dhh = jnp.arange(hid) // dh
    return (rh[:, None] == dhh[None, :]).astype(jnp.float32)


def te_features(t, p):
    """t: (..., 1) -> (..., te) = [scale(t), sin(.), cos(.)]."""
    s = t * p["te_scale_w"][0] + p["te_scale_b"][0]
    si = jnp.sin(t * p["te_sin_w"] + p["te_sin_b"])
    co = jnp.cos(t * p["te_cos_w"] + p["te_cos_b"])
    return jnp.concatenate([s, si, co], axis=-1)


def init_params(key, cfg):
    N, K, hid = cfg["N"], cfg["K"], cfg["hid"]
    te, pc, heads = cfg["te"], cfg["preconvdim"], cfg["nhead"]
    nlayer, r = cfg["nlayer"], cfg["r"]
    ns, nc = cfg["ns"], cfg["nc"]
    dh, r2 = hid // heads, r // 2
    mlp_hidden = int(hid * 4.0)

    keys = iter(jax.random.split(key, 512))

    def nrm(shape, scale=0.1):
        return scale * jax.random.normal(next(keys), shape, jnp.float32)

    def unif(shape):
        return jax.random.uniform(next(keys), shape, jnp.float32)

    p = {}
    p["conv1_w"] = nrm((pc, 3), 0.3)
    p["conv1_b"] = nrm((pc,), 0.1)
    p["conv2_w"] = nrm((pc,), 0.3)
    p["conv2_b"] = nrm((1,), 0.1)
    p["te_scale_w"] = nrm((1,), 0.5)
    p["te_scale_b"] = nrm((1,), 0.1)
    p["te_sin_w"] = nrm((ns,), 1.0)
    p["te_sin_b"] = nrm((ns,), 0.5)
    p["te_cos_w"] = nrm((nc,), 1.0)
    p["te_cos_b"] = nrm((nc,), 0.5)
    p["teproj_w"] = nrm((te,), 0.3)
    p["teproj_b"] = nrm((1,), 0.1)
    p["ttk_c"] = jnp.linspace(0.0, 1.0, K, dtype=jnp.float32)
    p["ttk_log_alpha"] = nrm((K,), 0.1)
    p["ttk_gate"] = nrm((K,), 0.1)
    p["feat_proj_w"] = nrm((K + 1, hid), 0.3)
    p["feat_proj_b"] = nrm((hid,), 0.1)

    # positional encoding pe[:N]
    pos = jnp.arange(N, dtype=jnp.float32)[:, None]
    div = jnp.exp(jnp.arange(0, hid, 2, dtype=jnp.float32) * (-math.log(10000.0) / hid))
    pe = jnp.zeros((N, hid), jnp.float32)
    pe = pe.at[:, 0::2].set(jnp.sin(pos * div)).at[:, 1::2].set(jnp.cos(pos * div))
    p["pe"] = pe

    # exact real-DFT matrices:
    #   ffwd: rfft(norm='forward') -> cat(real, -imag)[..., :D]
    #   finv: irfft(complex(r,-i), n=D, norm='forward') with zero-padded Nyquist
    D = hid
    m = jnp.arange(D, dtype=jnp.float32)
    j = jnp.arange(D // 2 + 1, dtype=jnp.float32)
    fcos = jnp.cos(2 * math.pi * m[:, None] * j[None, :] / D) / D
    jp_ = jnp.arange(D // 2 - 1, dtype=jnp.float32)
    fsin = jnp.sin(2 * math.pi * m[:, None] * jp_[None, :] / D) / D
    p["ffwd"] = jnp.concatenate([fcos, fsin], axis=1)        # (D, D)
    kk = jnp.arange(D // 2, dtype=jnp.float32)
    wdc = jnp.where(kk[:, None] == 0, 1.0, 2.0)
    cr = jnp.cos(2 * math.pi * kk[:, None] * m[None, :] / D) * wdc
    ci = jnp.sin(2 * math.pi * kk[:, None] * m[None, :] / D) * 2.0
    p["finv"] = jnp.concatenate([cr, ci], axis=0)            # (D, D)

    blocks = []
    for _ in range(nlayer):
        blk = dict(
            ln1w=1.0 + nrm((hid,), 0.05), ln1b=nrm((hid,), 0.05),
            wq=nrm((hid, hid), 1.0 / math.sqrt(hid)), bq=nrm((hid,), 0.05),
            wk=nrm((hid, hid), 1.0 / math.sqrt(hid)), bk=nrm((hid,), 0.05),
            wv=nrm((hid, hid), 1.0 / math.sqrt(hid)), bv=nrm((hid,), 0.05),
            wrff=nrm((heads, dh, r2), 1.0 / math.sqrt(dh)),
            brff=2.0 * math.pi * unif((heads, r2)),
            wp=nrm((hid, hid), 1.0 / math.sqrt(hid)), bp=nrm((hid,), 0.05),
            ln2w=1.0 + nrm((hid,), 0.05), ln2b=nrm((hid,), 0.05),
            wm1=nrm((hid, mlp_hidden), 1.0 / math.sqrt(hid)), bm1=nrm((mlp_hidden,), 0.05),
            wm2=nrm((mlp_hidden, hid), 1.0 / math.sqrt(mlp_hidden)), bm2=nrm((hid,), 0.05),
        )
        blocks.append(blk)
    p["blocks"] = blocks

    p["var_agg_w"] = nrm((hid, hid), 1.0 / math.sqrt(hid))
    p["var_agg_b"] = nrm((hid,), 0.05)
    p["dec_w1"] = nrm((hid + te, hid), 1.0 / math.sqrt(hid + te))
    p["dec_b1"] = nrm((hid,), 0.05)
    p["dec_w2"] = nrm((hid, hid), 1.0 / math.sqrt(hid))
    p["dec_b2"] = nrm((hid,), 0.05)
    p["dec_w3"] = nrm((hid, 1), 1.0 / math.sqrt(hid))
    p["dec_b3"] = nrm((1,), 0.05)
    return p


# --------------------------------------------------------------------------
# KFNet.forecasting
# --------------------------------------------------------------------------
def kfnet_forward(p, tp_pred, X, tp_true, mask, cfg, tile_rows=512):
    B, L, N = X.shape
    hid, te_dim, K = cfg["hid"], cfg["te"], cfg["K"]
    heads, r2, nlayer = cfg["nhead"], cfg["r"] // 2, cfg["nlayer"]
    Cpre = cfg["preconvdim"]

    if mask is None:
        mask = jnp.ones_like(X)
    # TODO(synk): 3-D tp_true with genuinely per-variable time grids is reduced
    # to its first variable here (the hoisted (B,L) path assumes shared times,
    # which is exactly what the reference produces for 2-D tp_true).
    t_bl = tp_true if tp_true.ndim == 2 else tp_true[..., 0]
    tp_pred3 = tp_pred[..., None] if tp_pred.ndim == 2 else tp_pred

    X3 = jnp.transpose(X, (0, 2, 1))        # (B, N, L)
    M3 = jnp.transpose(mask, (0, 2, 1))     # (B, N, L)

    TB = _pick_tb(B, N, tile_rows)

    # ---- hoisted per-(b,l) encode terms (identical across the N variables)
    te_true = te_features(t_bl[..., None], p)                          # (B,L,te)
    enh = (te_true @ p["teproj_w"] + p["teproj_b"][0])[:, None, :]     # (B,1,L)
    tmin = jnp.min(t_bl, axis=1, keepdims=True)
    tmax = jnp.max(t_bl, axis=1, keepdims=True)
    tn = (t_bl - tmin) / (tmax - tmin + 1e-8)                          # (B,L)
    inv2a2 = 0.5 / (jnp.exp(p["ttk_log_alpha"]) + 1e-6) ** 2           # (K,)
    d = tn[:, None, :] - p["ttk_c"][None, :, None]                     # (B,K,L)
    gauss = jnp.exp(-(d * d) * inv2a2[None, :, None])                  # (B,K,L)

    gate_s = 1.0 / (1.0 + jnp.exp(-p["ttk_gate"]))
    fpw = p["feat_proj_w"] * jnp.concatenate(
        [gate_s, jnp.ones((1,), jnp.float32)])[:, None]                # gate-folded
    conv_scalars, offs = pack_conv_scalars(p, Cpre)

    # ---- kernel 1: encode -> (B, N, hid)
    z = pallas_encode(conv_scalars, X3, M3, enh, gauss, fpw,
                      p["pe"], p["feat_proj_b"][None, :],
                      TB=TB, K=K, Cpre=Cpre, offs=offs)

    # ---- kernel 2: all FreqBlocks + var_agg (bf16 weight stream, f32 accum)
    stk = stack_block_params(p["blocks"], WEIGHT_DTYPE)
    maskm = head_block_mask(hid, heads, r2)
    zf = pallas_freq_stack(z, stk, p["ffwd"], p["finv"], maskm,
                           p["var_agg_w"], p["var_agg_b"][None, :],
                           TB=TB, r2=r2, nlayer=nlayer)                # (B,N,hid)

    # ---- kernel 3: decoder (no Lp replication of zf or weights)
    Lp = tp_pred3.shape[1]
    te_p = te_features(tp_pred3, p)                                    # (B,Lp,te)
    w1h = p["dec_w1"][:hid]                                            # (hid,hid)
    w1t = p["dec_w1"][hid:]                                            # (te, hid)
    T1 = te_p @ w1t + p["dec_b1"][None, None, :]                       # (B,Lp,hid)
    y = pallas_decoder(zf, T1, w1h, p["dec_w2"], p["dec_b2"][None, :],
                       p["dec_w3"].T, jnp.full((1, 1), p["dec_b3"][0]),
                       TB=TB)                                          # (B,N,Lp)
    return jnp.transpose(y, (0, 2, 1))[None]                           # (1,B,Lp,N)


# --------------------------------------------------------------------------
# Main
# --------------------------------------------------------------------------
if __name__ == "__main__":
    B, L, N, Lp = 2, 16, 8, 4
    cfg = dict(N=N, K=4, hid=32, te=9, preconvdim=4, nhead=4, nlayer=2, r=64)
    cfg["ns"] = (cfg["te"] - 1) // 2
    cfg["nc"] = cfg["te"] - 1 - cfg["ns"]

    params = init_params(jax.random.PRNGKey(0), cfg)

    k1, k2, k3, k4 = jax.random.split(jax.random.PRNGKey(0), 4)
    X = jax.random.normal(k1, (B, L, N), jnp.float32)
    tp_true = jnp.sort(jax.random.uniform(k2, (B, L), jnp.float32), axis=1) * 2.0
    tp_pred = jnp.sort(jax.random.uniform(k3, (B, Lp), jnp.float32), axis=1) * 2.0 + 2.0
    mask = (jax.random.uniform(k4, (B, L, N), jnp.float32) > 0.2).astype(jnp.float32)

    # tile_rows=8 forces TB=1 (multi-tile grid) at toy sizes to exercise the
    # tiled / parallel-axis path; use 512-2048 rows per tile in production.
    fwd = jax.jit(functools.partial(kfnet_forward, cfg=cfg, tile_rows=8))
    out = fwd(params, tp_pred, X, tp_true, mask)
    out = jax.block_until_ready(out)

    assert out.shape == (1, B, Lp, N), out.shape
    assert bool(jnp.all(jnp.isfinite(out)))
    print("KERNEL_OK")
</pallas_src>

<mosaic_0001>
module attributes {stable_mosaic.version = 11 : i64} {
  func.func @_encode_kernel(%arg0: i32, %arg1: memref<21xf32, #tpu.memory_space<smem>>, %arg2: memref<1x8x16xf32, #tpu.memory_space<vmem>>, %arg3: memref<1x8x16xf32, #tpu.memory_space<vmem>>, %arg4: memref<1x1x16xf32, #tpu.memory_space<vmem>>, %arg5: memref<1x4x16xf32, #tpu.memory_space<vmem>>, %arg6: memref<5x32xf32, #tpu.memory_space<vmem>>, %arg7: memref<8x32xf32, #tpu.memory_space<vmem>>, %arg8: memref<1x32xf32, #tpu.memory_space<vmem>>, %arg9: memref<1x8x32xf32, #tpu.memory_space<vmem>>) attributes {dimension_semantics = [#tpu.dimension_semantics<parallel>], iteration_bounds = array<i64: 2>, scalar_prefetch = 0 : i64, scratch_operands = 0 : i64, tpu.core_type = #tpu.core_type<tc>, window_params = [{transform_indices = @transform_0, window_bounds = array<i64: 21>}, {transform_indices = @transform_1, window_bounds = array<i64: 1, 8, 16>}, {transform_indices = @transform_2, window_bounds = array<i64: 1, 8, 16>}, {transform_indices = @transform_3, window_bounds = array<i64: 1, 1, 16>}, {transform_indices = @transform_4, window_bounds = array<i64: 1, 4, 16>}, {pipeline_mode = #tpu.pipeline_mode<synchronous>, transform_indices = @transform_5, window_bounds = array<i64: 5, 32>}, {pipeline_mode = #tpu.pipeline_mode<synchronous>, transform_indices = @transform_6, window_bounds = array<i64: 8, 32>}, {pipeline_mode = #tpu.pipeline_mode<synchronous>, transform_indices = @transform_7, window_bounds = array<i64: 1, 32>}, {transform_indices = @transform_8, window_bounds = array<i64: 1, 8, 32>}]} {
    %c0 = arith.constant 0 : index
    %c0_0 = arith.constant 0 : index
    %c0_1 = arith.constant 0 : index
    %0 = vector.load %arg2[%c0, %c0_0, %c0_1] : memref<1x8x16xf32, #tpu.memory_space<vmem>>, vector<1x8x16xf32>
    %c0_2 = arith.constant 0 : index
    %c0_3 = arith.constant 0 : index
    %c0_4 = arith.constant 0 : index
    %1 = vector.load %arg3[%c0_2, %c0_3, %c0_4] : memref<1x8x16xf32, #tpu.memory_space<vmem>>, vector<1x8x16xf32>
    %cst = arith.constant 0.000000e+00 : f32
    %2 = vector.broadcast %cst : f32 to vector<1x8x1xf32>
    %3 = vector.extract_strided_slice %0 {offsets = [0, 0, 0], sizes = [1, 8, 15], strides = [1, 1, 1]} : vector<1x8x16xf32> to vector<1x8x15xf32>
    %4 = tpu.concatenate %2, %3 in 2 : vector<1x8x1xf32>, vector<1x8x15xf32> -> vector<1x8x16xf32>
    %5 = vector.extract_strided_slice %0 {offsets = [0, 0, 1], sizes = [1, 8, 15], strides = [1, 1, 1]} : vector<1x8x16xf32> to vector<1x8x15xf32>
    %6 = tpu.concatenate %5, %2 in 2 : vector<1x8x15xf32>, vector<1x8x1xf32> -> vector<1x8x16xf32>
    %c20 = arith.constant 20 : index
    %7 = memref.load %arg1[%c20] : memref<21xf32, #tpu.memory_space<smem>>
    %8 = vector.broadcast %7 : f32 to vector<1x8x16xf32>
    %c0_5 = arith.constant 0 : index
    %9 = memref.load %arg1[%c0_5] : memref<21xf32, #tpu.memory_space<smem>>
    %10 = vector.broadcast %9 : f32 to vector<1x8x16xf32>
    %11 = arith.mulf %10, %4 : vector<1x8x16xf32>
    %c1 = arith.constant 1 : index
    %12 = memref.load %arg1[%c1] : memref<21xf32, #tpu.memory_space<smem>>
    %13 = vector.broadcast %12 : f32 to vector<1x8x16xf32>
    %14 = arith.mulf %13, %0 : vector<1x8x16xf32>
    %15 = arith.addf %11, %14 : vector<1x8x16xf32>
    %c2 = arith.constant 2 : index
    %16 = memref.load %arg1[%c2] : memref<21xf32, #tpu.memory_space<smem>>
    %17 = vector.broadcast %16 : f32 to vector<1x8x16xf32>
    %18 = arith.mulf %17, %6 : vector<1x8x16xf32>
    %19 = arith.addf %15, %18 : vector<1x8x16xf32>
    %c12 = arith.constant 12 : index
    %20 = memref.load %arg1[%c12] : memref<21xf32, #tpu.memory_space<smem>>
    %21 = vector.broadcast %20 : f32 to vector<1x8x16xf32>
    %22 = arith.addf %19, %21 : vector<1x8x16xf32>
    %c16 = arith.constant 16 : index
    %23 = memref.load %arg1[%c16] : memref<21xf32, #tpu.memory_space<smem>>
    %cst_6 = arith.constant 0.000000e+00 : f32
    %24 = vector.broadcast %cst_6 : f32 to vector<1x8x16xf32>
    %25 = arith.maximumf %22, %24 : vector<1x8x16xf32>
    %26 = vector.broadcast %23 : f32 to vector<1x8x16xf32>
    %27 = arith.mulf %26, %25 : vector<1x8x16xf32>
    %28 = arith.addf %8, %27 : vector<1x8x16xf32>
    %c3 = arith.constant 3 : index
    %29 = memref.load %arg1[%c3] : memref<21xf32, #tpu.memory_space<smem>>
    %30 = vector.broadcast %29 : f32 to vector<1x8x16xf32>
    %31 = arith.mulf %30, %4 : vector<1x8x16xf32>
    %c4 = arith.constant 4 : index
    %32 = memref.load %arg1[%c4] : memref<21xf32, #tpu.memory_space<smem>>
    %33 = vector.broadcast %32 : f32 to vector<1x8x16xf32>
    %34 = arith.mulf %33, %0 : vector<1x8x16xf32>
    %35 = arith.addf %31, %34 : vector<1x8x16xf32>
    %c5 = arith.constant 5 : index
    %36 = memref.load %arg1[%c5] : memref<21xf32, #tpu.memory_space<smem>>
    %37 = vector.broadcast %36 : f32 to vector<1x8x16xf32>
    %38 = arith.mulf %37, %6 : vector<1x8x16xf32>
    %39 = arith.addf %35, %38 : vector<1x8x16xf32>
    %c13 = arith.constant 13 : index
    %40 = memref.load %arg1[%c13] : memref<21xf32, #tpu.memory_space<smem>>
    %41 = vector.broadcast %40 : f32 to vector<1x8x16xf32>
    %42 = arith.addf %39, %41 : vector<1x8x16xf32>
    %c17 = arith.constant 17 : index
    %43 = memref.load %arg1[%c17] : memref<21xf32, #tpu.memory_space<smem>>
    %cst_7 = arith.constant 0.000000e+00 : f32
    %44 = vector.broadcast %cst_7 : f32 to vector<1x8x16xf32>
    %45 = arith.maximumf %42, %44 : vector<1x8x16xf32>
    %46 = vector.broadcast %43 : f32 to vector<1x8x16xf32>
    %47 = arith.mulf %46, %45 : vector<1x8x16xf32>
    %48 = arith.addf %28, %47 : vector<1x8x16xf32>
    %c6 = arith.constant 6 : index
    %49 = memref.load %arg1[%c6] : memref<21xf32, #tpu.memory_space<smem>>
    %50 = vector.broadcast %49 : f32 to vector<1x8x16xf32>
    %51 = arith.mulf %50, %4 : vector<1x8x16xf32>
    %c7 = arith.constant 7 : index
    %52 = memref.load %arg1[%c7] : memref<21xf32, #tpu.memory_space<smem>>
    %53 = vector.broadcast %52 : f32 to vector<1x8x16xf32>
    %54 = arith.mulf %53, %0 : vector<1x8x16xf32>
    %55 = arith.addf %51, %54 : vector<1x8x16xf32>
    %c8 = arith.constant 8 : index
    %56 = memref.load %arg1[%c8] : memref<21xf32, #tpu.memory_space<smem>>
    %57 = vector.broadcast %56 : f32 to vector<1x8x16xf32>
    %58 = arith.mulf %57, %6 : vector<1x8x16xf32>
    %59 = arith.addf %55, %58 : vector<1x8x16xf32>
    %c14 = arith.constant 14 : index
    %60 = memref.load %arg1[%c14] : memref<21xf32, #tpu.memory_space<smem>>
    %61 = vector.broadcast %60 : f32 to vector<1x8x16xf32>
    %62 = arith.addf %59, %61 : vector<1x8x16xf32>
    %c18 = arith.constant 18 : index
    %63 = memref.load %arg1[%c18] : memref<21xf32, #tpu.memory_space<smem>>
    %cst_8 = arith.constant 0.000000e+00 : f32
    %64 = vector.broadcast %cst_8 : f32 to vector<1x8x16xf32>
    %65 = arith.maximumf %62, %64 : vector<1x8x16xf32>
    %66 = vector.broadcast %63 : f32 to vector<1x8x16xf32>
    %67 = arith.mulf %66, %65 : vector<1x8x16xf32>
    %68 = arith.addf %48, %67 : vector<1x8x16xf32>
    %c9 = arith.constant 9 : index
    %69 = memref.load %arg1[%c9] : memref<21xf32, #tpu.memory_space<smem>>
    %70 = vector.broadcast %69 : f32 to vector<1x8x16xf32>
    %71 = arith.mulf %70, %4 : vector<1x8x16xf32>
    %c10 = arith.constant 10 : index
    %72 = memref.load %arg1[%c10] : memref<21xf32, #tpu.memory_space<smem>>
    %73 = vector.broadcast %72 : f32 to vector<1x8x16xf32>
    %74 = arith.mulf %73, %0 : vector<1x8x16xf32>
    %75 = arith.addf %71, %74 : vector<1x8x16xf32>
    %c11 = arith.constant 11 : index
    %76 = memref.load %arg1[%c11] : memref<21xf32, #tpu.memory_space<smem>>
    %77 = vector.broadcast %76 : f32 to vector<1x8x16xf32>
    %78 = arith.mulf %77, %6 : vector<1x8x16xf32>
    %79 = arith.addf %75, %78 : vector<1x8x16xf32>
    %c15 = arith.constant 15 : index
    %80 = memref.load %arg1[%c15] : memref<21xf32, #tpu.memory_space<smem>>
    %81 = vector.broadcast %80 : f32 to vector<1x8x16xf32>
    %82 = arith.addf %79, %81 : vector<1x8x16xf32>
    %c19 = arith.constant 19 : index
    %83 = memref.load %arg1[%c19] : memref<21xf32, #tpu.memory_space<smem>>
    %cst_9 = arith.constant 0.000000e+00 : f32
    %84 = vector.broadcast %cst_9 : f32 to vector<1x8x16xf32>
    %85 = arith.maximumf %82, %84 : vector<1x8x16xf32>
    %86 = vector.broadcast %83 : f32 to vector<1x8x16xf32>
    %87 = arith.mulf %86, %85 : vector<1x8x16xf32>
    %88 = arith.addf %68, %87 : vector<1x8x16xf32>
    %c0_10 = arith.constant 0 : index
    %c0_11 = arith.constant 0 : index
    %c0_12 = arith.constant 0 : index
    %89 = vector.load %arg4[%c0_10, %c0_11, %c0_12] : memref<1x1x16xf32, #tpu.memory_space<vmem>>, vector<1x1x16xf32>
    %90 = vector.broadcast %89 : vector<1x1x16xf32> to vector<1x8x16xf32>
    %91 = arith.addf %88, %90 : vector<1x8x16xf32>
    %c0_13 = arith.constant 0 : index
    %c0_14 = arith.constant 0 : index
    %92 = vector.load %arg7[%c0_13, %c0_14] : memref<8x32xf32, #tpu.memory_space<vmem>>, vector<8x32xf32>
    %c0_15 = arith.constant 0 : index
    %c0_16 = arith.constant 0 : index
    %93 = vector.load %arg8[%c0_15, %c0_16] : memref<1x32xf32, #tpu.memory_space<vmem>>, vector<1x32xf32>
    %94 = vector.broadcast %93 : vector<1x32xf32> to vector<8x32xf32>
    %95 = arith.addf %92, %94 : vector<8x32xf32>
    %96 = vector.shape_cast %95 : vector<8x32xf32> to vector<1x8x32xf32>
    %c0_17 = arith.constant 0 : index
    %c0_18 = arith.constant 0 : index
    %c0_19 = arith.constant 0 : index
    %97 = vector.load %arg5[%c0_17, %c0_18, %c0_19] : memref<1x4x16xf32, #tpu.memory_space<vmem>>, vector<1x1x16xf32>
    %98 = vector.broadcast %97 : vector<1x1x16xf32> to vector<1x8x16xf32>
    %99 = arith.mulf %98, %1 : vector<1x8x16xf32>
    %cst_20 = arith.constant dense<0.000000e+00> : vector<1x8xf32>
    %100 = vector.multi_reduction <add>, %99, %cst_20 [2] : vector<1x8x16xf32> to vector<1x8xf32>
    %101 = vector.shape_cast %100 : vector<1x8xf32> to vector<1x8x1xf32>
    %cst_21 = arith.constant 9.99999993E-9 : f32
    %102 = vector.broadcast %cst_21 : f32 to vector<1x8x1xf32>
    %103 = arith.addf %101, %102 : vector<1x8x1xf32>
    %104 = vector.broadcast %103 : vector<1x8x1xf32> to vector<1x8x16xf32>
    %105 = arith.divf %99, %104 : vector<1x8x16xf32>
    %106 = arith.mulf %105, %91 : vector<1x8x16xf32>
    %cst_22 = arith.constant dense<0.000000e+00> : vector<1x8xf32>
    %107 = vector.multi_reduction <add>, %106, %cst_22 [2] : vector<1x8x16xf32> to vector<1x8xf32>
    %108 = vector.shape_cast %107 : vector<1x8xf32> to vector<1x8x1xf32>
    %c0_23 = arith.constant 0 : index
    %c0_24 = arith.constant 0 : index
    %109 = vector.load %arg6[%c0_23, %c0_24] : memref<5x32xf32, #tpu.memory_space<vmem>>, vector<1x32xf32>
    %110 = vector.shape_cast %109 : vector<1x32xf32> to vector<1x1x32xf32>
    %111 = vector.broadcast %108 : vector<1x8x1xf32> to vector<1x8x32xf32>
    %112 = vector.broadcast %110 : vector<1x1x32xf32> to vector<1x8x32xf32>
    %113 = arith.mulf %111, %112 : vector<1x8x32xf32>
    %114 = arith.addf %96, %113 : vector<1x8x32xf32>
    %c0_25 = arith.constant 0 : index
    %c1_26 = arith.constant 1 : index
    %c0_27 = arith.constant 0 : index
    %115 = vector.load %arg5[%c0_25, %c1_26, %c0_27] : memref<1x4x16xf32, #tpu.memory_space<vmem>>, vector<1x1x16xf32>
    %116 = vector.broadcast %115 : vector<1x1x16xf32> to vector<1x8x16xf32>
    %117 = arith.mulf %116, %1 : vector<1x8x16xf32>
    %cst_28 = arith.constant dense<0.000000e+00> : vector<1x8xf32>
    %118 = vector.multi_reduction <add>, %117, %cst_28 [2] : vector<1x8x16xf32> to vector<1x8xf32>
    %119 = vector.shape_cast %118 : vector<1x8xf32> to vector<1x8x1xf32>
    %cst_29 = arith.constant 9.99999993E-9 : f32
    %120 = vector.broadcast %cst_29 : f32 to vector<1x8x1xf32>
    %121 = arith.addf %119, %120 : vector<1x8x1xf32>
    %122 = vector.broadcast %121 : vector<1x8x1xf32> to vector<1x8x16xf32>
    %123 = arith.divf %117, %122 : vector<1x8x16xf32>
    %124 = arith.mulf %123, %91 : vector<1x8x16xf32>
    %cst_30 = arith.constant dense<0.000000e+00> : vector<1x8xf32>
    %125 = vector.multi_reduction <add>, %124, %cst_30 [2] : vector<1x8x16xf32> to vector<1x8xf32>
    %126 = vector.shape_cast %125 : vector<1x8xf32> to vector<1x8x1xf32>
    %c1_31 = arith.constant 1 : index
    %c0_32 = arith.constant 0 : index
    %127 = vector.load %arg6[%c1_31, %c0_32] : memref<5x32xf32, #tpu.memory_space<vmem>>, vector<1x32xf32>
    %128 = vector.shape_cast %127 : vector<1x32xf32> to vector<1x1x32xf32>
    %129 = vector.broadcast %126 : vector<1x8x1xf32> to vector<1x8x32xf32>
    %130 = vector.broadcast %128 : vector<1x1x32xf32> to vector<1x8x32xf32>
    %131 = arith.mulf %129, %130 : vector<1x8x32xf32>
    %132 = arith.addf %114, %131 : vector<1x8x32xf32>
    %c0_33 = arith.constant 0 : index
    %c2_34 = arith.constant 2 : index
    %c0_35 = arith.constant 0 : index
    %133 = vector.load %arg5[%c0_33, %c2_34, %c0_35] : memref<1x4x16xf32, #tpu.memory_space<vmem>>, vector<1x1x16xf32>
    %134 = vector.broadcast %133 : vector<1x1x16xf32> to vector<1x8x16xf32>
    %135 = arith.mulf %134, %1 : vector<1x8x16xf32>
    %cst_36 = arith.constant dense<0.000000e+00> : vector<1x8xf32>
    %136 = vector.multi_reduction <add>, %135, %cst_36 [2] : vector<1x8x16xf32> to vector<1x8xf32>
    %137 = vector.shape_cast %136 : vector<1x8xf32> to vector<1x8x1xf32>
    %cst_37 = arith.constant 9.99999993E-9 : f32
    %138 = vector.broadcast %cst_37 : f32 to vector<1x8x1xf32>
    %139 = arith.addf %137, %138 : vector<1x8x1xf32>
    %140 = vector.broadcast %139 : vector<1x8x1xf32> to vector<1x8x16xf32>
    %141 = arith.divf %135, %140 : vector<1x8x16xf32>
    %142 = arith.mulf %141, %91 : vector<1x8x16xf32>
    %cst_38 = arith.constant dense<0.000000e+00> : vector<1x8xf32>
    %143 = vector.multi_reduction <add>, %142, %cst_38 [2] : vector<1x8x16xf32> to vector<1x8xf32>
    %144 = vector.shape_cast %143 : vector<1x8xf32> to vector<1x8x1xf32>
    %c2_39 = arith.constant 2 : index
    %c0_40 = arith.constant 0 : index
    %145 = vector.load %arg6[%c2_39, %c0_40] : memref<5x32xf32, #tpu.memory_space<vmem>>, vector<1x32xf32>
    %146 = vector.shape_cast %145 : vector<1x32xf32> to vector<1x1x32xf32>
    %147 = vector.broadcast %144 : vector<1x8x1xf32> to vector<1x8x32xf32>
    %148 = vector.broadcast %146 : vector<1x1x32xf32> to vector<1x8x32xf32>
    %149 = arith.mulf %147, %148 : vector<1x8x32xf32>
    %150 = arith.addf %132, %149 : vector<1x8x32xf32>
    %c0_41 = arith.constant 0 : index
    %c3_42 = arith.constant 3 : index
    %c0_43 = arith.constant 0 : index
    %151 = vector.load %arg5[%c0_41, %c3_42, %c0_43] : memref<1x4x16xf32, #tpu.memory_space<vmem>>, vector<1x1x16xf32>
    %152 = vector.broadcast %151 : vector<1x1x16xf32> to vector<1x8x16xf32>
    %153 = arith.mulf %152, %1 : vector<1x8x16xf32>
    %cst_44 = arith.constant dense<0.000000e+00> : vector<1x8xf32>
    %154 = vector.multi_reduction <add>, %153, %cst_44 [2] : vector<1x8x16xf32> to vector<1x8xf32>
    %155 = vector.shape_cast %154 : vector<1x8xf32> to vector<1x8x1xf32>
    %cst_45 = arith.constant 9.99999993E-9 : f32
    %156 = vector.broadcast %cst_45 : f32 to vector<1x8x1xf32>
    %157 = arith.addf %155, %156 : vector<1x8x1xf32>
    %158 = vector.broadcast %157 : vector<1x8x1xf32> to vector<1x8x16xf32>
    %159 = arith.divf %153, %158 : vector<1x8x16xf32>
    %160 = arith.mulf %159, %91 : vector<1x8x16xf32>
    %cst_46 = arith.constant dense<0.000000e+00> : vector<1x8xf32>
    %161 = vector.multi_reduction <add>, %160, %cst_46 [2] : vector<1x8x16xf32> to vector<1x8xf32>
    %162 = vector.shape_cast %161 : vector<1x8xf32> to vector<1x8x1xf32>
    %c3_47 = arith.constant 3 : index
    %c0_48 = arith.constant 0 : index
    %163 = vector.load %arg6[%c3_47, %c0_48] : memref<5x32xf32, #tpu.memory_space<vmem>>, vector<1x32xf32>
    %164 = vector.shape_cast %163 : vector<1x32xf32> to vector<1x1x32xf32>
    %165 = vector.broadcast %162 : vector<1x8x1xf32> to vector<1x8x32xf32>
    %166 = vector.broadcast %164 : vector<1x1x32xf32> to vector<1x8x32xf32>
    %167 = arith.mulf %165, %166 : vector<1x8x32xf32>
    %168 = arith.addf %150, %167 : vector<1x8x32xf32>
    %cst_49 = arith.constant dense<0.000000e+00> : vector<1x8xf32>
    %169 = vector.multi_reduction <add>, %1, %cst_49 [2] : vector<1x8x16xf32> to vector<1x8xf32>
    %170 = vector.shape_cast %169 : vector<1x8xf32> to vector<1x8x1xf32>
    %cst_50 = arith.constant 0.000000e+00 : f32
    %171 = vector.broadcast %cst_50 : f32 to vector<1x8x1xf32>
    %172 = arith.cmpf ogt, %170, %171 : vector<1x8x1xf32>
    %173 = arith.extui %172 : vector<1x8x1xi1> to vector<1x8x1xi32>
    %174 = arith.sitofp %173 : vector<1x8x1xi32> to vector<1x8x1xf32>
    %c4_51 = arith.constant 4 : index
    %c0_52 = arith.constant 0 : index
    %175 = vector.load %arg6[%c4_51, %c0_52] : memref<5x32xf32, #tpu.memory_space<vmem>>, vector<1x32xf32>
    %176 = vector.shape_cast %175 : vector<1x32xf32> to vector<1x1x32xf32>
    %177 = vector.broadcast %174 : vector<1x8x1xf32> to vector<1x8x32xf32>
    %178 = vector.broadcast %176 : vector<1x1x32xf32> to vector<1x8x32xf32>
    %179 = arith.mulf %177, %178 : vector<1x8x32xf32>
    %180 = arith.addf %168, %179 : vector<1x8x32xf32>
    %c0_53 = arith.constant 0 : index
    %c0_54 = arith.constant 0 : index
    %c0_55 = arith.constant 0 : index
    %181 = vector.load %arg9[%c0_53, %c0_54, %c0_55] : memref<1x8x32xf32, #tpu.memory_space<vmem>>, vector<1x8x32xf32>
    tpu.vector_store %arg9[%c0_53, %c0_54, %c0_55], %180 {strides = array<i32>} : memref<1x8x32xf32, #tpu.memory_space<vmem>>, vector<1x8x32xf32>,
    return
  }
  func.func @transform_0(%arg0: i32) -> i32 {
    %c0_i32 = arith.constant 0 : i32
    %c0_i32_0 = arith.constant 0 : i32
    return %c0_i32 : i32
  }
  func.func @transform_1(%arg0: i32) -> (i32, i32, i32) {
    %c0_i32 = arith.constant 0 : i32
    %c0_i32_0 = arith.constant 0 : i32
    %c0_i32_1 = arith.constant 0 : i32
    return %arg0, %c0_i32, %c0_i32_0 : i32, i32, i32
  }
  func.func @transform_2(%arg0: i32) -> (i32, i32, i32) {
    %c0_i32 = arith.constant 0 : i32
    %c0_i32_0 = arith.constant 0 : i32
    %c0_i32_1 = arith.constant 0 : i32
    return %arg0, %c0_i32, %c0_i32_0 : i32, i32, i32
  }
  func.func @transform_3(%arg0: i32) -> (i32, i32, i32) {
    %c0_i32 = arith.constant 0 : i32
    %c0_i32_0 = arith.constant 0 : i32
    %c0_i32_1 = arith.constant 0 : i32
    return %arg0, %c0_i32, %c0_i32_0 : i32, i32, i32
  }
  func.func @transform_4(%arg0: i32) -> (i32, i32, i32) {
    %c0_i32 = arith.constant 0 : i32
    %c0_i32_0 = arith.constant 0 : i32
    %c0_i32_1 = arith.constant 0 : i32
    return %arg0, %c0_i32, %c0_i32_0 : i32, i32, i32
  }
  func.func @transform_5(%arg0: i32) -> (i32, i32) {
    %c0_i32 = arith.constant 0 : i32
    %c0_i32_0 = arith.constant 0 : i32
    %c0_i32_1 = arith.constant 0 : i32
    return %c0_i32, %c0_i32_0 : i32, i32
  }
  func.func @transform_6(%arg0: i32) -> (i32, i32) {
    %c0_i32 = arith.constant 0 : i32
    %c0_i32_0 = arith.constant 0 : i32
    %c0_i32_1 = arith.constant 0 : i32
    return %c0_i32, %c0_i32_0 : i32, i32
  }
  func.func @transform_7(%arg0: i32) -> (i32, i32) {
    %c0_i32 = arith.constant 0 : i32
    %c0_i32_0 = arith.constant 0 : i32
    %c0_i32_1 = arith.constant 0 : i32
    return %c0_i32, %c0_i32_0 : i32, i32
  }
  func.func @transform_8(%arg0: i32) -> (i32, i32, i32) {
    %c0_i32 = arith.constant 0 : i32
    %c0_i32_0 = arith.constant 0 : i32
    %c0_i32_1 = arith.constant 0 : i32
    return %arg0, %c0_i32, %c0_i32_0 : i32, i32, i32
  }
}

module attributes {stable_mosaic.version = 11 : i64} {
  func.func @_freq_stack_kernel(%arg0: i32, %arg1: i32, %arg2: memref<1x8x32xf32, #tpu.memory_space<vmem>>, %arg3: memref<32x32xf32, #tpu.memory_space<vmem>>, %arg4: memref<32x32xf32, #tpu.memory_space<vmem>>, %arg5: memref<128x32xf32, #tpu.memory_space<vmem>>, %arg6: memref<1x1x32xf32, #tpu.memory_space<vmem>>, %arg7: memref<1x1x32xf32, #tpu.memory_space<vmem>>, %arg8: memref<1x32x32xbf16, #tpu.memory_space<vmem>>, %arg9: memref<1x1x32xf32, #tpu.memory_space<vmem>>, %arg10: memref<1x32x32xbf16, #tpu.memory_space<vmem>>, %arg11: memref<1x1x32xf32, #tpu.memory_space<vmem>>, %arg12: memref<1x32x32xbf16, #tpu.memory_space<vmem>>, %arg13: memref<1x1x32xf32, #tpu.memory_space<vmem>>, %arg14: memref<1x32x128xbf16, #tpu.memory_space<vmem>>, %arg15: memref<1x1x128xf32, #tpu.memory_space<vmem>>, %arg16: memref<1x32x32xbf16, #tpu.memory_space<vmem>>, %arg17: memref<1x1x32xf32, #tpu.memory_space<vmem>>, %arg18: memref<1x1x32xf32, #tpu.memory_space<vmem>>, %arg19: memref<1x1x32xf32, #tpu.memory_space<vmem>>, %arg20: memref<1x32x128xbf16, #tpu.memory_space<vmem>>, %arg21: memref<1x1x128xf32, #tpu.memory_space<vmem>>, %arg22: memref<1x128x32xbf16, #tpu.memory_space<vmem>>, %arg23: memref<1x1x32xf32, #tpu.memory_space<vmem>>, %arg24: memref<32x32xf32, #tpu.memory_space<vmem>>, %arg25: memref<1x32xf32, #tpu.memory_space<vmem>>, %arg26: memref<1x8x32xf32, #tpu.memory_space<vmem>>) attributes {dimension_semantics = [#tpu.dimension_semantics<parallel>, #tpu.dimension_semantics<arbitrary>], iteration_bounds = array<i64: 2, 2>, scalar_prefetch = 0 : i64, scratch_operands = 0 : i64, tpu.core_type = #tpu.core_type<tc>, window_params = [{transform_indices = @transform_0, window_bounds = array<i64: 1, 8, 32>}, {pipeline_mode = #tpu.pipeline_mode<synchronous>, transform_indices = @transform_1, window_bounds = array<i64: 32, 32>}, {pipeline_mode = #tpu.pipeline_mode<synchronous>, transform_indices = @transform_2, window_bounds = array<i64: 32, 32>}, {pipeline_mode = #tpu.pipeline_mode<synchronous>, transform_indices = @transform_3, window_bounds = array<i64: 128, 32>}, {transform_indices = @transform_4, window_bounds = array<i64: 1, 1, 32>}, {transform_indices = @transform_5, window_bounds = array<i64: 1, 1, 32>}, {transform_indices = @transform_6, window_bounds = array<i64: 1, 32, 32>}, {transform_indices = @transform_7, window_bounds = array<i64: 1, 1, 32>}, {transform_indices = @transform_8, window_bounds = array<i64: 1, 32, 32>}, {transform_indices = @transform_9, window_bounds = array<i64: 1, 1, 32>}, {transform_indices = @transform_10, window_bounds = array<i64: 1, 32, 32>}, {transform_indices = @transform_11, window_bounds = array<i64: 1, 1, 32>}, {transform_indices = @transform_12, window_bounds = array<i64: 1, 32, 128>}, {transform_indices = @transform_13, window_bounds = array<i64: 1, 1, 128>}, {transform_indices = @transform_14, window_bounds = array<i64: 1, 32, 32>}, {transform_indices = @transform_15, window_bounds = array<i64: 1, 1, 32>}, {transform_indices = @transform_16, window_bounds = array<i64: 1, 1, 32>}, {transform_indices = @transform_17, window_bounds = array<i64: 1, 1, 32>}, {transform_indices = @transform_18, window_bounds = array<i64: 1, 32, 128>}, {transform_indices = @transform_19, window_bounds = array<i64: 1, 1, 128>}, {transform_indices = @transform_20, window_bounds = array<i64: 1, 128, 32>}, {transform_indices = @transform_21, window_bounds = array<i64: 1, 1, 32>}, {pipeline_mode = #tpu.pipeline_mode<synchronous>, transform_indices = @transform_22, window_bounds = array<i64: 32, 32>}, {pipeline_mode = #tpu.pipeline_mode<synchronous>, transform_indices = @transform_23, window_bounds = array<i64: 1, 32>}, {transform_indices = @transform_24, window_bounds = array<i64: 1, 8, 32>}]} {
    %c0_i32 = arith.constant 0 : i32
    %0 = arith.cmpi eq, %arg1, %c0_i32 : i32
    %1 = arith.extui %0 : i1 to i32
    %c0_i32_0 = arith.constant 0 : i32
    %2 = arith.cmpi ne, %1, %c0_i32_0 : i32
    scf.if %2 {
      %c0_104 = arith.constant 0 : index
      %c0_105 = arith.constant 0 : index
      %c0_106 = arith.constant 0 : index
      %183 = vector.load %arg2[%c0_104, %c0_105, %c0_106] : memref<1x8x32xf32, #tpu.memory_space<vmem>>, vector<1x8x32xf32>
      %c0_107 = arith.constant 0 : index
      %c0_108 = arith.constant 0 : index
      %c0_109 = arith.constant 0 : index
      %184 = vector.load %arg26[%c0_107, %c0_108, %c0_109] : memref<1x8x32xf32, #tpu.memory_space<vmem>>, vector<1x8x32xf32>
      tpu.vector_store %arg26[%c0_107, %c0_108, %c0_109], %183 {strides = array<i32>} : memref<1x8x32xf32, #tpu.memory_space<vmem>>, vector<1x8x32xf32>,
    } else {
    }
    %c0 = arith.constant 0 : index
    %c0_1 = arith.constant 0 : index
    %c0_2 = arith.constant 0 : index
    %3 = vector.load %arg26[%c0, %c0_1, %c0_2] : memref<1x8x32xf32, #tpu.memory_space<vmem>>, vector<1x8x32xf32>
    %4 = vector.shape_cast %3 : vector<1x8x32xf32> to vector<8x32xf32>
    %c0_3 = arith.constant 0 : index
    %c0_4 = arith.constant 0 : index
    %c0_5 = arith.constant 0 : index
    %5 = vector.load %arg6[%c0_3, %c0_4, %c0_5] : memref<1x1x32xf32, #tpu.memory_space<vmem>>, vector<1x1x32xf32>
    %6 = vector.shape_cast %5 : vector<1x1x32xf32> to vector<1x32xf32>
    %c0_6 = arith.constant 0 : index
    %c0_7 = arith.constant 0 : index
    %c0_8 = arith.constant 0 : index
    %7 = vector.load %arg7[%c0_6, %c0_7, %c0_8] : memref<1x1x32xf32, #tpu.memory_space<vmem>>, vector<1x1x32xf32>
    %8 = vector.shape_cast %7 : vector<1x1x32xf32> to vector<1x32xf32>
    %cst = arith.constant dense<0.000000e+00> : vector<8xf32>
    %9 = vector.multi_reduction <add>, %4, %cst [1] : vector<8x32xf32> to vector<8xf32>
    %10 = vector.shape_cast %9 : vector<8xf32> to vector<8x1xf32>
    %cst_9 = arith.constant 3.200000e+01 : f32
    %11 = vector.broadcast %cst_9 : f32 to vector<8x1xf32>
    %12 = arith.divf %10, %11 : vector<8x1xf32>
    %13 = vector.broadcast %12 : vector<8x1xf32> to vector<8x32xf32>
    %14 = arith.subf %4, %13 : vector<8x32xf32>
    %15 = arith.mulf %14, %14 : vector<8x32xf32>
    %cst_10 = arith.constant dense<0.000000e+00> : vector<8xf32>
    %16 = vector.multi_reduction <add>, %15, %cst_10 [1] : vector<8x32xf32> to vector<8xf32>
    %17 = vector.shape_cast %16 : vector<8xf32> to vector<8x1xf32>
    %cst_11 = arith.constant 3.200000e+01 : f32
    %18 = vector.broadcast %cst_11 : f32 to vector<8x1xf32>
    %19 = arith.divf %17, %18 : vector<8x1xf32>
    %20 = vector.broadcast %12 : vector<8x1xf32> to vector<8x32xf32>
    %21 = arith.subf %4, %20 : vector<8x32xf32>
    %cst_12 = arith.constant 9.99999974E-6 : f32
    %22 = vector.broadcast %cst_12 : f32 to vector<8x1xf32>
    %23 = arith.addf %19, %22 : vector<8x1xf32>
    %24 = math.rsqrt %23 : vector<8x1xf32>
    %25 = vector.broadcast %24 : vector<8x1xf32> to vector<8x32xf32>
    %26 = arith.mulf %21, %25 : vector<8x32xf32>
    %27 = vector.broadcast %6 : vector<1x32xf32> to vector<8x32xf32>
    %28 = arith.mulf %26, %27 : vector<8x32xf32>
    %29 = vector.broadcast %8 : vector<1x32xf32> to vector<8x32xf32>
    %30 = arith.addf %28, %29 : vector<8x32xf32>
    %c0_13 = arith.constant 0 : index
    %c0_14 = arith.constant 0 : index
    %31 = vector.load %arg3[%c0_13, %c0_14] : memref<32x32xf32, #tpu.memory_space<vmem>>, vector<32x32xf32>
    %cst_15 = arith.constant dense<0.000000e+00> : vector<8x32xf32>
    %32 = tpu.matmul %30, %31, %cst_15 {dimension_numbers = #tpu.dot_dimension_numbers<[1], [0], [0], [1], [0, 0, 1, 1], [], []>} : vector<8x32xf32>, vector<32x32xf32>, vector<8x32xf32> -> vector<8x32xf32>
    %33 = arith.truncf %32 : vector<8x32xf32> to vector<8x32xbf16>
    %c0_16 = arith.constant 0 : index
    %c0_17 = arith.constant 0 : index
    %c0_18 = arith.constant 0 : index
    %34 = vector.load %arg8[%c0_16, %c0_17, %c0_18] : memref<1x32x32xbf16, #tpu.memory_space<vmem>>, vector<1x32x32xbf16>
    %35 = vector.shape_cast %34 : vector<1x32x32xbf16> to vector<32x32xbf16>
    %cst_19 = arith.constant dense<0.000000e+00> : vector<8x32xf32>
    %36 = tpu.matmul %33, %35, %cst_19 {dimension_numbers = #tpu.dot_dimension_numbers<[1], [0], [0], [1], [0, 0, 1, 1], [], []>} : vector<8x32xbf16>, vector<32x32xbf16>, vector<8x32xf32> -> vector<8x32xf32>
    %c0_20 = arith.constant 0 : index
    %c0_21 = arith.constant 0 : index
    %c0_22 = arith.constant 0 : index
    %37 = vector.load %arg9[%c0_20, %c0_21, %c0_22] : memref<1x1x32xf32, #tpu.memory_space<vmem>>, vector<1x1x32xf32>
    %38 = vector.shape_cast %37 : vector<1x1x32xf32> to vector<1x32xf32>
    %39 = vector.broadcast %38 : vector<1x32xf32> to vector<8x32xf32>
    %40 = arith.addf %36, %39 : vector<8x32xf32>
    %c0_23 = arith.constant 0 : index
    %c0_24 = arith.constant 0 : index
    %c0_25 = arith.constant 0 : index
    %41 = vector.load %arg10[%c0_23, %c0_24, %c0_25] : memref<1x32x32xbf16, #tpu.memory_space<vmem>>, vector<1x32x32xbf16>
    %42 = vector.shape_cast %41 : vector<1x32x32xbf16> to vector<32x32xbf16>
    %cst_26 = arith.constant dense<0.000000e+00> : vector<8x32xf32>
    %43 = tpu.matmul %33, %42, %cst_26 {dimension_numbers = #tpu.dot_dimension_numbers<[1], [0], [0], [1], [0, 0, 1, 1], [], []>} : vector<8x32xbf16>, vector<32x32xbf16>, vector<8x32xf32> -> vector<8x32xf32>
    %c0_27 = arith.constant 0 : index
    %c0_28 = arith.constant 0 : index
    %c0_29 = arith.constant 0 : index
    %44 = vector.load %arg11[%c0_27, %c0_28, %c0_29] : memref<1x1x32xf32, #tpu.memory_space<vmem>>, vector<1x1x32xf32>
    %45 = vector.shape_cast %44 : vector<1x1x32xf32> to vector<1x32xf32>
    %46 = vector.broadcast %45 : vector<1x32xf32> to vector<8x32xf32>
    %47 = arith.addf %43, %46 : vector<8x32xf32>
    %c0_30 = arith.constant 0 : index
    %c0_31 = arith.constant 0 : index
    %c0_32 = arith.constant 0 : index
    %48 = vector.load %arg12[%c0_30, %c0_31, %c0_32] : memref<1x32x32xbf16, #tpu.memory_space<vmem>>, vector<1x32x32xbf16>
    %49 = vector.shape_cast %48 : vector<1x32x32xbf16> to vector<32x32xbf16>
    %cst_33 = arith.constant dense<0.000000e+00> : vector<8x32xf32>
    %50 = tpu.matmul %33, %49, %cst_33 {dimension_numbers = #tpu.dot_dimension_numbers<[1], [0], [0], [1], [0, 0, 1, 1], [], []>} : vector<8x32xbf16>, vector<32x32xbf16>, vector<8x32xf32> -> vector<8x32xf32>
    %c0_34 = arith.constant 0 : index
    %c0_35 = arith.constant 0 : index
    %c0_36 = arith.constant 0 : index
    %51 = vector.load %arg13[%c0_34, %c0_35, %c0_36] : memref<1x1x32xf32, #tpu.memory_space<vmem>>, vector<1x1x32xf32>
    %52 = vector.shape_cast %51 : vector<1x1x32xf32> to vector<1x32xf32>
    %53 = vector.broadcast %52 : vector<1x32xf32> to vector<8x32xf32>
    %54 = arith.addf %50, %53 : vector<8x32xf32>
    %55 = arith.truncf %40 : vector<8x32xf32> to vector<8x32xbf16>
    %c0_37 = arith.constant 0 : index
    %c0_38 = arith.constant 0 : index
    %c0_39 = arith.constant 0 : index
    %56 = vector.load %arg14[%c0_37, %c0_38, %c0_39] : memref<1x32x128xbf16, #tpu.memory_space<vmem>>, vector<1x32x128xbf16>
    %57 = vector.shape_cast %56 : vector<1x32x128xbf16> to vector<32x128xbf16>
    %cst_40 = arith.constant dense<0.000000e+00> : vector<8x128xf32>
    %58 = tpu.matmul %55, %57, %cst_40 {dimension_numbers = #tpu.dot_dimension_numbers<[1], [0], [0], [1], [0, 0, 1, 1], [], []>} : vector<8x32xbf16>, vector<32x128xbf16>, vector<8x128xf32> -> vector<8x128xf32>
    %c0_41 = arith.constant 0 : index
    %c0_42 = arith.constant 0 : index
    %c0_43 = arith.constant 0 : index
    %59 = vector.load %arg15[%c0_41, %c0_42, %c0_43] : memref<1x1x128xf32, #tpu.memory_space<vmem>>, vector<1x1x128xf32>
    %60 = vector.shape_cast %59 : vector<1x1x128xf32> to vector<1x128xf32>
    %61 = vector.broadcast %60 : vector<1x128xf32> to vector<8x128xf32>
    %62 = arith.addf %58, %61 : vector<8x128xf32>
    %63 = arith.truncf %47 : vector<8x32xf32> to vector<8x32xbf16>
    %c0_44 = arith.constant 0 : index
    %c0_45 = arith.constant 0 : index
    %c0_46 = arith.constant 0 : index
    %64 = vector.load %arg14[%c0_44, %c0_45, %c0_46] : memref<1x32x128xbf16, #tpu.memory_space<vmem>>, vector<1x32x128xbf16>
    %65 = vector.shape_cast %64 : vector<1x32x128xbf16> to vector<32x128xbf16>
    %cst_47 = arith.constant dense<0.000000e+00> : vector<8x128xf32>
    %66 = tpu.matmul %63, %65, %cst_47 {dimension_numbers = #tpu.dot_dimension_numbers<[1], [0], [0], [1], [0, 0, 1, 1], [], []>} : vector<8x32xbf16>, vector<32x128xbf16>, vector<8x128xf32> -> vector<8x128xf32>
    %c0_48 = arith.constant 0 : index
    %c0_49 = arith.constant 0 : index
    %c0_50 = arith.constant 0 : index
    %67 = vector.load %arg15[%c0_48, %c0_49, %c0_50] : memref<1x1x128xf32, #tpu.memory_space<vmem>>, vector<1x1x128xf32>
    %68 = vector.shape_cast %67 : vector<1x1x128xf32> to vector<1x128xf32>
    %69 = vector.broadcast %68 : vector<1x128xf32> to vector<8x128xf32>
    %70 = arith.addf %66, %69 : vector<8x128xf32>
    %71 = math.cos %62 : vector<8x128xf32>
    %cst_51 = arith.constant 0.176776692 : f32
    %72 = vector.broadcast %cst_51 : f32 to vector<8x128xf32>
    %73 = arith.mulf %71, %72 : vector<8x128xf32>
    %74 = vector.shape_cast %73 : vector<8x128xf32> to vector<1x8x128xf32>
    %75 = math.sin %62 : vector<8x128xf32>
    %cst_52 = arith.constant 0.176776692 : f32
    %76 = vector.broadcast %cst_52 : f32 to vector<8x128xf32>
    %77 = arith.mulf %75, %76 : vector<8x128xf32>
    %78 = vector.shape_cast %77 : vector<8x128xf32> to vector<1x8x128xf32>
    %79 = math.cos %70 : vector<8x128xf32>
    %cst_53 = arith.constant 0.176776692 : f32
    %80 = vector.broadcast %cst_53 : f32 to vector<8x128xf32>
    %81 = arith.mulf %79, %80 : vector<8x128xf32>
    %82 = vector.shape_cast %81 : vector<8x128xf32> to vector<1x8x128xf32>
    %83 = math.sin %70 : vector<8x128xf32>
    %cst_54 = arith.constant 0.176776692 : f32
    %84 = vector.broadcast %cst_54 : f32 to vector<8x128xf32>
    %85 = arith.mulf %83, %84 : vector<8x128xf32>
    %86 = vector.shape_cast %85 : vector<8x128xf32> to vector<1x8x128xf32>
    %87 = vector.shape_cast %54 : vector<8x32xf32> to vector<1x8x32xf32>
    %c0_55 = arith.constant 0 : index
    %c0_56 = arith.constant 0 : index
    %88 = vector.load %arg5[%c0_55, %c0_56] : memref<128x32xf32, #tpu.memory_space<vmem>>, vector<128x32xf32>
    %89 = arith.truncf %87 : vector<1x8x32xf32> to vector<1x8x32xbf16>
    %90 = arith.truncf %82 : vector<1x8x128xf32> to vector<1x8x128xbf16>
    "tpu.trace_start"() <{level = 10 : i32, message = "bnr,bnd->brd"}> : () -> ()
    %cst_57 = arith.constant dense<0.000000e+00> : vector<1x128x32xf32>
    %91 = tpu.matmul %90, %89, %cst_57 {dimension_numbers = #tpu.dot_dimension_numbers<[1], [1], [2], [2], [0, 0, 0, 2, 1, 2], [0], [0]>} : vector<1x8x128xbf16>, vector<1x8x32xbf16>, vector<1x128x32xf32> -> vector<1x128x32xf32>
    "tpu.trace_stop"() : () -> ()
    %92 = vector.shape_cast %88 : vector<128x32xf32> to vector<1x128x32xf32>
    %93 = arith.mulf %91, %92 : vector<1x128x32xf32>
    %94 = arith.truncf %86 : vector<1x8x128xf32> to vector<1x8x128xbf16>
    "tpu.trace_start"() <{level = 10 : i32, message = "bnr,bnd->brd"}> : () -> ()
    %cst_58 = arith.constant dense<0.000000e+00> : vector<1x128x32xf32>
    %95 = tpu.matmul %94, %89, %cst_58 {dimension_numbers = #tpu.dot_dimension_numbers<[1], [1], [2], [2], [0, 0, 0, 2, 1, 2], [0], [0]>} : vector<1x8x128xbf16>, vector<1x8x32xbf16>, vector<1x128x32xf32> -> vector<1x128x32xf32>
    "tpu.trace_stop"() : () -> ()
    %96 = vector.shape_cast %88 : vector<128x32xf32> to vector<1x128x32xf32>
    %97 = arith.mulf %95, %96 : vector<1x128x32xf32>
    %98 = arith.truncf %74 : vector<1x8x128xf32> to vector<1x8x128xbf16>
    %99 = arith.truncf %93 : vector<1x128x32xf32> to vector<1x128x32xbf16>
    "tpu.trace_start"() <{level = 10 : i32, message = "bnr,brd->bnd"}> : () -> ()
    %cst_59 = arith.constant dense<0.000000e+00> : vector<1x8x32xf32>
    %100 = tpu.matmul %98, %99, %cst_59 {dimension_numbers = #tpu.dot_dimension_numbers<[2], [1], [1], [2], [0, 0, 0, 1, 1, 2], [0], [0]>} : vector<1x8x128xbf16>, vector<1x128x32xbf16>, vector<1x8x32xf32> -> vector<1x8x32xf32>
    "tpu.trace_stop"() : () -> ()
    %101 = arith.truncf %78 : vector<1x8x128xf32> to vector<1x8x128xbf16>
    %102 = arith.truncf %97 : vector<1x128x32xf32> to vector<1x128x32xbf16>
    "tpu.trace_start"() <{level = 10 : i32, message = "bnr,brd->bnd"}> : () -> ()
    %cst_60 = arith.constant dense<0.000000e+00> : vector<1x8x32xf32>
    %103 = tpu.matmul %101, %102, %cst_60 {dimension_numbers = #tpu.dot_dimension_numbers<[2], [1], [1], [2], [0, 0, 0, 1, 1, 2], [0], [0]>} : vector<1x8x128xbf16>, vector<1x128x32xbf16>, vector<1x8x32xf32> -> vector<1x8x32xf32>
    "tpu.trace_stop"() : () -> ()
    %104 = arith.addf %100, %103 : vector<1x8x32xf32>
    %cst_61 = arith.constant dense<0.000000e+00> : vector<1x128xf32>
    %105 = vector.multi_reduction <add>, %82, %cst_61 [1] : vector<1x8x128xf32> to vector<1x128xf32>
    %106 = vector.shape_cast %105 : vector<1x128xf32> to vector<1x1x128xf32>
    %107 = vector.broadcast %106 : vector<1x1x128xf32> to vector<1x8x128xf32>
    %108 = arith.mulf %74, %107 : vector<1x8x128xf32>
    %cst_62 = arith.constant dense<0.000000e+00> : vector<1x128xf32>
    %109 = vector.multi_reduction <add>, %86, %cst_62 [1] : vector<1x8x128xf32> to vector<1x128xf32>
    %110 = vector.shape_cast %109 : vector<1x128xf32> to vector<1x1x128xf32>
    %111 = vector.broadcast %110 : vector<1x1x128xf32> to vector<1x8x128xf32>
    %112 = arith.mulf %78, %111 : vector<1x8x128xf32>
    %113 = arith.addf %108, %112 : vector<1x8x128xf32>
    %114 = vector.shape_cast %113 : vector<1x8x128xf32> to vector<8x128xf32>
    %cst_63 = arith.constant dense<0.000000e+00> : vector<8x32xf32>
    %115 = tpu.matmul %114, %88, %cst_63 {dimension_numbers = #tpu.dot_dimension_numbers<[1], [0], [0], [1], [0, 0, 1, 1], [], []>} : vector<8x128xf32>, vector<128x32xf32>, vector<8x32xf32> -> vector<8x32xf32>
    %116 = vector.shape_cast %104 : vector<1x8x32xf32> to vector<8x32xf32>
    %cst_64 = arith.constant 9.99999997E-7 : f32
    %117 = vector.broadcast %cst_64 : f32 to vector<8x32xf32>
    %118 = arith.addf %115, %117 : vector<8x32xf32>
    %119 = tpu.reciprocal %118 {approx = true} : vector<8x32xf32> -> vector<8x32xf32>
    %120 = arith.mulf %116, %119 : vector<8x32xf32>
    %121 = arith.truncf %120 : vector<8x32xf32> to vector<8x32xbf16>
    %c0_65 = arith.constant 0 : index
    %c0_66 = arith.constant 0 : index
    %c0_67 = arith.constant 0 : index
    %122 = vector.load %arg16[%c0_65, %c0_66, %c0_67] : memref<1x32x32xbf16, #tpu.memory_space<vmem>>, vector<1x32x32xbf16>
    %123 = vector.shape_cast %122 : vector<1x32x32xbf16> to vector<32x32xbf16>
    %cst_68 = arith.constant dense<0.000000e+00> : vector<8x32xf32>
    %124 = tpu.matmul %121, %123, %cst_68 {dimension_numbers = #tpu.dot_dimension_numbers<[1], [0], [0], [1], [0, 0, 1, 1], [], []>} : vector<8x32xbf16>, vector<32x32xbf16>, vector<8x32xf32> -> vector<8x32xf32>
    %c0_69 = arith.constant 0 : index
    %c0_70 = arith.constant 0 : index
    %c0_71 = arith.constant 0 : index
    %125 = vector.load %arg17[%c0_69, %c0_70, %c0_71] : memref<1x1x32xf32, #tpu.memory_space<vmem>>, vector<1x1x32xf32>
    %126 = vector.shape_cast %125 : vector<1x1x32xf32> to vector<1x32xf32>
    %127 = vector.broadcast %126 : vector<1x32xf32> to vector<8x32xf32>
    %128 = arith.addf %124, %127 : vector<8x32xf32>
    %c0_72 = arith.constant 0 : index
    %c0_73 = arith.constant 0 : index
    %129 = vector.load %arg4[%c0_72, %c0_73] : memref<32x32xf32, #tpu.memory_space<vmem>>, vector<32x32xf32>
    %cst_74 = arith.constant dense<0.000000e+00> : vector<8x32xf32>
    %130 = tpu.matmul %128, %129, %cst_74 {dimension_numbers = #tpu.dot_dimension_numbers<[1], [0], [0], [1], [0, 0, 1, 1], [], []>} : vector<8x32xf32>, vector<32x32xf32>, vector<8x32xf32> -> vector<8x32xf32>
    %131 = arith.addf %4, %130 : vector<8x32xf32>
    %c0_75 = arith.constant 0 : index
    %c0_76 = arith.constant 0 : index
    %c0_77 = arith.constant 0 : index
    %132 = vector.load %arg18[%c0_75, %c0_76, %c0_77] : memref<1x1x32xf32, #tpu.memory_space<vmem>>, vector<1x1x32xf32>
    %133 = vector.shape_cast %132 : vector<1x1x32xf32> to vector<1x32xf32>
    %c0_78 = arith.constant 0 : index
    %c0_79 = arith.constant 0 : index
    %c0_80 = arith.constant 0 : index
    %134 = vector.load %arg19[%c0_78, %c0_79, %c0_80] : memref<1x1x32xf32, #tpu.memory_space<vmem>>, vector<1x1x32xf32>
    %135 = vector.shape_cast %134 : vector<1x1x32xf32> to vector<1x32xf32>
    %cst_81 = arith.constant dense<0.000000e+00> : vector<8xf32>
    %136 = vector.multi_reduction <add>, %131, %cst_81 [1] : vector<8x32xf32> to vector<8xf32>
    %137 = vector.shape_cast %136 : vector<8xf32> to vector<8x1xf32>
    %cst_82 = arith.constant 3.200000e+01 : f32
    %138 = vector.broadcast %cst_82 : f32 to vector<8x1xf32>
    %139 = arith.divf %137, %138 : vector<8x1xf32>
    %140 = vector.broadcast %139 : vector<8x1xf32> to vector<8x32xf32>
    %141 = arith.subf %131, %140 : vector<8x32xf32>
    %142 = arith.mulf %141, %141 : vector<8x32xf32>
    %cst_83 = arith.constant dense<0.000000e+00> : vector<8xf32>
    %143 = vector.multi_reduction <add>, %142, %cst_83 [1] : vector<8x32xf32> to vector<8xf32>
    %144 = vector.shape_cast %143 : vector<8xf32> to vector<8x1xf32>
    %cst_84 = arith.constant 3.200000e+01 : f32
    %145 = vector.broadcast %cst_84 : f32 to vector<8x1xf32>
    %146 = arith.divf %144, %145 : vector<8x1xf32>
    %147 = vector.broadcast %139 : vector<8x1xf32> to vector<8x32xf32>
    %148 = arith.subf %131, %147 : vector<8x32xf32>
    %cst_85 = arith.constant 9.99999974E-6 : f32
    %149 = vector.broadcast %cst_85 : f32 to vector<8x1xf32>
    %150 = arith.addf %146, %149 : vector<8x1xf32>
    %151 = math.rsqrt %150 : vector<8x1xf32>
    %152 = vector.broadcast %151 : vector<8x1xf32> to vector<8x32xf32>
    %153 = arith.mulf %148, %152 : vector<8x32xf32>
    %154 = vector.broadcast %133 : vector<1x32xf32> to vector<8x32xf32>
    %155 = arith.mulf %153, %154 : vector<8x32xf32>
    %156 = vector.broadcast %135 : vector<1x32xf32> to vector<8x32xf32>
    %157 = arith.addf %155, %156 : vector<8x32xf32>
    %158 = arith.truncf %157 : vector<8x32xf32> to vector<8x32xbf16>
    %c0_86 = arith.constant 0 : index
    %c0_87 = arith.constant 0 : index
    %c0_88 = arith.constant 0 : index
    %159 = vector.load %arg20[%c0_86, %c0_87, %c0_88] : memref<1x32x128xbf16, #tpu.memory_space<vmem>>, vector<1x32x128xbf16>
    %160 = vector.shape_cast %159 : vector<1x32x128xbf16> to vector<32x128xbf16>
    %cst_89 = arith.constant dense<0.000000e+00> : vector<8x128xf32>
    %161 = tpu.matmul %158, %160, %cst_89 {dimension_numbers = #tpu.dot_dimension_numbers<[1], [0], [0], [1], [0, 0, 1, 1], [], []>} : vector<8x32xbf16>, vector<32x128xbf16>, vector<8x128xf32> -> vector<8x128xf32>
    %c0_90 = arith.constant 0 : index
    %c0_91 = arith.constant 0 : index
    %c0_92 = arith.constant 0 : index
    %162 = vector.load %arg21[%c0_90, %c0_91, %c0_92] : memref<1x1x128xf32, #tpu.memory_space<vmem>>, vector<1x1x128xf32>
    %163 = vector.shape_cast %162 : vector<1x1x128xf32> to vector<1x128xf32>
    %164 = vector.broadcast %163 : vector<1x128xf32> to vector<8x128xf32>
    %165 = arith.addf %161, %164 : vector<8x128xf32>
    %cst_93 = arith.constant 0.000000e+00 : f32
    %166 = vector.broadcast %cst_93 : f32 to vector<8x128xf32>
    %167 = arith.maximumf %165, %166 : vector<8x128xf32>
    %168 = arith.truncf %167 : vector<8x128xf32> to vector<8x128xbf16>
    %c0_94 = arith.constant 0 : index
    %c0_95 = arith.constant 0 : index
    %c0_96 = arith.constant 0 : index
    %169 = vector.load %arg22[%c0_94, %c0_95, %c0_96] : memref<1x128x32xbf16, #tpu.memory_space<vmem>>, vector<1x128x32xbf16>
    %170 = vector.shape_cast %169 : vector<1x128x32xbf16> to vector<128x32xbf16>
    %cst_97 = arith.constant dense<0.000000e+00> : vector<8x32xf32>
    %171 = tpu.matmul %168, %170, %cst_97 {dimension_numbers = #tpu.dot_dimension_numbers<[1], [0], [0], [1], [0, 0, 1, 1], [], []>} : vector<8x128xbf16>, vector<128x32xbf16>, vector<8x32xf32> -> vector<8x32xf32>
    %172 = arith.addf %131, %171 : vector<8x32xf32>
    %c0_98 = arith.constant 0 : index
    %c0_99 = arith.constant 0 : index
    %c0_100 = arith.constant 0 : index
    %173 = vector.load %arg23[%c0_98, %c0_99, %c0_100] : memref<1x1x32xf32, #tpu.memory_space<vmem>>, vector<1x1x32xf32>
    %174 = vector.shape_cast %173 : vector<1x1x32xf32> to vector<1x32xf32>
    %175 = vector.broadcast %174 : vector<1x32xf32> to vector<8x32xf32>
    %176 = arith.addf %172, %175 : vector<8x32xf32>
    %c1_i32 = arith.constant 1 : i32
    %177 = arith.cmpi ne, %arg1, %c1_i32 : i32
    %178 = arith.extui %177 : i1 to i32
    %c0_i32_101 = arith.constant 0 : i32
    %179 = arith.cmpi ne, %178, %c0_i32_101 : i32
    scf.if %179 {
      %183 = vector.shape_cast %176 : vector<8x32xf32> to vector<1x8x32xf32>
      %c0_104 = arith.constant 0 : index
      %c0_105 = arith.constant 0 : index
      %c0_106 = arith.constant 0 : index
      %184 = vector.load %arg26[%c0_104, %c0_105, %c0_106] : memref<1x8x32xf32, #tpu.memory_space<vmem>>, vector<1x8x32xf32>
      tpu.vector_store %arg26[%c0_104, %c0_105, %c0_106], %183 {strides = array<i32>} : memref<1x8x32xf32, #tpu.memory_space<vmem>>, vector<1x8x32xf32>,
    } else {
    }
    %c1_i32_102 = arith.constant 1 : i32
    %180 = arith.cmpi eq, %arg1, %c1_i32_102 : i32
    %181 = arith.extui %180 : i1 to i32
    %c0_i32_103 = arith.constant 0 : i32
    %182 = arith.cmpi ne, %181, %c0_i32_103 : i32
    scf.if %182 {
      %c0_104 = arith.constant 0 : index
      %c0_105 = arith.constant 0 : index
      %183 = vector.load %arg24[%c0_104, %c0_105] : memref<32x32xf32, #tpu.memory_space<vmem>>, vector<32x32xf32>
      %cst_106 = arith.constant dense<0.000000e+00> : vector<8x32xf32>
      %184 = tpu.matmul %176, %183, %cst_106 {dimension_numbers = #tpu.dot_dimension_numbers<[1], [0], [0], [1], [0, 0, 1, 1], [], []>} : vector<8x32xf32>, vector<32x32xf32>, vector<8x32xf32> -> vector<8x32xf32>
      %c0_107 = arith.constant 0 : index
      %c0_108 = arith.constant 0 : index
      %185 = vector.load %arg25[%c0_107, %c0_108] : memref<1x32xf32, #tpu.memory_space<vmem>>, vector<1x32xf32>
      %186 = vector.broadcast %185 : vector<1x32xf32> to vector<8x32xf32>
      %187 = arith.addf %184, %186 : vector<8x32xf32>
      %188 = vector.shape_cast %187 : vector<8x32xf32> to vector<1x8x32xf32>
      %c0_109 = arith.constant 0 : index
      %c0_110 = arith.constant 0 : index
      %c0_111 = arith.constant 0 : index
      %189 = vector.load %arg26[%c0_109, %c0_110, %c0_111] : memref<1x8x32xf32, #tpu.memory_space<vmem>>, vector<1x8x32xf32>
      tpu.vector_store %arg26[%c0_109, %c0_110, %c0_111], %188 {strides = array<i32>} : memref<1x8x32xf32, #tpu.memory_space<vmem>>, vector<1x8x32xf32>,
    } else {
    }
    return
  }
  func.func @transform_0(%arg0: i32, %arg1: i32) -> (i32, i32, i32) {
    %c0_i32 = arith.constant 0 : i32
    %c0_i32_0 = arith.constant 0 : i32
    %c0_i32_1 = arith.constant 0 : i32
    return %arg0, %c0_i32, %c0_i32_0 : i32, i32, i32
  }
  func.func @transform_1(%arg0: i32, %arg1: i32) -> (i32, i32) {
    %c0_i32 = arith.constant 0 : i32
    %c0_i32_0 = arith.constant 0 : i32
    %c0_i32_1 = arith.constant 0 : i32
    return %c0_i32, %c0_i32_0 : i32, i32
  }
  func.func @transform_2(%arg0: i32, %arg1: i32) -> (i32, i32) {
    %c0_i32 = arith.constant 0 : i32
    %c0_i32_0 = arith.constant 0 : i32
    %c0_i32_1 = arith.constant 0 : i32
    return %c0_i32, %c0_i32_0 : i32, i32
  }
  func.func @transform_3(%arg0: i32, %arg1: i32) -> (i32, i32) {
    %c0_i32 = arith.constant 0 : i32
    %c0_i32_0 = arith.constant 0 : i32
    %c0_i32_1 = arith.constant 0 : i32
    return %c0_i32, %c0_i32_0 : i32, i32
  }
  func.func @transform_4(%arg0: i32, %arg1: i32) -> (i32, i32, i32) {
    %c0_i32 = arith.constant 0 : i32
    %c0_i32_0 = arith.constant 0 : i32
    %c0_i32_1 = arith.constant 0 : i32
    return %arg1, %c0_i32, %c0_i32_0 : i32, i32, i32
  }
  func.func @transform_5(%arg0: i32, %arg1: i32) -> (i32, i32, i32) {
    %c0_i32 = arith.constant 0 : i32
    %c0_i32_0 = arith.constant 0 : i32
    %c0_i32_1 = arith.constant 0 : i32
    return %arg1, %c0_i32, %c0_i32_0 : i32, i32, i32
  }
  func.func @transform_6(%arg0: i32, %arg1: i32) -> (i32, i32, i32) {
    %c0_i32 = arith.constant 0 : i32
    %c0_i32_0 = arith.constant 0 : i32
    %c0_i32_1 = arith.constant 0 : i32
    return %arg1, %c0_i32, %c0_i32_0 : i32, i32, i32
  }
  func.func @transform_7(%arg0: i32, %arg1: i32) -> (i32, i32, i32) {
    %c0_i32 = arith.constant 0 : i32
    %c0_i32_0 = arith.constant 0 : i32
    %c0_i32_1 = arith.constant 0 : i32
    return %arg1, %c0_i32, %c0_i32_0 : i32, i32, i32
  }
  func.func @transform_8(%arg0: i32, %arg1: i32) -> (i32, i32, i32) {
    %c0_i32 = arith.constant 0 : i32
    %c0_i32_0 = arith.constant 0 : i32
    %c0_i32_1 = arith.constant 0 : i32
    return %arg1, %c0_i32, %c0_i32_0 : i32, i32, i32
  }
  func.func @transform_9(%arg0: i32, %arg1: i32) -> (i32, i32, i32) {
    %c0_i32 = arith.constant 0 : i32
    %c0_i32_0 = arith.constant 0 : i32
    %c0_i32_1 = arith.constant 0 : i32
    return %arg1, %c0_i32, %c0_i32_0 : i32, i32, i32
  }
  func.func @transform_10(%arg0: i32, %arg1: i32) -> (i32, i32, i32) {
    %c0_i32 = arith.constant 0 : i32
    %c0_i32_0 = arith.constant 0 : i32
    %c0_i32_1 = arith.constant 0 : i32
    return %arg1, %c0_i32, %c0_i32_0 : i32, i32, i32
  }
  func.func @transform_11(%arg0: i32, %arg1: i32) -> (i32, i32, i32) {
    %c0_i32 = arith.constant 0 : i32
    %c0_i32_0 = arith.constant 0 : i32
    %c0_i32_1 = arith.constant 0 : i32
    return %arg1, %c0_i32, %c0_i32_0 : i32, i32, i32
  }
  func.func @transform_12(%arg0: i32, %arg1: i32) -> (i32, i32, i32) {
    %c0_i32 = arith.constant 0 : i32
    %c0_i32_0 = arith.constant 0 : i32
    %c0_i32_1 = arith.constant 0 : i32
    return %arg1, %c0_i32, %c0_i32_0 : i32, i32, i32
  }
  func.func @transform_13(%arg0: i32, %arg1: i32) -> (i32, i32, i32) {
    %c0_i32 = arith.constant 0 : i32
    %c0_i32_0 = arith.constant 0 : i32
    %c0_i32_1 = arith.constant 0 : i32
    return %arg1, %c0_i32, %c0_i32_0 : i32, i32, i32
  }
  func.func @transform_14(%arg0: i32, %arg1: i32) -> (i32, i32, i32) {
    %c0_i32 = arith.constant 0 : i32
    %c0_i32_0 = arith.constant 0 : i32
    %c0_i32_1 = arith.constant 0 : i32
    return %arg1, %c0_i32, %c0_i32_0 : i32, i32, i32
  }
  func.func @transform_15(%arg0: i32, %arg1: i32) -> (i32, i32, i32) {
    %c0_i32 = arith.constant 0 : i32
    %c0_i32_0 = arith.constant 0 : i32
    %c0_i32_1 = arith.constant 0 : i32
    return %arg1, %c0_i32, %c0_i32_0 : i32, i32, i32
  }
  func.func @transform_16(%arg0: i32, %arg1: i32) -> (i32, i32, i32) {
    %c0_i32 = arith.constant 0 : i32
    %c0_i32_0 = arith.constant 0 : i32
    %c0_i32_1 = arith.constant 0 : i32
    return %arg1, %c0_i32, %c0_i32_0 : i32, i32, i32
  }
  func.func @transform_17(%arg0: i32, %arg1: i32) -> (i32, i32, i32) {
    %c0_i32 = arith.constant 0 : i32
    %c0_i32_0 = arith.constant 0 : i32
    %c0_i32_1 = arith.constant 0 : i32
    return %arg1, %c0_i32, %c0_i32_0 : i32, i32, i32
  }
  func.func @transform_18(%arg0: i32, %arg1: i32) -> (i32, i32, i32) {
    %c0_i32 = arith.constant 0 : i32
    %c0_i32_0 = arith.constant 0 : i32
    %c0_i32_1 = arith.constant 0 : i32
    return %arg1, %c0_i32, %c0_i32_0 : i32, i32, i32
  }
  func.func @transform_19(%arg0: i32, %arg1: i32) -> (i32, i32, i32) {
    %c0_i32 = arith.constant 0 : i32
    %c0_i32_0 = arith.constant 0 : i32
    %c0_i32_1 = arith.constant 0 : i32
    return %arg1, %c0_i32, %c0_i32_0 : i32, i32, i32
  }
  func.func @transform_20(%arg0: i32, %arg1: i32) -> (i32, i32, i32) {
    %c0_i32 = arith.constant 0 : i32
    %c0_i32_0 = arith.constant 0 : i32
    %c0_i32_1 = arith.constant 0 : i32
    return %arg1, %c0_i32, %c0_i32_0 : i32, i32, i32
  }
  func.func @transform_21(%arg0: i32, %arg1: i32) -> (i32, i32, i32) {
    %c0_i32 = arith.constant 0 : i32
    %c0_i32_0 = arith.constant 0 : i32
    %c0_i32_1 = arith.constant 0 : i32
    return %arg1, %c0_i32, %c0_i32_0 : i32, i32, i32
  }
  func.func @transform_22(%arg0: i32, %arg1: i32) -> (i32, i32) {
    %c0_i32 = arith.constant 0 : i32
    %c0_i32_0 = arith.constant 0 : i32
    %c0_i32_1 = arith.constant 0 : i32
    return %c0_i32, %c0_i32_0 : i32, i32
  }
  func.func @transform_23(%arg0: i32, %arg1: i32) -> (i32, i32) {
    %c0_i32 = arith.constant 0 : i32
    %c0_i32_0 = arith.constant 0 : i32
    %c0_i32_1 = arith.constant 0 : i32
    return %c0_i32, %c0_i32_0 : i32, i32
  }
  func.func @transform_24(%arg0: i32, %arg1: i32) -> (i32, i32, i32) {
    %c0_i32 = arith.constant 0 : i32
    %c0_i32_0 = arith.constant 0 : i32
    %c0_i32_1 = arith.constant 0 : i32
    return %arg0, %c0_i32, %c0_i32_0 : i32, i32, i32
  }
}

module attributes {stable_mosaic.version = 11 : i64} {
  func.func @_decoder_kernel(%arg0: i32, %arg1: memref<1x8x32xf32, #tpu.memory_space<vmem>>, %arg2: memref<1x4x32xf32, #tpu.memory_space<vmem>>, %arg3: memref<32x32xf32, #tpu.memory_space<vmem>>, %arg4: memref<32x32xf32, #tpu.memory_space<vmem>>, %arg5: memref<1x32xf32, #tpu.memory_space<vmem>>, %arg6: memref<1x32xf32, #tpu.memory_space<vmem>>, %arg7: memref<1x1xf32, #tpu.memory_space<vmem>>, %arg8: memref<1x8x4xf32, #tpu.memory_space<vmem>>) attributes {dimension_semantics = [#tpu.dimension_semantics<parallel>], iteration_bounds = array<i64: 2>, scalar_prefetch = 0 : i64, scratch_operands = 0 : i64, tpu.core_type = #tpu.core_type<tc>, window_params = [{transform_indices = @transform_0, window_bounds = array<i64: 1, 8, 32>}, {transform_indices = @transform_1, window_bounds = array<i64: 1, 4, 32>}, {pipeline_mode = #tpu.pipeline_mode<synchronous>, transform_indices = @transform_2, window_bounds = array<i64: 32, 32>}, {pipeline_mode = #tpu.pipeline_mode<synchronous>, transform_indices = @transform_3, window_bounds = array<i64: 32, 32>}, {pipeline_mode = #tpu.pipeline_mode<synchronous>, transform_indices = @transform_4, window_bounds = array<i64: 1, 32>}, {pipeline_mode = #tpu.pipeline_mode<synchronous>, transform_indices = @transform_5, window_bounds = array<i64: 1, 32>}, {pipeline_mode = #tpu.pipeline_mode<synchronous>, transform_indices = @transform_6, window_bounds = array<i64: 1, 1>}, {transform_indices = @transform_7, window_bounds = array<i64: 1, 8, 4>}]} {
    %c0 = arith.constant 0 : index
    %c0_0 = arith.constant 0 : index
    %c0_1 = arith.constant 0 : index
    %0 = vector.load %arg1[%c0, %c0_0, %c0_1] : memref<1x8x32xf32, #tpu.memory_space<vmem>>, vector<1x8x32xf32>
    %1 = vector.shape_cast %0 : vector<1x8x32xf32> to vector<8x32xf32>
    %c0_2 = arith.constant 0 : index
    %c0_3 = arith.constant 0 : index
    %2 = vector.load %arg3[%c0_2, %c0_3] : memref<32x32xf32, #tpu.memory_space<vmem>>, vector<32x32xf32>
    %cst = arith.constant dense<0.000000e+00> : vector<8x32xf32>
    %3 = tpu.matmul %1, %2, %cst {dimension_numbers = #tpu.dot_dimension_numbers<[1], [0], [0], [1], [0, 0, 1, 1], [], []>} : vector<8x32xf32>, vector<32x32xf32>, vector<8x32xf32> -> vector<8x32xf32>
    %4 = vector.shape_cast %3 : vector<8x32xf32> to vector<1x8x1x32xf32>
    %c0_4 = arith.constant 0 : index
    %c0_5 = arith.constant 0 : index
    %c0_6 = arith.constant 0 : index
    %5 = vector.load %arg2[%c0_4, %c0_5, %c0_6] : memref<1x4x32xf32, #tpu.memory_space<vmem>>, vector<1x4x32xf32>
    %6 = vector.shape_cast %5 : vector<1x4x32xf32> to vector<1x1x4x32xf32>
    %7 = vector.broadcast %4 : vector<1x8x1x32xf32> to vector<1x8x4x32xf32>
    %8 = vector.broadcast %6 : vector<1x1x4x32xf32> to vector<1x8x4x32xf32>
    %9 = arith.addf %7, %8 : vector<1x8x4x32xf32>
    %cst_7 = arith.constant 0.000000e+00 : f32
    %10 = vector.broadcast %cst_7 : f32 to vector<1x8x4x32xf32>
    %11 = arith.maximumf %9, %10 : vector<1x8x4x32xf32>
    %12 = vector.shape_cast %11 : vector<1x8x4x32xf32> to vector<32x32xf32>
    %c0_8 = arith.constant 0 : index
    %c0_9 = arith.constant 0 : index
    %13 = vector.load %arg4[%c0_8, %c0_9] : memref<32x32xf32, #tpu.memory_space<vmem>>, vector<32x32xf32>
    %cst_10 = arith.constant dense<0.000000e+00> : vector<32x32xf32>
    %14 = tpu.matmul %12, %13, %cst_10 {dimension_numbers = #tpu.dot_dimension_numbers<[1], [0], [0], [1], [0, 0, 1, 1], [], []>} : vector<32x32xf32>, vector<32x32xf32>, vector<32x32xf32> -> vector<32x32xf32>
    %c0_11 = arith.constant 0 : index
    %c0_12 = arith.constant 0 : index
    %15 = vector.load %arg5[%c0_11, %c0_12] : memref<1x32xf32, #tpu.memory_space<vmem>>, vector<1x32xf32>
    %16 = vector.broadcast %15 : vector<1x32xf32> to vector<32x32xf32>
    %17 = arith.addf %14, %16 : vector<32x32xf32>
    %cst_13 = arith.constant 0.000000e+00 : f32
    %18 = vector.broadcast %cst_13 : f32 to vector<32x32xf32>
    %19 = arith.maximumf %17, %18 : vector<32x32xf32>
    %20 = vector.shape_cast %19 : vector<32x32xf32> to vector<1x8x4x32xf32>
    %c0_14 = arith.constant 0 : index
    %c0_15 = arith.constant 0 : index
    %21 = vector.load %arg6[%c0_14, %c0_15] : memref<1x32xf32, #tpu.memory_space<vmem>>, vector<1x32xf32>
    %22 = vector.shape_cast %21 : vector<1x32xf32> to vector<1x1x1x32xf32>
    %23 = vector.broadcast %22 : vector<1x1x1x32xf32> to vector<1x8x4x32xf32>
    %24 = arith.mulf %20, %23 : vector<1x8x4x32xf32>
    %cst_16 = arith.constant dense<0.000000e+00> : vector<1x8x4xf32>
    %25 = vector.multi_reduction <add>, %24, %cst_16 [3] : vector<1x8x4x32xf32> to vector<1x8x4xf32>
    %c0_17 = arith.constant 0 : index
    %c0_18 = arith.constant 0 : index
    %26 = vector.load %arg7[%c0_17, %c0_18] : memref<1x1xf32, #tpu.memory_space<vmem>>, vector<1x1xf32>
    %27 = vector.shape_cast %26 : vector<1x1xf32> to vector<1x1x1xf32>
    %28 = vector.broadcast %27 : vector<1x1x1xf32> to vector<1x8x4xf32>
    %29 = arith.addf %25, %28 : vector<1x8x4xf32>
    %c0_19 = arith.constant 0 : index
    %c0_20 = arith.constant 0 : index
    %c0_21 = arith.constant 0 : index
    %30 = vector.load %arg8[%c0_19, %c0_20, %c0_21] : memref<1x8x4xf32, #tpu.memory_space<vmem>>, vector<1x8x4xf32>
    tpu.vector_store %arg8[%c0_19, %c0_20, %c0_21], %29 {strides = array<i32>} : memref<1x8x4xf32, #tpu.memory_space<vmem>>, vector<1x8x4xf32>,
    return
  }
  func.func @transform_0(%arg0: i32) -> (i32, i32, i32) {
    %c0_i32 = arith.constant 0 : i32
    %c0_i32_0 = arith.constant 0 : i32
    %c0_i32_1 = arith.constant 0 : i32
    return %arg0, %c0_i32, %c0_i32_0 : i32, i32, i32
  }
  func.func @transform_1(%arg0: i32) -> (i32, i32, i32) {
    %c0_i32 = arith.constant 0 : i32
    %c0_i32_0 = arith.constant 0 : i32
    %c0_i32_1 = arith.constant 0 : i32
    return %arg0, %c0_i32, %c0_i32_0 : i32, i32, i32
  }
  func.func @transform_2(%arg0: i32) -> (i32, i32) {
    %c0_i32 = arith.constant 0 : i32
    %c0_i32_0 = arith.constant 0 : i32
    %c0_i32_1 = arith.constant 0 : i32
    return %c0_i32, %c0_i32_0 : i32, i32
  }
  func.func @transform_3(%arg0: i32) -> (i32, i32) {
    %c0_i32 = arith.constant 0 : i32
    %c0_i32_0 = arith.constant 0 : i32
    %c0_i32_1 = arith.constant 0 : i32
    return %c0_i32, %c0_i32_0 : i32, i32
  }
  func.func @transform_4(%arg0: i32) -> (i32, i32) {
    %c0_i32 = arith.constant 0 : i32
    %c0_i32_0 = arith.constant 0 : i32
    %c0_i32_1 = arith.constant 0 : i32
    return %c0_i32, %c0_i32_0 : i32, i32
  }
  func.func @transform_5(%arg0: i32) -> (i32, i32) {
    %c0_i32 = arith.constant 0 : i32
    %c0_i32_0 = arith.constant 0 : i32
    %c0_i32_1 = arith.constant 0 : i32
    return %c0_i32, %c0_i32_0 : i32, i32
  }
  func.func @transform_6(%arg0: i32) -> (i32, i32) {
    %c0_i32 = arith.constant 0 : i32
    %c0_i32_0 = arith.constant 0 : i32
    %c0_i32_1 = arith.constant 0 : i32
    return %c0_i32, %c0_i32_0 : i32, i32
  }
  func.func @transform_7(%arg0: i32) -> (i32, i32, i32) {
    %c0_i32 = arith.constant 0 : i32
    %c0_i32_0 = arith.constant 0 : i32
    %c0_i32_1 = arith.constant 0 : i32
    return %arg0, %c0_i32, %c0_i32_0 : i32, i32, i32
  }
}

</mosaic_0001>

<llo_original>
// kernel: kfnet_forward.3
$region0: #{kfnet_forward.3}
  #allocation0 [shape = 'u32[]', space=smem, size = 0x4, offset = 0x4, fixed_abs, tag = 'smem constant byte address 0x4 - core index']
  #allocation1 [shape = 'u32[144,128]{1,0:T(1,128)}', space=vmem, size = 0x12000, scoped, tag = 'internal scratch']
  %s0 = inlined_call_operand.vmem [shape: f32[21], index: 0, kind: input, shape index: {}]
  %s1 = inlined_call_operand.vmem [shape: f32[2,8,16], index: 1, kind: input, shape index: {}]
  %s2 = inlined_call_operand.vmem [shape: f32[2,8,16], index: 2, kind: input, shape index: {}]
  %s3 = inlined_call_operand.vmem [shape: f32[2,1,16], index: 3, kind: input, shape index: {}]
  %s4 = inlined_call_operand.vmem [shape: f32[2,4,16], index: 4, kind: input, shape index: {}]
  %s5 = inlined_call_operand.vmem [shape: f32[5,32], index: 5, kind: input, shape index: {}]
  %s6 = inlined_call_operand.vmem [shape: f32[8,32], index: 6, kind: input, shape index: {}]
  %s7 = inlined_call_operand.vmem [shape: f32[1,32], index: 7, kind: input, shape index: {}]
  %s8 = inlined_call_operand.vmem [shape: f32[2,8,32], index: 8, kind: output, shape index: {}]
  %s9 = sld [smem:[#allocation0]]
  $region69: #{kfnet_forward.3} parent=0
    _
  %s11 = ssub.s32 1, %s9
  %s12 = scalar_select 0, %s11, %s9
  $region1: #{kfnet_forward.3} parent=0
    #allocation2 [shape = 'u8[512]{0}', space=smem, size = 0x200, scoped, tag = 'input window, operand 0, single buffered']
    #allocation3 [shape = 's32[2]{0}', space=sflag, size = 0x8, scoped, tag = 'scoped memory for kfnet_forward.3']
    %13 = vsyncpa [#allocation3], 0
    loop: start=0, step=1, limit=4
    $region2: #{kfnet_forward.3} parent=1 // loop_pre_header
      _
    $region3: #{kfnet_forward.3} parent=1 // loop_header
      %s15 = sphi 0, %s19
      %p16 = scmp.ge.s32.totalorder %s15, 4
      %s23 = sphi 0, %s23
      %s25 = sphi 0, %s23
      %s26 = sphi 0, %s25
      %s40 = sphi 0, %s26
      %s46 = sphi 0, %s48
      %s49 = sphi 0, %s46
      %s50 = sphi 0, %s49
      %s66 = sphi 0, %s50
      %s72 = sphi 0, %s74
      %s75 = sphi 0, %s72
      %s76 = sphi 0, %s75
      %s92 = sphi 0, %s76
      %s98 = sphi 0, %s100
      %s101 = sphi 0, %s98
      %s102 = sphi 0, %s101
      %s118 = sphi 0, %s102
      %s124 = sphi 0, %s126
      %s127 = sphi 0, %s124
      %s128 = sphi 0, %s127
      %s144 = sphi 0, %s128
      %s148 = sphi 0, %s148
      %s150 = sphi 0, %s148
      %s151 = sphi 0, %s150
      %s165 = sphi 0, %s151
      %s169 = sphi 0, %s169
      %s171 = sphi 0, %s169
      %s172 = sphi 0, %s171
      %s186 = sphi 0, %s172
      %s190 = sphi 0, %s190
      %s192 = sphi 0, %s190
      %s193 = sphi 0, %s192
      %s207 = sphi 0, %s193
      %s213 = sphi 0, %s215
      %s216 = sphi 0, %s213
      %s217 = sphi 0, %s216
      %s233 = sphi 0, %s217
    $region4: #{kfnet_forward.3} parent=1 // loop_header_branch
      %18 = sbr.rel (%p16) target = $region8
    $region5: #{kfnet_forward.3} parent=1 // loop_body
      %s20 = ssub.s32 %s15, 1
      %s21 = ssub.s32 %s15, 2
      %s22 = sadd.s32 %s15, 1
      %s24 = sadd.s32 %s23, 1
      %p27 = scmp.eq.s32.totalorder %s15, 1
      %p28 = scmp.ne.s32.totalorder %s23, %s25
      %p29 = scmp.eq.s32.totalorder %s15, 0
      %p30 = por %p28, %p29
      %p31 = scmp.ne.s32.totalorder %s23, %s25
      %p32 = scmp.eq.s32.totalorder %s20, 1
      %p33 = por %p31, %p32
      %p34 = scmp.ne.s32.totalorder %s25, %s26
      %p35 = scmp.eq.s32.totalorder %s20, 0
      %p36 = por %p34, %p35
      %p37 = scmp.ne.s32.totalorder %s25, %s26
      %p38 = scmp.eq.s32.totalorder %s21, 1
      %p39 = por %p37, %p38
      %p41 = scmp.ne.s32.totalorder %s26, %s40
      %p42 = scmp.eq.s32.totalorder %s21, 0
      %p43 = por %p41, %p42
      %s44 = ssub.s32 %s15, %s22
      %p45 = scmp.eq.s32.totalorder %s44, 0
      %s47 = sadd.s32 %s46, 1
      %s48 = scalar_select %p45, %s46, %s47
      %p51 = pneg %p45
      %p52 = scmp.eq.s32.totalorder %s15, 1
      %p53 = por %p51, %p52
      %p54 = scmp.ne.s32.totalorder %s46, %s49
      %p55 = scmp.eq.s32.totalorder %s15, 0
      %p56 = por %p54, %p55
      %p57 = scmp.ne.s32.totalorder %s46, %s49
      %p58 = scmp.eq.s32.totalorder %s20, 1
      %p59 = por %p57, %p58
      %p60 = scmp.ne.s32.totalorder %s49, %s50
      %p61 = scmp.eq.s32.totalorder %s20, 0
      %p62 = por %p60, %p61
      %p63 = scmp.ne.s32.totalorder %s49, %s50
      %p64 = scmp.eq.s32.totalorder %s21, 1
      %p65 = por %p63, %p64
      %p67 = scmp.ne.s32.totalorder %s50, %s66
      %p68 = scmp.eq.s32.totalorder %s21, 0
      %p69 = por %p67, %p68
      %s70 = ssub.s32 %s15, %s22
      %p71 = scmp.eq.s32.totalorder %s70, 0
      %s73 = sadd.s32 %s72, 1
      %s74 = scalar_select %p71, %s72, %s73
      %p77 = pneg %p71
      %p78 = scmp.eq.s32.totalorder %s15, 1
      %p79 = por %p77, %p78
      %p80 = scmp.ne.s32.totalorder %s72, %s75
      %p81 = scmp.eq.s32.totalorder %s15, 0
      %p82 = por %p80, %p81
      %p83 = scmp.ne.s32.totalorder %s72, %s75
      %p84 = scmp.eq.s32.totalorder %s20, 1
      %p85 = por %p83, %p84
      %p86 = scmp.ne.s32.totalorder %s75, %s76
      %p87 = scmp.eq.s32.totalorder %s20, 0
      %p88 = por %p86, %p87
      %p89 = scmp.ne.s32.totalorder %s75, %s76
      %p90 = scmp.eq.s32.totalorder %s21, 1
      %p91 = por %p89, %p90
      %p93 = scmp.ne.s32.totalorder %s76, %s92
      %p94 = scmp.eq.s32.totalorder %s21, 0
      %p95 = por %p93, %p94
      %s96 = ssub.s32 %s15, %s22
      %p97 = scmp.eq.s32.totalorder %s96, 0
      %s99 = sadd.s32 %s98, 1
      %s100 = scalar_select %p97, %s98, %s99
      %p103 = pneg %p97
      %p104 = scmp.eq.s32.totalorder %s15, 1
      %p105 = por %p103, %p104
      %p106 = scmp.ne.s32.totalorder %s98, %s101
      %p107 = scmp.eq.s32.totalorder %s15, 0
      %p108 = por %p106, %p107
      %p109 = scmp.ne.s32.totalorder %s98, %s101
      %p110 = scmp.eq.s32.totalorder %s20, 1
      %p111 = por %p109, %p110
      %p112 = scmp.ne.s32.totalorder %s101, %s102
      %p113 = scmp.eq.s32.totalorder %s20, 0
      %p114 = por %p112, %p113
      %p115 = scmp.ne.s32.totalorder %s101, %s102
      %p116 = scmp.eq.s32.totalorder %s21, 1
      %p117 = por %p115, %p116
      %p119 = scmp.ne.s32.totalorder %s102, %s118
      %p120 = scmp.eq.s32.totalorder %s21, 0
      %p121 = por %p119, %p120
      %s122 = ssub.s32 %s15, %s22
      %p123 = scmp.eq.s32.totalorder %s122, 0
      %s125 = sadd.s32 %s124, 1
      %s126 = scalar_select %p123, %s124, %s125
      %p129 = pneg %p123
      %p130 = scmp.eq.s32.totalorder %s15, 1
      %p131 = por %p129, %p130
      %p132 = scmp.ne.s32.totalorder %s124, %s127
      %p133 = scmp.eq.s32.totalorder %s15, 0
      %p134 = por %p132, %p133
      %p135 = scmp.ne.s32.totalorder %s124, %s127
      %p136 = scmp.eq.s32.totalorder %s20, 1
      %p137 = por %p135, %p136
      %p138 = scmp.ne.s32.totalorder %s127, %s128
      %p139 = scmp.eq.s32.totalorder %s20, 0
      %p140 = por %p138, %p139
      %p141 = scmp.ne.s32.totalorder %s127, %s128
      %p142 = scmp.eq.s32.totalorder %s21, 1
      %p143 = por %p141, %p142
      %p145 = scmp.ne.s32.totalorder %s128, %s144
      %p146 = scmp.eq.s32.totalorder %s21, 0
      %p147 = por %p145, %p146
      %s149 = sadd.s32 %s148, 1
      %p152 = scmp.eq.s32.totalorder %s15, 1
      %p153 = scmp.ne.s32.totalorder %s148, %s150
      %p154 = scmp.eq.s32.totalorder %s15, 0
      %p155 = por %p153, %p154
      %p156 = scmp.ne.s32.totalorder %s148, %s150
      %p157 = scmp.eq.s32.totalorder %s20, 1
      %p158 = por %p156, %p157
      %p159 = scmp.ne.s32.totalorder %s150, %s151
      %p160 = scmp.eq.s32.totalorder %s20, 0
      %p161 = por %p159, %p160
      %p162 = scmp.ne.s32.totalorder %s150, %s151
      %p163 = scmp.eq.s32.totalorder %s21, 1
      %p164 = por %p162, %p163
      %p166 = scmp.ne.s32.totalorder %s151, %s165
      %p167 = scmp.eq.s32.totalorder %s21, 0
      %p168 = por %p166, %p167
      %s170 = sadd.s32 %s169, 1
      %p173 = scmp.eq.s32.totalorder %s15, 1
      %p174 = scmp.ne.s32.totalorder %s169, %s171
      %p175 = scmp.eq.s32.totalorder %s15, 0
      %p176 = por %p174, %p175
      %p177 = scmp.ne.s32.totalorder %s169, %s171
      %p178 = scmp.eq.s32.totalorder %s20, 1
      %p179 = por %p177, %p178
      %p180 = scmp.ne.s32.totalorder %s171, %s172
      %p181 = scmp.eq.s32.totalorder %s20, 0
      %p182 = por %p180, %p181
      %p183 = scmp.ne.s32.totalorder %s171, %s172
      %p184 = scmp.eq.s32.totalorder %s21, 1
      %p185 = por %p183, %p184
      %p187 = scmp.ne.s32.totalorder %s172, %s186
      %p188 = scmp.eq.s32.totalorder %s21, 0
      %p189 = por %p187, %p188
      %s191 = sadd.s32 %s190, 1
      %p194 = scmp.eq.s32.totalorder %s15, 1
      %p195 = scmp.ne.s32.totalorder %s190, %s192
      %p196 = scmp.eq.s32.totalorder %s15, 0
      %p197 = por %p195, %p196
      %p198 = scmp.ne.s32.totalorder %s190, %s192
      %p199 = scmp.eq.s32.totalorder %s20, 1
      %p200 = por %p198, %p199
      %p201 = scmp.ne.s32.totalorder %s192, %s193
      %p202 = scmp.eq.s32.totalorder %s20, 0
      %p203 = por %p201, %p202
      %p204 = scmp.ne.s32.totalorder %s192, %s193
      %p205 = scmp.eq.s32.totalorder %s21, 1
      %p206 = por %p204, %p205
      %p208 = scmp.ne.s32.totalorder %s193, %s207
      %p209 = scmp.eq.s32.totalorder %s21, 0
      %p210 = por %p208, %p209
      %s211 = ssub.s32 %s15, %s22
      %p212 = scmp.eq.s32.totalorder %s211, 0
      %s214 = sadd.s32 %s213, 1
      %s215 = scalar_select %p212, %s213, %s214
      %p218 = pneg %p212
      %p219 = scmp.eq.s32.totalorder %s15, 1
      %p220 = por %p218, %p219
      %p221 = scmp.ne.s32.totalorder %s213, %s216
      %p222 = scmp.eq.s32.totalorder %s15, 0
      %p223 = por %p221, %p222
      %p224 = scmp.ne.s32.totalorder %s213, %s216
      %p225 = scmp.eq.s32.totalorder %s20, 1
      %p226 = por %p224, %p225
      %p227 = scmp.ne.s32.totalorder %s216, %s217
      %p228 = scmp.eq.s32.totalorder %s20, 0
      %p229 = por %p227, %p228
      %p230 = scmp.ne.s32.totalorder %s216, %s217
      %p231 = scmp.eq.s32.totalorder %s21, 1
      %p232 = por %p230, %p231
      %p234 = scmp.ne.s32.totalorder %s217, %s233
      %p235 = scmp.eq.s32.totalorder %s21, 0
      %p236 = por %p234, %p235
      %p237 = scmp.le.s32.totalorder 1, %s15
      %p238 = scmp.lt.s32.totalorder %s15, 3
      %p239 = pnand %p237, %p238
      %p240 = pneg %p239
      // Predicated region
      $region9: #{kfnet_forward.3} parent=5 // pred_check
        _
      $region10: #{kfnet_forward.3} parent=5 // pred_check_branch
        %242 = sbr.rel (%p239) target = $region12
      $region11: #{kfnet_forward.3} parent=5 // pred_region
        %s243 = ssub.s32 %s15, 1
        // Predicated region
        $region13: #{kfnet_forward.3} parent=11 // pred_check
          %p244 = pneg %p36
        $region14: #{kfnet_forward.3} parent=11 // pred_check_branch
          %246 = sbr.rel (%p244) target = $region16
        $region15: #{kfnet_forward.3} parent=11 // pred_region
          %s248 = ssub.s32 16, 16
          %249 = vsyncadd [#allocation3], %s248
          %s251 = sshll.u32 %s0, 4
          %s252 = int_to_ptr.vmem [resolvable:$true] %s251
          %254 = dma.vmem_to_smem %s252, 16, [#allocation2], [#allocation3]
        $region16: #{kfnet_forward.3} parent=11 // pred_fallthru
          _
        // Predicated region
        $region17: #{kfnet_forward.3} parent=11 // pred_check
          %p255 = pneg %p161
        $region18: #{kfnet_forward.3} parent=11 // pred_check_branch
          %257 = sbr.rel (%p255) target = $region20
        $region19: #{kfnet_forward.3} parent=11 // pred_region
          _
        $region20: #{kfnet_forward.3} parent=11 // pred_fallthru
          _
        // Predicated region
        $region21: #{kfnet_forward.3} parent=11 // pred_check
          %p258 = pneg %p182
        $region22: #{kfnet_forward.3} parent=11 // pred_check_branch
          %260 = sbr.rel (%p258) target = $region24
        $region23: #{kfnet_forward.3} parent=11 // pred_region
          _
        $region24: #{kfnet_forward.3} parent=11 // pred_fallthru
          _
        // Predicated region
        $region25: #{kfnet_forward.3} parent=11 // pred_check
          %p261 = pneg %p203
        $region26: #{kfnet_forward.3} parent=11 // pred_check_branch
          %263 = sbr.rel (%p261) target = $region28
        $region27: #{kfnet_forward.3} parent=11 // pred_region
          _
        $region28: #{kfnet_forward.3} parent=11 // pred_fallthru
          _
      $region12: #{kfnet_forward.3} parent=5 // pred_fallthru
        _
      %p264 = scmp.lt.s32.totalorder %s15, 2
      // Predicated region
      $region29: #{kfnet_forward.3} parent=5 // pred_check
        %p265 = pneg %p264
      $region30: #{kfnet_forward.3} parent=5 // pred_check_branch
        %267 = sbr.rel (%p265) target = $region32
      $region31: #{kfnet_forward.3} parent=5 // pred_region
        // Predicated region
        $region33: #{kfnet_forward.3} parent=31 // pred_check
          %p268 = pneg %p56
        $region34: #{kfnet_forward.3} parent=31 // pred_check_branch
          %270 = sbr.rel (%p268) target = $region36
        $region35: #{kfnet_forward.3} parent=31 // pred_region
          %p271 = scmp.lt.s32.totalorder %s15, 1
          %s272 = scalar_select %p271, %s15, 1
          %s273 = smul.addr %s272, 8
          %s274 = scalar_lea.vmem %s1, %s273
        $region36: #{kfnet_forward.3} parent=31 // pred_fallthru
          _
        // Predicated region
        $region37: #{kfnet_forward.3} parent=31 // pred_check
          %p275 = pneg %p82
        $region38: #{kfnet_forward.3} parent=31 // pred_check_branch
          %277 = sbr.rel (%p275) target = $region40
        $region39: #{kfnet_forward.3} parent=31 // pred_region
          %p278 = scmp.lt.s32.totalorder %s15, 1
          %s279 = scalar_select %p278, %s15, 1
          %s280 = smul.addr %s279, 8
          %s281 = scalar_lea.vmem %s2, %s280
        $region40: #{kfnet_forward.3} parent=31 // pred_fallthru
          _
        // Predicated region
        $region41: #{kfnet_forward.3} parent=31 // pred_check
          %p282 = pneg %p108
        $region42: #{kfnet_forward.3} parent=31 // pred_check_branch
          %284 = sbr.rel (%p282) target = $region44
        $region43: #{kfnet_forward.3} parent=31 // pred_region
          %p285 = scmp.lt.s32.totalorder %s15, 1
          %s286 = scalar_select %p285, %s15, 1
          %s287 = scalar_lea.vmem %s3, %s286
        $region44: #{kfnet_forward.3} parent=31 // pred_fallthru
          _
        // Predicated region
        $region45: #{kfnet_forward.3} parent=31 // pred_check
          %p288 = pneg %p134
        $region46: #{kfnet_forward.3} parent=31 // pred_check_branch
          %290 = sbr.rel (%p288) target = $region48
        $region47: #{kfnet_forward.3} parent=31 // pred_region
          %p291 = scmp.lt.s32.totalorder %s15, 1
          %s292 = scalar_select %p291, %s15, 1
          %s293 = smul.addr %s292, 4
          %s294 = scalar_lea.vmem %s4, %s293
        $region48: #{kfnet_forward.3} parent=31 // pred_fallthru
          _
      $region32: #{kfnet_forward.3} parent=5 // pred_fallthru
        _
      %p295 = scmp.le.s32.totalorder 1, %s15
      %p296 = scmp.lt.s32.totalorder %s15, 3
      %p297 = pnand %p295, %p296
      %p298 = pneg %p297
      // Predicated region
      $region49: #{kfnet_forward.3} parent=5 // pred_check
        _
      $region50: #{kfnet_forward.3} parent=5 // pred_check_branch
        %300 = sbr.rel (%p297) target = $region52
      $region51: #{kfnet_forward.3} parent=5 // pred_region
        %s301 = ssub.s32 %s15, 1
        // Predicated region
        $region53: #{kfnet_forward.3} parent=51 // pred_check
          %p302 = pneg %p36
        $region54: #{kfnet_forward.3} parent=51 // pred_check_branch
          %304 = sbr.rel (%p302) target = $region56
        $region55: #{kfnet_forward.3} parent=51 // pred_region
          %305 = dma.done [#allocation3], 16
        $region56: #{kfnet_forward.3} parent=51 // pred_fallthru
          _
        %306 = sfence
        %p307 = pneg %p36
        %p308 = pneg %p33
        %p309 = scmp.lt.s32.totalorder %s20, 1
        %s310 = scalar_select %p309, %s20, 1
        %s311 = smul.addr %s310, 8
        %s312 = scalar_lea.vmem %s1, %s311
        %p313 = pneg %p62
        %p314 = pneg %p59
        %p315 = scmp.lt.s32.totalorder %s20, 1
        %s316 = scalar_select %p315, %s20, 1
        %s317 = smul.addr %s316, 8
        %s318 = scalar_lea.vmem %s2, %s317
        %p319 = pneg %p88
        %p320 = pneg %p85
        %p321 = scmp.lt.s32.totalorder %s20, 1
        %s322 = scalar_select %p321, %s20, 1
        %s323 = scalar_lea.vmem %s3, %s322
        %p324 = pneg %p114
        %p325 = pneg %p111
        %p326 = scmp.lt.s32.totalorder %s20, 1
        %s327 = scalar_select %p326, %s20, 1
        %s328 = smul.addr %s327, 4
        %s329 = scalar_lea.vmem %s4, %s328
        %p330 = pneg %p140
        %p331 = pneg %p137
        %p332 = pneg %p161
        %p333 = pneg %p158
        %p334 = pneg %p182
        %p335 = pneg %p179
        %p336 = pneg %p203
        %p337 = pneg %p200
        %p338 = pneg %p229
        %p339 = pneg %p226
        %p340 = scmp.lt.s32.totalorder %s20, 1
        %s341 = scalar_select %p340, %s20, 1
        %s342 = smul.addr %s341, 8
        %s343 = scalar_lea.vmem %s8, %s342
        %p344 = scmp.lt.s32.totalorder %s20, 1
        %s345 = scalar_select %p344, %s20, 1
        %s346 = smul.addr %s345, 8
        %s347 = scalar_lea.vmem %s1, %s346
        %p348 = scmp.lt.s32.totalorder %s20, 1
        %s349 = scalar_select %p348, %s20, 1
        %s350 = smul.addr %s349, 8
        %s351 = scalar_lea.vmem %s2, %s350
        %p352 = scmp.lt.s32.totalorder %s20, 1
        %s353 = scalar_select %p352, %s20, 1
        %s354 = scalar_lea.vmem %s3, %s353
        %p355 = scmp.lt.s32.totalorder %s20, 1
        %s356 = scalar_select %p355, %s20, 1
        %s357 = smul.addr %s356, 4
        %s358 = scalar_lea.vmem %s4, %s357
        %p359 = scmp.lt.s32.totalorder %s20, 1
        %s360 = scalar_select %p359, %s20, 1
        %s361 = smul.addr %s360, 8
        %s362 = scalar_lea.vmem %s8, %s361
        %v363 = vld [vmem:[%s347] sm:$0xff]
        %v364 = vld [vmem:[%s351] sm:$0xff]
        %366 = vrot.lane.b32.xlu0 %v363, 1
        %v367 = vpop.permute.xlu0 %366
        %vm369 = vcmask 7168
        %v370 = vsel %vm369, 0.0, %v367
        %371 = vrot.lane.b32.xlu0 %v363, 127
        %v372 = vpop.permute.xlu0 %371
        %vm374 = vcmask 121856
        %v375 = vsel %vm374, %v372, 0.0
        %s376 = sld [smem:[#allocation2 + $0x14]]
        %v377 = vstv %s376
        %s378 = sld [smem:[#allocation2]]
        %v379 = vstv %s378
        %v380 = vmul.f32 %v379, %v370
        %s381 = sld [smem:[#allocation2 + $0x1]]
        %v382 = vstv %s381
        %v383 = vmul.f32 %v382, %v363
        %v384 = vadd.f32 %v380, %v383
        %s385 = sld [smem:[#allocation2 + $0x2]]
        %v386 = vstv %s385
        %v387 = vmul.f32 %v386, %v375
        %v388 = vadd.f32 %v384, %v387
        %s389 = sld [smem:[#allocation2 + $0xc]]
        %v390 = vstv %s389
        %v391 = vadd.f32 %v388, %v390
        %s392 = sld [smem:[#allocation2 + $0x10]]
        %v393 = vmax.f32 %v391, 0.0
        %v394 = vstv %s392
        %v395 = vmul.f32 %v394, %v393
        %v396 = vadd.f32 %v377, %v395
        %s397 = sld [smem:[#allocation2 + $0x3]]
        %v398 = vstv %s397
        %v399 = vmul.f32 %v398, %v370
        %s400 = sld [smem:[#allocation2 + $0x4]]
        %v401 = vstv %s400
        %v402 = vmul.f32 %v401, %v363
        %v403 = vadd.f32 %v399, %v402
        %s404 = sld [smem:[#allocation2 + $0x5]]
        %v405 = vstv %s404
        %v406 = vmul.f32 %v405, %v375
        %v407 = vadd.f32 %v403, %v406
        %s408 = sld [smem:[#allocation2 + $0xd]]
        %v409 = vstv %s408
        %v410 = vadd.f32 %v407, %v409
        %s411 = sld [smem:[#allocation2 + $0x11]]
        %v412 = vmax.f32 %v410, 0.0
        %v413 = vstv %s411
        %v414 = vmul.f32 %v413, %v412
        %v415 = vadd.f32 %v396, %v414
        %s416 = sld [smem:[#allocation2 + $0x6]]
        %v417 = vstv %s416
        %v418 = vmul.f32 %v417, %v370
        %s419 = sld [smem:[#allocation2 + $0x7]]
        %v420 = vstv %s419
        %v421 = vmul.f32 %v420, %v363
        %v422 = vadd.f32 %v418, %v421
        %s423 = sld [smem:[#allocation2 + $0x8]]
        %v424 = vstv %s423
        %v425 = vmul.f32 %v424, %v375
        %v426 = vadd.f32 %v422, %v425
        %s427 = sld [smem:[#allocation2 + $0xe]]
        %v428 = vstv %s427
        %v429 = vadd.f32 %v426, %v428
        %s430 = sld [smem:[#allocation2 + $0x12]]
        %v431 = vmax.f32 %v429, 0.0
        %v432 = vstv %s430
        %v433 = vmul.f32 %v432, %v431
        %v434 = vadd.f32 %v415, %v433
        %s435 = sld [smem:[#allocation2 + $0x9]]
        %v436 = vstv %s435
        %v437 = vmul.f32 %v436, %v370
        %s438 = sld [smem:[#allocation2 + $0xa]]
        %v439 = vstv %s438
        %v440 = vmul.f32 %v439, %v363
        %v441 = vadd.f32 %v437, %v440
        %s442 = sld [smem:[#allocation2 + $0xb]]
        %v443 = vstv %s442
        %v444 = vmul.f32 %v443, %v375
        %v445 = vadd.f32 %v441, %v444
        %s446 = sld [smem:[#allocation2 + $0xf]]
        %v447 = vstv %s446
        %v448 = vadd.f32 %v445, %v447
        %s449 = sld [smem:[#allocation2 + $0x13]]
        %v450 = vmax.f32 %v448, 0.0
        %v451 = vstv %s449
        %v452 = vmul.f32 %v451, %v450
        %v453 = vadd.f32 %v434, %v452
        %v454 = vld [vmem:[%s354] sm:$0x1]
        %v456 = vlaneseq
        %v457 = vshrl.u32 %v456, 7
        %v458 = vsub.s32 0, %v457
        %v459 = vrot.slane %v454, %v458
        %v461 = vadd.f32 %v453, %v459
        %v462 = vld [vmem:[%s6] sm:$0xff]
        %v463 = vld [vmem:[%s7] sm:$0x1]
        %v465 = vlaneseq
        %v466 = vshrl.u32 %v465, 7
        %v467 = vsub.s32 0, %v466
        %v468 = vrot.slane %v463, %v467
        %v470 = vadd.f32 %v462, %v468
        %v471 = vld [vmem:[%s358] sm:$0x1]
        %v472 = vlaneseq
        %v473 = vshrl.u32 %v472, 7
        %v474 = vsub.s32 0, %v473
        %v475 = vrot.slane %v471, %v474
        %v476 = vmul.f32 %v475, %v364
        %vm477 = vcmask 130048
        %v478 = vsel %vm477, %v476, 0.0
        %479 = vadd.xlane.f32.xlu0 %v478
        %v480 = vpop.xlane.xlu0 %479
        %v481 = vadd.f32 %v480, 1e-08
        %v482 = vrcp.pop %v481
        %v483 = vmul.f32 %v476, %v482
        %v484 = vmul.f32 %v483, %v461
        %v485 = vsel %vm477, %v484, 0.0
        %486 = vadd.xlane.f32.xlu0 %v485
        %v487 = vpop.xlane.xlu0 %486
        %v488 = vld [vmem:[%s5] sm:$0x1]
        %v489 = vlaneseq
        %v490 = vshrl.u32 %v489, 7
        %v491 = vsub.s32 0, %v490
        %v492 = vrot.slane %v488, %v491
        %v493 = vmul.f32 %v487, %v492
        %v494 = vadd.f32 %v470, %v493
        %v495 = vld [vmem:[%s358 + $0x1] sm:$0x1]
        %v496 = vlaneseq
        %v497 = vshrl.u32 %v496, 7
        %v498 = vsub.s32 0, %v497
        %v499 = vrot.slane %v495, %v498
        %v500 = vmul.f32 %v499, %v364
        %v501 = vsel %vm477, %v500, 0.0
        %502 = vadd.xlane.f32.xlu0 %v501
        %v503 = vpop.xlane.xlu0 %502
        %v504 = vadd.f32 %v503, 1e-08
        %v505 = vrcp.pop %v504
        %v506 = vmul.f32 %v500, %v505
        %v507 = vmul.f32 %v506, %v461
        %v508 = vsel %vm477, %v507, 0.0
        %509 = vadd.xlane.f32.xlu0 %v508
        %v510 = vpop.xlane.xlu0 %509
        %v511 = vld [vmem:[%s5 + $0x1] sm:$0x1]
        %v512 = vlaneseq
        %v513 = vshrl.u32 %v512, 7
        %v514 = vsub.s32 0, %v513
        %v515 = vrot.slane %v511, %v514
        %v516 = vmul.f32 %v510, %v515
        %v517 = vadd.f32 %v494, %v516
        %v518 = vld [vmem:[%s358 + $0x2] sm:$0x1]
        %v519 = vlaneseq
        %v520 = vshrl.u32 %v519, 7
        %v521 = vsub.s32 0, %v520
        %v522 = vrot.slane %v518, %v521
        %v523 = vmul.f32 %v522, %v364
        %v524 = vsel %vm477, %v523, 0.0
        %525 = vadd.xlane.f32.xlu0 %v524
        %v526 = vpop.xlane.xlu0 %525
        %v527 = vadd.f32 %v526, 1e-08
        %v528 = vrcp.pop %v527
        %v529 = vmul.f32 %v523, %v528
        %v530 = vmul.f32 %v529, %v461
        %v531 = vsel %vm477, %v530, 0.0
        %532 = vadd.xlane.f32.xlu0 %v531
        %v533 = vpop.xlane.xlu0 %532
        %v534 = vld [vmem:[%s5 + $0x2] sm:$0x1]
        %v535 = vlaneseq
        %v536 = vshrl.u32 %v535, 7
        %v537 = vsub.s32 0, %v536
        %v538 = vrot.slane %v534, %v537
        %v539 = vmul.f32 %v533, %v538
        %v540 = vadd.f32 %v517, %v539
        %v541 = vld [vmem:[%s358 + $0x3] sm:$0x1]
        %v542 = vlaneseq
        %v543 = vshrl.u32 %v542, 7
        %v544 = vsub.s32 0, %v543
        %v545 = vrot.slane %v541, %v544
        %v546 = vmul.f32 %v545, %v364
        %v547 = vsel %vm477, %v546, 0.0
        %548 = vadd.xlane.f32.xlu0 %v547
        %v549 = vpop.xlane.xlu0 %548
        %v550 = vadd.f32 %v549, 1e-08
        %v551 = vrcp.pop %v550
        %v552 = vmul.f32 %v546, %v551
        %v553 = vmul.f32 %v552, %v461
        %v554 = vsel %vm477, %v553, 0.0
        %555 = vadd.xlane.f32.xlu0 %v554
        %v556 = vpop.xlane.xlu0 %555
        %v557 = vld [vmem:[%s5 + $0x3] sm:$0x1]
        %v558 = vlaneseq
        %v559 = vshrl.u32 %v558, 7
        %v560 = vsub.s32 0, %v559
        %v561 = vrot.slane %v557, %v560
        %v562 = vmul.f32 %v556, %v561
        %v563 = vadd.f32 %v540, %v562
        %v564 = vsel %vm477, %v364, 0.0
        %565 = vadd.xlane.f32.xlu0 %v564
        %v566 = vpop.xlane.xlu0 %565
        %vm567 = vcmp.gt.f32.partialorder %v566, 0.0
        %v568 = vsel %vm567, 1, 0
        %v569 = vcvt.s32.f32 %v568
        %v570 = vld [vmem:[%s5 + $0x4] sm:$0x1]
        %v571 = vlaneseq
        %v572 = vshrl.u32 %v571, 7
        %v573 = vsub.s32 0, %v572
        %v574 = vrot.slane %v570, %v573
        %v575 = vmul.f32 %v569, %v574
        %v576 = vadd.f32 %v563, %v575
        %vm577 = vcmask 261120
        %578 = vst.msk [vmem:[%s362] sm:$0xff] %vm577, %v576
        %p579 = scmp.lt.s32.totalorder %s20, 1
        %s580 = scalar_select %p579, %s20, 1
        %s581 = smul.addr %s580, 8
        %s582 = scalar_lea.vmem %s8, %s581
        // Predicated region
        $region57: #{kfnet_forward.3} parent=51 // pred_check
          %p583 = pneg %p226
        $region58: #{kfnet_forward.3} parent=51 // pred_check_branch
          %585 = sbr.rel (%p583) target = $region60
        $region59: #{kfnet_forward.3} parent=51 // pred_region
          _
        $region60: #{kfnet_forward.3} parent=51 // pred_fallthru
          _
      $region52: #{kfnet_forward.3} parent=5 // pred_fallthru
        _
      %p586 = scmp.le.s32.totalorder 2, %s15
      // Predicated region
      $region61: #{kfnet_forward.3} parent=5 // pred_check
        %p587 = pneg %p586
      $region62: #{kfnet_forward.3} parent=5 // pred_check_branch
        %589 = sbr.rel (%p587) target = $region64
      $region63: #{kfnet_forward.3} parent=5 // pred_region
        %s590 = ssub.s32 %s15, 2
        // Predicated region
        $region65: #{kfnet_forward.3} parent=63 // pred_check
          %p591 = pneg %p232
        $region66: #{kfnet_forward.3} parent=63 // pred_check_branch
          %593 = sbr.rel (%p591) target = $region68
        $region67: #{kfnet_forward.3} parent=63 // pred_region
          %p594 = scmp.lt.s32.totalorder %s21, 1
          %s595 = scalar_select %p594, %s21, 1
          %s596 = smul.addr %s595, 8
          %s597 = scalar_lea.vmem %s8, %s596
        $region68: #{kfnet_forward.3} parent=63 // pred_fallthru
          _
      $region64: #{kfnet_forward.3} parent=5 // pred_fallthru
        _
    $region6: #{kfnet_forward.3} parent=1 // loop_footer
      %s19 = sadd.s32 1, %s15
    $region7: #{kfnet_forward.3} parent=1 // loop_footer_branch
      %14 = sbr.rel target = $region3
    $region8: #{kfnet_forward.3} parent=1 // loop_exit
      _
    %598 = vsyncpa [#allocation3], 1
    %s599 = scalar_lea.sflag [#allocation3], 1
    %600 = vsyncpa %s599, 1

// kernel: kfnet_forward.5
$region0: #{kfnet_forward.5}
  #allocation0 [shape = 'u32[]', space=smem, size = 0x4, offset = 0x4, fixed_abs, tag = 'smem constant byte address 0x4 - core index']
  #allocation1 [shape = 'u32[144,128]{1,0:T(1,128)}', space=vmem, size = 0x12000, scoped, tag = 'internal scratch']
  #allocation2 [shape = 'f32[1,1]{1,0:T(1,128)S(1)}', space=vmem, size = 0x200, scoped, tag = 'scoped memory for kfnet_forward.5']
  %s0 = inlined_call_operand.vmem [shape: f32[2,8,32], index: 0, kind: input, shape index: {}]
  %s1 = inlined_call_operand.vmem [shape: f32[2,4,32], index: 1, kind: input, shape index: {}]
  %s2 = inlined_call_operand.vmem [shape: f32[32,32], index: 2, kind: input, shape index: {}]
  %s3 = inlined_call_operand.vmem [shape: f32[32,32], index: 3, kind: input, shape index: {}]
  %s4 = inlined_call_operand.vmem [shape: f32[1,32], index: 4, kind: input, shape index: {}]
  %s5 = inlined_call_operand.vmem [shape: f32[1,32], index: 5, kind: input, shape index: {}]
  %s6 = inlined_call_operand.<no memory space> [shape: f32[1,1], index: 6, kind: input, shape index: {}]
  %s7 = inlined_call_operand.vmem [shape: f32[2,8,4], index: 7, kind: output, shape index: {}]
  %s8 = sld [smem:[#allocation0]]
  $region61: #{kfnet_forward.5} parent=0
    _
  %s10 = ssub.s32 1, %s8
  %s11 = scalar_select 0, %s10, %s8
  %v12 = vstv %s6
  %13 = vst [vmem:[#allocation2] sm:$0x1] %v12
  loop: start=0, step=1, limit=4
  $region2: #{kfnet_forward.5} parent=0 // loop_pre_header
    _
  $region3: #{kfnet_forward.5} parent=0 // loop_header
    %s15 = sphi 0, %s19
    %p16 = scmp.ge.s32.totalorder %s15, 4
    %s25 = sphi 0, %s27
    %s28 = sphi 0, %s25
    %s29 = sphi 0, %s28
    %s45 = sphi 0, %s29
    %s51 = sphi 0, %s53
    %s54 = sphi 0, %s51
    %s55 = sphi 0, %s54
    %s71 = sphi 0, %s55
    %s75 = sphi 0, %s75
    %s77 = sphi 0, %s75
    %s78 = sphi 0, %s77
    %s92 = sphi 0, %s78
    %s96 = sphi 0, %s96
    %s98 = sphi 0, %s96
    %s99 = sphi 0, %s98
    %s113 = sphi 0, %s99
    %s117 = sphi 0, %s117
    %s119 = sphi 0, %s117
    %s120 = sphi 0, %s119
    %s134 = sphi 0, %s120
    %s138 = sphi 0, %s138
    %s140 = sphi 0, %s138
    %s141 = sphi 0, %s140
    %s155 = sphi 0, %s141
    %s159 = sphi 0, %s159
    %s161 = sphi 0, %s159
    %s162 = sphi 0, %s161
    %s176 = sphi 0, %s162
    %s182 = sphi 0, %s184
    %s185 = sphi 0, %s182
    %s186 = sphi 0, %s185
    %s202 = sphi 0, %s186
  $region4: #{kfnet_forward.5} parent=0 // loop_header_branch
    %18 = sbr.rel (%p16) target = $region8
  $region5: #{kfnet_forward.5} parent=0 // loop_body
    %s20 = ssub.s32 %s15, 1
    %s21 = ssub.s32 %s15, 2
    %s22 = sadd.s32 %s15, 1
    %s23 = ssub.s32 %s15, %s22
    %p24 = scmp.eq.s32.totalorder %s23, 0
    %s26 = sadd.s32 %s25, 1
    %s27 = scalar_select %p24, %s25, %s26
    %p30 = pneg %p24
    %p31 = scmp.eq.s32.totalorder %s15, 1
    %p32 = por %p30, %p31
    %p33 = scmp.ne.s32.totalorder %s25, %s28
    %p34 = scmp.eq.s32.totalorder %s15, 0
    %p35 = por %p33, %p34
    %p36 = scmp.ne.s32.totalorder %s25, %s28
    %p37 = scmp.eq.s32.totalorder %s20, 1
    %p38 = por %p36, %p37
    %p39 = scmp.ne.s32.totalorder %s28, %s29
    %p40 = scmp.eq.s32.totalorder %s20, 0
    %p41 = por %p39, %p40
    %p42 = scmp.ne.s32.totalorder %s28, %s29
    %p43 = scmp.eq.s32.totalorder %s21, 1
    %p44 = por %p42, %p43
    %p46 = scmp.ne.s32.totalorder %s29, %s45
    %p47 = scmp.eq.s32.totalorder %s21, 0
    %p48 = por %p46, %p47
    %s49 = ssub.s32 %s15, %s22
    %p50 = scmp.eq.s32.totalorder %s49, 0
    %s52 = sadd.s32 %s51, 1
    %s53 = scalar_select %p50, %s51, %s52
    %p56 = pneg %p50
    %p57 = scmp.eq.s32.totalorder %s15, 1
    %p58 = por %p56, %p57
    %p59 = scmp.ne.s32.totalorder %s51, %s54
    %p60 = scmp.eq.s32.totalorder %s15, 0
    %p61 = por %p59, %p60
    %p62 = scmp.ne.s32.totalorder %s51, %s54
    %p63 = scmp.eq.s32.totalorder %s20, 1
    %p64 = por %p62, %p63
    %p65 = scmp.ne.s32.totalorder %s54, %s55
    %p66 = scmp.eq.s32.totalorder %s20, 0
    %p67 = por %p65, %p66
    %p68 = scmp.ne.s32.totalorder %s54, %s55
    %p69 = scmp.eq.s32.totalorder %s21, 1
    %p70 = por %p68, %p69
    %p72 = scmp.ne.s32.totalorder %s55, %s71
    %p73 = scmp.eq.s32.totalorder %s21, 0
    %p74 = por %p72, %p73
    %s76 = sadd.s32 %s75, 1
    %p79 = scmp.eq.s32.totalorder %s15, 1
    %p80 = scmp.ne.s32.totalorder %s75, %s77
    %p81 = scmp.eq.s32.totalorder %s15, 0
    %p82 = por %p80, %p81
    %p83 = scmp.ne.s32.totalorder %s75, %s77
    %p84 = scmp.eq.s32.totalorder %s20, 1
    %p85 = por %p83, %p84
    %p86 = scmp.ne.s32.totalorder %s77, %s78
    %p87 = scmp.eq.s32.totalorder %s20, 0
    %p88 = por %p86, %p87
    %p89 = scmp.ne.s32.totalorder %s77, %s78
    %p90 = scmp.eq.s32.totalorder %s21, 1
    %p91 = por %p89, %p90
    %p93 = scmp.ne.s32.totalorder %s78, %s92
    %p94 = scmp.eq.s32.totalorder %s21, 0
    %p95 = por %p93, %p94
    %s97 = sadd.s32 %s96, 1
    %p100 = scmp.eq.s32.totalorder %s15, 1
    %p101 = scmp.ne.s32.totalorder %s96, %s98
    %p102 = scmp.eq.s32.totalorder %s15, 0
    %p103 = por %p101, %p102
    %p104 = scmp.ne.s32.totalorder %s96, %s98
    %p105 = scmp.eq.s32.totalorder %s20, 1
    %p106 = por %p104, %p105
    %p107 = scmp.ne.s32.totalorder %s98, %s99
    %p108 = scmp.eq.s32.totalorder %s20, 0
    %p109 = por %p107, %p108
    %p110 = scmp.ne.s32.totalorder %s98, %s99
    %p111 = scmp.eq.s32.totalorder %s21, 1
    %p112 = por %p110, %p111
    %p114 = scmp.ne.s32.totalorder %s99, %s113
    %p115 = scmp.eq.s32.totalorder %s21, 0
    %p116 = por %p114, %p115
    %s118 = sadd.s32 %s117, 1
    %p121 = scmp.eq.s32.totalorder %s15, 1
    %p122 = scmp.ne.s32.totalorder %s117, %s119
    %p123 = scmp.eq.s32.totalorder %s15, 0
    %p124 = por %p122, %p123
    %p125 = scmp.ne.s32.totalorder %s117, %s119
    %p126 = scmp.eq.s32.totalorder %s20, 1
    %p127 = por %p125, %p126
    %p128 = scmp.ne.s32.totalorder %s119, %s120
    %p129 = scmp.eq.s32.totalorder %s20, 0
    %p130 = por %p128, %p129
    %p131 = scmp.ne.s32.totalorder %s119, %s120
    %p132 = scmp.eq.s32.totalorder %s21, 1
    %p133 = por %p131, %p132
    %p135 = scmp.ne.s32.totalorder %s120, %s134
    %p136 = scmp.eq.s32.totalorder %s21, 0
    %p137 = por %p135, %p136
    %s139 = sadd.s32 %s138, 1
    %p142 = scmp.eq.s32.totalorder %s15, 1
    %p143 = scmp.ne.s32.totalorder %s138, %s140
    %p144 = scmp.eq.s32.totalorder %s15, 0
    %p145 = por %p143, %p144
    %p146 = scmp.ne.s32.totalorder %s138, %s140
    %p147 = scmp.eq.s32.totalorder %s20, 1
    %p148 = por %p146, %p147
    %p149 = scmp.ne.s32.totalorder %s140, %s141
    %p150 = scmp.eq.s32.totalorder %s20, 0
    %p151 = por %p149, %p150
    %p152 = scmp.ne.s32.totalorder %s140, %s141
    %p153 = scmp.eq.s32.totalorder %s21, 1
    %p154 = por %p152, %p153
    %p156 = scmp.ne.s32.totalorder %s141, %s155
    %p157 = scmp.eq.s32.totalorder %s21, 0
    %p158 = por %p156, %p157
    %s160 = sadd.s32 %s159, 1
    %p163 = scmp.eq.s32.totalorder %s15, 1
    %p164 = scmp.ne.s32.totalorder %s159, %s161
    %p165 = scmp.eq.s32.totalorder %s15, 0
    %p166 = por %p164, %p165
    %p167 = scmp.ne.s32.totalorder %s159, %s161
    %p168 = scmp.eq.s32.totalorder %s20, 1
    %p169 = por %p167, %p168
    %p170 = scmp.ne.s32.totalorder %s161, %s162
    %p171 = scmp.eq.s32.totalorder %s20, 0
    %p172 = por %p170, %p171
    %p173 = scmp.ne.s32.totalorder %s161, %s162
    %p174 = scmp.eq.s32.totalorder %s21, 1
    %p175 = por %p173, %p174
    %p177 = scmp.ne.s32.totalorder %s162, %s176
    %p178 = scmp.eq.s32.totalorder %s21, 0
    %p179 = por %p177, %p178
    %s180 = ssub.s32 %s15, %s22
    %p181 = scmp.eq.s32.totalorder %s180, 0
    %s183 = sadd.s32 %s182, 1
    %s184 = scalar_select %p181, %s182, %s183
    %p187 = pneg %p181
    %p188 = scmp.eq.s32.totalorder %s15, 1
    %p189 = por %p187, %p188
    %p190 = scmp.ne.s32.totalorder %s182, %s185
    %p191 = scmp.eq.s32.totalorder %s15, 0
    %p192 = por %p190, %p191
    %p193 = scmp.ne.s32.totalorder %s182, %s185
    %p194 = scmp.eq.s32.totalorder %s20, 1
    %p195 = por %p193, %p194
    %p196 = scmp.ne.s32.totalorder %s185, %s186
    %p197 = scmp.eq.s32.totalorder %s20, 0
    %p198 = por %p196, %p197
    %p199 = scmp.ne.s32.totalorder %s185, %s186
    %p200 = scmp.eq.s32.totalorder %s21, 1
    %p201 = por %p199, %p200
    %p203 = scmp.ne.s32.totalorder %s186, %s202
    %p204 = scmp.eq.s32.totalorder %s21, 0
    %p205 = por %p203, %p204
    %p206 = scmp.le.s32.totalorder 1, %s15
    %p207 = scmp.lt.s32.totalorder %s15, 3
    %p208 = pnand %p206, %p207
    %p209 = pneg %p208
    // Predicated region
    $region9: #{kfnet_forward.5} parent=5 // pred_check
      _
    $region10: #{kfnet_forward.5} parent=5 // pred_check_branch
      %211 = sbr.rel (%p208) target = $region12
    $region11: #{kfnet_forward.5} parent=5 // pred_region
      %s212 = ssub.s32 %s15, 1
      // Predicated region
      $region13: #{kfnet_forward.5} parent=11 // pred_check
        %p213 = pneg %p88
      $region14: #{kfnet_forward.5} parent=11 // pred_check_branch
        %215 = sbr.rel (%p213) target = $region16
      $region15: #{kfnet_forward.5} parent=11 // pred_region
        _
      $region16: #{kfnet_forward.5} parent=11 // pred_fallthru
        _
      // Predicated region
      $region17: #{kfnet_forward.5} parent=11 // pred_check
        %p216 = pneg %p109
      $region18: #{kfnet_forward.5} parent=11 // pred_check_branch
        %218 = sbr.rel (%p216) target = $region20
      $region19: #{kfnet_forward.5} parent=11 // pred_region
        _
      $region20: #{kfnet_forward.5} parent=11 // pred_fallthru
        _
      // Predicated region
      $region21: #{kfnet_forward.5} parent=11 // pred_check
        %p219 = pneg %p130
      $region22: #{kfnet_forward.5} parent=11 // pred_check_branch
        %221 = sbr.rel (%p219) target = $region24
      $region23: #{kfnet_forward.5} parent=11 // pred_region
        _
      $region24: #{kfnet_forward.5} parent=11 // pred_fallthru
        _
      // Predicated region
      $region25: #{kfnet_forward.5} parent=11 // pred_check
        %p222 = pneg %p151
      $region26: #{kfnet_forward.5} parent=11 // pred_check_branch
        %224 = sbr.rel (%p222) target = $region28
      $region27: #{kfnet_forward.5} parent=11 // pred_region
        _
      $region28: #{kfnet_forward.5} parent=11 // pred_fallthru
        _
      // Predicated region
      $region29: #{kfnet_forward.5} parent=11 // pred_check
        %p225 = pneg %p172
      $region30: #{kfnet_forward.5} parent=11 // pred_check_branch
        %227 = sbr.rel (%p225) target = $region32
      $region31: #{kfnet_forward.5} parent=11 // pred_region
        _
      $region32: #{kfnet_forward.5} parent=11 // pred_fallthru
        _
    $region12: #{kfnet_forward.5} parent=5 // pred_fallthru
      _
    %p228 = scmp.lt.s32.totalorder %s15, 2
    // Predicated region
    $region33: #{kfnet_forward.5} parent=5 // pred_check
      %p229 = pneg %p228
    $region34: #{kfnet_forward.5} parent=5 // pred_check_branch
      %231 = sbr.rel (%p229) target = $region36
    $region35: #{kfnet_forward.5} parent=5 // pred_region
      // Predicated region
      $region37: #{kfnet_forward.5} parent=35 // pred_check
        %p232 = pneg %p35
      $region38: #{kfnet_forward.5} parent=35 // pred_check_branch
        %234 = sbr.rel (%p232) target = $region40
      $region39: #{kfnet_forward.5} parent=35 // pred_region
        %p235 = scmp.lt.s32.totalorder %s15, 1
        %s236 = scalar_select %p235, %s15, 1
        %s237 = smul.addr %s236, 8
        %s238 = scalar_lea.vmem %s0, %s237
      $region40: #{kfnet_forward.5} parent=35 // pred_fallthru
        _
      // Predicated region
      $region41: #{kfnet_forward.5} parent=35 // pred_check
        %p239 = pneg %p61
      $region42: #{kfnet_forward.5} parent=35 // pred_check_branch
        %241 = sbr.rel (%p239) target = $region44
      $region43: #{kfnet_forward.5} parent=35 // pred_region
        %p242 = scmp.lt.s32.totalorder %s15, 1
        %s243 = scalar_select %p242, %s15, 1
        %s244 = smul.addr %s243, 4
        %s245 = scalar_lea.vmem %s1, %s244
      $region44: #{kfnet_forward.5} parent=35 // pred_fallthru
        _
    $region36: #{kfnet_forward.5} parent=5 // pred_fallthru
      _
    %p246 = scmp.le.s32.totalorder 1, %s15
    %p247 = scmp.lt.s32.totalorder %s15, 3
    %p248 = pnand %p246, %p247
    %p249 = pneg %p248
    // Predicated region
    $region45: #{kfnet_forward.5} parent=5 // pred_check
      _
    $region46: #{kfnet_forward.5} parent=5 // pred_check_branch
      %251 = sbr.rel (%p248) target = $region48
    $region47: #{kfnet_forward.5} parent=5 // pred_region
      %s252 = ssub.s32 %s15, 1
      %p253 = scmp.lt.s32.totalorder %s20, 1
      %s254 = scalar_select %p253, %s20, 1
      %s255 = smul.addr %s254, 8
      %s256 = scalar_lea.vmem %s0, %s255
      %p257 = pneg %p41
      %p258 = pneg %p38
      %p259 = scmp.lt.s32.totalorder %s20, 1
      %s260 = scalar_select %p259, %s20, 1
      %s261 = smul.addr %s260, 4
      %s262 = scalar_lea.vmem %s1, %s261
      %p263 = pneg %p67
      %p264 = pneg %p64
      %p265 = pneg %p88
      %p266 = pneg %p85
      %p267 = pneg %p109
      %p268 = pneg %p106
      %p269 = pneg %p130
      %p270 = pneg %p127
      %p271 = pneg %p151
      %p272 = pneg %p148
      %p273 = pneg %p172
      %p274 = pneg %p169
      %p275 = pneg %p198
      %p276 = pneg %p195
      %p277 = scmp.lt.s32.totalorder %s20, 1
      %s278 = scalar_select %p277, %s20, 1
      %s279 = smul.addr %s278, 8
      %s280 = scalar_lea.vmem %s7, %s279
      %p281 = scmp.lt.s32.totalorder %s20, 1
      %s282 = scalar_select %p281, %s20, 1
      %s283 = smul.addr %s282, 8
      %s284 = scalar_lea.vmem %s0, %s283
      %p285 = scmp.lt.s32.totalorder %s20, 1
      %s286 = scalar_select %p285, %s20, 1
      %s287 = smul.addr %s286, 4
      %s288 = scalar_lea.vmem %s1, %s287
      %p289 = scmp.lt.s32.totalorder %s20, 1
      %s290 = scalar_select %p289, %s20, 1
      %s291 = smul.addr %s290, 8
      %s292 = scalar_lea.vmem %s7, %s291
      %v293 = vld [vmem:[%s284] sm:$0xff]
      %v294 = vld [vmem:[%s2] sm:$0xff]
      %v295 = vld [vmem:[%s2 + $0x8] sm:$0xff]
      %v296 = vld [vmem:[%s2 + $0x10] sm:$0xff]
      %v297 = vld [vmem:[%s2 + $0x18] sm:$0xff]
      %vm298 = vcmask 261120
      %v300 = vsel %vm298, %v293, 0
      %302 = vmatprep.subr.mxu0 0.0
      %303 = vmatpush1.msra.mxu0 %v294
      %304 = vmatprep.subr.mxu0 0.0
      %305 = vmatpush1.msra.mxu0 %v295
      %306 = vmatprep.subr.mxu0 0.0
      %307 = vmatpush1.msra.mxu0 %v296
      %308 = vmatprep.subr.mxu0 0.0
      %309 = vmatpush1.msra.mxu0 %v297
      %310 = vmatprep.subr.mxu0 0.0
      %311 = vmatpush1.msra.mxu0 0.0
      %312 = vmatprep.subr.mxu0 0.0
      %313 = vmatpush1.msra.mxu0 0.0
      %314 = vmatprep.subr.mxu0 0.0
      %315 = vmatpush1.msra.mxu0 0.0
      %316 = vmatprep.subr.mxu0 0.0
      %317 = vmatpush1.msra.mxu0 0.0
      %318 = vmatprep.subr.mxu0 0.0
      %319 = vmatpush1.msra.mxu0 0.0
      %320 = vmatprep.subr.mxu0 0.0
      %321 = vmatpush1.msra.mxu0 0.0
      %322 = vmatprep.subr.mxu0 0.0
      %323 = vmatpush1.msra.mxu0 0.0
      %324 = vmatprep.subr.mxu0 0.0
      %325 = vmatpush1.msra.mxu0 0.0
      %326 = vmatprep.subr.mxu0 0.0
      %327 = vmatpush1.msra.mxu0 0.0
      %328 = vmatprep.subr.mxu0 0.0
      %329 = vmatpush1.msra.mxu0 0.0
      %330 = vmatprep.subr.mxu0 0.0
      %331 = vmatpush1.msra.mxu0 0.0
      %332 = vmatprep.subr.mxu0 0.0
      %333 = vmatpush1.msra.mxu0 0.0
      %334 = vmatprep.subr.mxu0 0.0
      %335 = vmatpush1.msra.mxu0 0.0
      %336 = vmatprep.subr.mxu0 0.0
      %337 = vmatpush1.msra.mxu0 0.0
      %338 = vmatprep.subr.mxu0 0.0
      %339 = vmatpush1.msra.mxu0 0.0
      %340 = vmatprep.subr.mxu0 0.0
      %341 = vmatpush1.msra.mxu0 0.0
      %342 = vmatprep.subr.mxu0 0.0
      %343 = vmatpush1.msra.mxu0 0.0
      %344 = vmatprep.subr.mxu0 0.0
      %345 = vmatpush1.msra.mxu0 0.0
      %346 = vmatprep.subr.mxu0 0.0
      %347 = vmatpush1.msra.mxu0 0.0
      %348 = vmatprep.subr.mxu0 0.0
      %349 = vmatpush1.msra.mxu0 0.0
      %350 = vmatprep.subr.mxu0 0.0
      %351 = vmatpush1.msra.mxu0 0.0
      %352 = vmatprep.subr.mxu0 0.0
      %353 = vmatpush1.msra.mxu0 0.0
      %354 = vmatprep.subr.mxu0 0.0
      %355 = vmatpush1.msra.mxu0 0.0
      %356 = vmatprep.subr.mxu0 0.0
      %357 = vmatpush1.msra.mxu0 0.0
      %358 = vmatprep.subr.mxu0 0.0
      %359 = vmatpush1.msra.mxu0 0.0
      %360 = vmatprep.subr.mxu0 0.0
      %361 = vmatpush1.msra.mxu0 0.0
      %362 = vmatprep.subr.mxu0 0.0
      %363 = vmatpush1.msra.mxu0 0.0
      %364 = vmatprep.subr.mxu0 0.0
      %365 = vmatpush1.msra.mxu0 0.0
      %366 = vmatprep.mubr.f32.mxu0 0.0
      %367 = vmatmul.mubr.f32.gmra.mrb[0].mxu0 %v300
      %v368 = vpop.f32.mrb[0].mxu0
      %v369 = vadd.f32 0.0, %v368
      %v370 = vpop.f32.mrb[0].mxu0
      %371 = vdwg.mxu0
      %v373 = vcombine.high %v369, %v369
      %v375 = vunpack.c.l.s4 1966171168
      %v376 = vunpack.c.0.s8 %v375
      %v377 = vlaneseq
      %v378 = vshrl.u32 %v377, 7
      %v379 = vsub.s32 %v376, %v378
      %v380 = vrot.slane %v369, %v379
      %v382 = vunpack.c.l.s4 1966171168
      %v383 = vunpack.c.0.s8 %v382
      %v384 = vlaneseq
      %v385 = vshrl.u32 %v384, 7
      %v386 = vsub.s32 %v383, %v385
      %v387 = vrot.slane %v373, %v386
      %v388 = vcombine.high %v380, %v380
      %v389 = vcombine.high %v387, %v387
      %v391 = vunpack.c.l.s4 1966171168
      %v392 = vunpack.c.0.s8 %v391
      %v393 = vlaneseq
      %v394 = vshrl.u32 %v393, 7
      %v395 = vsub.s32 %v392, %v394
      %v396 = vrot.slane %v380, %v395
      %v398 = vunpack.c.l.s4 1966171168
      %v399 = vunpack.c.0.s8 %v398
      %v400 = vlaneseq
      %v401 = vshrl.u32 %v400, 7
      %v402 = vsub.s32 %v399, %v401
      %v403 = vrot.slane %v387, %v402
      %v405 = vunpack.c.l.s4 1966171168
      %v406 = vunpack.c.0.s8 %v405
      %v407 = vlaneseq
      %v408 = vshrl.u32 %v407, 7
      %v409 = vsub.s32 %v406, %v408
      %v410 = vrot.slane %v388, %v409
      %v412 = vunpack.c.l.s4 1966171168
      %v413 = vunpack.c.0.s8 %v412
      %v414 = vlaneseq
      %v415 = vshrl.u32 %v414, 7
      %v416 = vsub.s32 %v413, %v415
      %v417 = vrot.slane %v389, %v416
      %v418 = vcombine.high %v396, %v396
      %v419 = vcombine.high %v403, %v403
      %v420 = vcombine.high %v410, %v410
      %v421 = vcombine.high %v417, %v417
      %v422 = vld [vmem:[%s288] sm:$0xf]
      %v423 = vlaneseq
      %v424 = vshrl.u32 %v423, 7
      %v425 = vsub.s32 0, %v424
      %v426 = vrot.slane %v396, %v425
      %v427 = vlaneseq
      %v428 = vshrl.u32 %v427, 7
      %v429 = vsub.s32 0, %v428
      %v430 = vrot.slane %v410, %v429
      %v431 = vlaneseq
      %v432 = vshrl.u32 %v431, 7
      %v433 = vsub.s32 0, %v432
      %v434 = vrot.slane %v418, %v433
      %v435 = vlaneseq
      %v436 = vshrl.u32 %v435, 7
      %v437 = vsub.s32 0, %v436
      %v438 = vrot.slane %v420, %v437
      %v439 = vlaneseq
      %v440 = vshrl.u32 %v439, 7
      %v441 = vsub.s32 0, %v440
      %v442 = vrot.slane %v403, %v441
      %v443 = vlaneseq
      %v444 = vshrl.u32 %v443, 7
      %v445 = vsub.s32 0, %v444
      %v446 = vrot.slane %v417, %v445
      %v447 = vlaneseq
      %v448 = vshrl.u32 %v447, 7
      %v449 = vsub.s32 0, %v448
      %v450 = vrot.slane %v419, %v449
      %v451 = vlaneseq
      %v452 = vshrl.u32 %v451, 7
      %v453 = vsub.s32 0, %v452
      %v454 = vrot.slane %v421, %v453
      %v463 = vadd.f32 %v426, %v422
      %v464 = vadd.f32 %v430, %v422
      %v465 = vadd.f32 %v434, %v422
      %v466 = vadd.f32 %v438, %v422
      %v467 = vadd.f32 %v442, %v422
      %v468 = vadd.f32 %v446, %v422
      %v469 = vadd.f32 %v450, %v422
      %v470 = vadd.f32 %v454, %v422
      %v471 = vmax.f32 %v463, 0.0
      %v472 = vmax.f32 %v464, 0.0
      %v473 = vmax.f32 %v465, 0.0
      %v474 = vmax.f32 %v466, 0.0
      %v475 = vmax.f32 %v467, 0.0
      %v476 = vmax.f32 %v468, 0.0
      %v477 = vmax.f32 %v469, 0.0
      %v478 = vmax.f32 %v470, 0.0
      %v479 = vld [vmem:[%s3] sm:$0xff]
      %v480 = vld [vmem:[%s3 + $0x8] sm:$0xff]
      %v481 = vld [vmem:[%s3 + $0x10] sm:$0xff]
      %v482 = vld [vmem:[%s3 + $0x18] sm:$0xff]
      %v483 = vld [vmem:[%s4] sm:$0x1]
      %v485 = vlaneseq
      %v486 = vshrl.u32 %v485, 7
      %v487 = vsub.s32 0, %v486
      %v488 = vrot.slane %v483, %v487
      %v498 = vcombine.low %v471, %v472
      %v499 = vcombine.low %v473, %v474
      %v500 = vcombine.low %v475, %v476
      %v501 = vcombine.low %v477, %v478
      %v502 = vsel %vm298, %v498, 0
      %v504 = vsel %vm298, %v499, 0
      %v506 = vsel %vm298, %v500, 0
      %v508 = vsel %vm298, %v501, 0
      %510 = vmatprep.subr.mxu0 0.0
      %511 = vmatpush1.msra.mxu0 %v479
      %512 = vmatprep.subr.mxu0 0.0
      %513 = vmatpush1.msra.mxu0 %v480
      %514 = vmatprep.subr.mxu0 0.0
      %515 = vmatpush1.msra.mxu0 %v481
      %516 = vmatprep.subr.mxu0 0.0
      %517 = vmatpush1.msra.mxu0 %v482
      %518 = vmatprep.subr.mxu0 0.0
      %519 = vmatpush1.msra.mxu0 0.0
      %520 = vmatprep.subr.mxu0 0.0
      %521 = vmatpush1.msra.mxu0 0.0
      %522 = vmatprep.subr.mxu0 0.0
      %523 = vmatpush1.msra.mxu0 0.0
      %524 = vmatprep.subr.mxu0 0.0
      %525 = vmatpush1.msra.mxu0 0.0
      %526 = vmatprep.subr.mxu0 0.0
      %527 = vmatpush1.msra.mxu0 0.0
      %528 = vmatprep.subr.mxu0 0.0
      %529 = vmatpush1.msra.mxu0 0.0
      %530 = vmatprep.subr.mxu0 0.0
      %531 = vmatpush1.msra.mxu0 0.0
      %532 = vmatprep.subr.mxu0 0.0
      %533 = vmatpush1.msra.mxu0 0.0
      %534 = vmatprep.subr.mxu0 0.0
      %535 = vmatpush1.msra.mxu0 0.0
      %536 = vmatprep.subr.mxu0 0.0
      %537 = vmatpush1.msra.mxu0 0.0
      %538 = vmatprep.subr.mxu0 0.0
      %539 = vmatpush1.msra.mxu0 0.0
      %540 = vmatprep.subr.mxu0 0.0
      %541 = vmatpush1.msra.mxu0 0.0
      %542 = vmatprep.subr.mxu0 0.0
      %543 = vmatpush1.msra.mxu0 0.0
      %544 = vmatprep.subr.mxu0 0.0
      %545 = vmatpush1.msra.mxu0 0.0
      %546 = vmatprep.subr.mxu0 0.0
      %547 = vmatpush1.msra.mxu0 0.0
      %548 = vmatprep.subr.mxu0 0.0
      %549 = vmatpush1.msra.mxu0 0.0
      %550 = vmatprep.subr.mxu0 0.0
      %551 = vmatpush1.msra.mxu0 0.0
      %552 = vmatprep.subr.mxu0 0.0
      %553 = vmatpush1.msra.mxu0 0.0
      %554 = vmatprep.subr.mxu0 0.0
      %555 = vmatpush1.msra.mxu0 0.0
      %556 = vmatprep.subr.mxu0 0.0
      %557 = vmatpush1.msra.mxu0 0.0
      %558 = vmatprep.subr.mxu0 0.0
      %559 = vmatpush1.msra.mxu0 0.0
      %560 = vmatprep.subr.mxu0 0.0
      %561 = vmatpush1.msra.mxu0 0.0
      %562 = vmatprep.subr.mxu0 0.0
      %563 = vmatpush1.msra.mxu0 0.0
      %564 = vmatprep.subr.mxu0 0.0
      %565 = vmatpush1.msra.mxu0 0.0
      %566 = vmatprep.subr.mxu0 0.0
      %567 = vmatpush1.msra.mxu0 0.0
      %568 = vmatprep.subr.mxu0 0.0
      %569 = vmatpush1.msra.mxu0 0.0
      %570 = vmatprep.subr.mxu0 0.0
      %571 = vmatpush1.msra.mxu0 0.0
      %572 = vmatprep.subr.mxu0 0.0
      %573 = vmatpush1.msra.mxu0 0.0
      %574 = vmatprep.mubr.f32.mxu0 0.0
      %575 = vmatmul.mubr.f32.gmra.mrb[0].mxu0 %v502
      %v576 = vpop.f32.mrb[0].mxu0
      %v577 = vadd.f32 %v488, %v576
      %v578 = vpop.f32.mrb[0].mxu0
      %579 = vmatprep.mubr.f32.mxu0 0.0
      %580 = vmatmul.mubr.f32.gmra.mrb[0].mxu0 %v504
      %v581 = vpop.f32.mrb[0].mxu0
      %v582 = vadd.f32 %v488, %v581
      %v583 = vpop.f32.mrb[0].mxu0
      %584 = vmatprep.mubr.f32.mxu0 0.0
      %585 = vmatmul.mubr.f32.gmra.mrb[0].mxu0 %v506
      %v586 = vpop.f32.mrb[0].mxu0
      %v587 = vadd.f32 %v488, %v586
      %v588 = vpop.f32.mrb[0].mxu0
      %589 = vmatprep.mubr.f32.mxu0 0.0
      %590 = vmatmul.mubr.f32.gmra.mrb[0].mxu0 %v508
      %v591 = vpop.f32.mrb[0].mxu0
      %v592 = vadd.f32 %v488, %v591
      %v593 = vpop.f32.mrb[0].mxu0
      %594 = vdwg.mxu0
      %v595 = vmax.f32 %v577, 0.0
      %v596 = vmax.f32 %v582, 0.0
      %v597 = vmax.f32 %v587, 0.0
      %v598 = vmax.f32 %v592, 0.0
      %v603 = vcombine.high %v595, %v595
      %v604 = vcombine.high %v596, %v596
      %v605 = vcombine.high %v597, %v597
      %v606 = vcombine.high %v598, %v598
      %v611 = vld [vmem:[%s5] sm:$0x1]
      %v613 = vlaneseq
      %v614 = vshrl.u32 %v613, 7
      %v615 = vsub.s32 0, %v614
      %v616 = vrot.slane %v611, %v615
      %v618 = vmul.f32 %v595, %v616
      %v619 = vmul.f32 %v603, %v616
      %v620 = vmul.f32 %v596, %v616
      %v621 = vmul.f32 %v604, %v616
      %v622 = vmul.f32 %v597, %v616
      %v623 = vmul.f32 %v605, %v616
      %v624 = vmul.f32 %v598, %v616
      %v625 = vmul.f32 %v606, %v616
      %vm626 = vcmask 257024
      %v627 = vsel %vm626, %v618, 0.0
      %628 = vadd.xlane.f32.xlu0 %v627
      %v629 = vpop.xlane.xlu0 %628
      %v630 = vsel %vm626, %v619, 0.0
      %631 = vadd.xlane.f32.xlu0 %v630
      %v632 = vpop.xlane.xlu0 %631
      %v633 = vsel %vm626, %v620, 0.0
      %634 = vadd.xlane.f32.xlu0 %v633
      %v635 = vpop.xlane.xlu0 %634
      %v636 = vsel %vm626, %v621, 0.0
      %637 = vadd.xlane.f32.xlu0 %v636
      %v638 = vpop.xlane.xlu0 %637
      %v639 = vsel %vm626, %v622, 0.0
      %640 = vadd.xlane.f32.xlu0 %v639
      %v641 = vpop.xlane.xlu0 %640
      %v642 = vsel %vm626, %v623, 0.0
      %643 = vadd.xlane.f32.xlu0 %v642
      %v644 = vpop.xlane.xlu0 %643
      %v645 = vsel %vm626, %v624, 0.0
      %646 = vadd.xlane.f32.xlu0 %v645
      %v647 = vpop.xlane.xlu0 %646
      %v648 = vsel %vm626, %v625, 0.0
      %649 = vadd.xlane.f32.xlu0 %v648
      %v650 = vpop.xlane.xlu0 %649
      %v651 = vld [vmem:[#allocation2] sm:$0x1]
      %v653 = vlaneseq
      %v654 = vshrl.u32 %v653, 7
      %v655 = vsub.s32 0, %v654
      %v656 = vrot.slane %v651, %v655
      %657 = vset.pattern.permute.xlu0 0
      %658 = vperm.xlu0 %657, %v656
      %v659 = vpop.permute.xlu0 %658
      %v661 = vadd.f32 %v629, %v659
      %v662 = vadd.f32 %v632, %v659
      %v663 = vadd.f32 %v635, %v659
      %v664 = vadd.f32 %v638, %v659
      %v665 = vadd.f32 %v641, %v659
      %v666 = vadd.f32 %v644, %v659
      %v667 = vadd.f32 %v647, %v659
      %v668 = vadd.f32 %v650, %v659
      %v677 = vlaneseq
      %v678 = vand.u32 %v677, 127
      %v679 = vlaneseq
      %v680 = vshrl.u32 %v679, 7
      %v681 = vsub.s32 %v678, %v680
      %v682 = vrot.slane %v661, %v681
      %v683 = vlaneseq
      %v684 = vshrl.u32 %v683, 7
      %v685 = vsub.s32 %v678, %v684
      %v686 = vrot.slane %v662, %v685
      %v687 = vlaneseq
      %v688 = vshrl.u32 %v687, 7
      %v689 = vsub.s32 %v678, %v688
      %v690 = vrot.slane %v663, %v689
      %v691 = vlaneseq
      %v692 = vshrl.u32 %v691, 7
      %v693 = vsub.s32 %v678, %v692
      %v694 = vrot.slane %v664, %v693
      %v695 = vlaneseq
      %v696 = vshrl.u32 %v695, 7
      %v697 = vsub.s32 %v678, %v696
      %v698 = vrot.slane %v665, %v697
      %v699 = vlaneseq
      %v700 = vshrl.u32 %v699, 7
      %v701 = vsub.s32 %v678, %v700
      %v702 = vrot.slane %v666, %v701
      %v703 = vlaneseq
      %v704 = vshrl.u32 %v703, 7
      %v705 = vsub.s32 %v678, %v704
      %v706 = vrot.slane %v667, %v705
      %v707 = vlaneseq
      %v708 = vshrl.u32 %v707, 7
      %v709 = vsub.s32 %v678, %v708
      %v710 = vrot.slane %v668, %v709
      %vm711 = vcmask 1041409
      %v712 = vsel %vm711, %v686, %v682
      %vm713 = vcmask 1042434
      %v714 = vsel %vm713, %v690, %v712
      %vm715 = vcmask 1043459
      %v716 = vsel %vm715, %v694, %v714
      %vm717 = vcmask 1044484
      %v718 = vsel %vm717, %v698, %v716
      %vm719 = vcmask 1045509
      %v720 = vsel %vm719, %v702, %v718
      %vm721 = vcmask 1046534
      %v722 = vsel %vm721, %v706, %v720
      %vm723 = vcmask 1047559
      %v724 = vsel %vm723, %v710, %v722
      %vm726 = vcmask 31744
      %727 = vst.msk [vmem:[%s292] sm:$0xff] %vm726, %v724
      %p728 = scmp.lt.s32.totalorder %s20, 1
      %s729 = scalar_select %p728, %s20, 1
      %s730 = smul.addr %s729, 8
      %s731 = scalar_lea.vmem %s7, %s730
      // Predicated region
      $region49: #{kfnet_forward.5} parent=47 // pred_check
        %p732 = pneg %p195
      $region50: #{kfnet_forward.5} parent=47 // pred_check_branch
        %734 = sbr.rel (%p732) target = $region52
      $region51: #{kfnet_forward.5} parent=47 // pred_region
        _
      $region52: #{kfnet_forward.5} parent=47 // pred_fallthru
        _
    $region48: #{kfnet_forward.5} parent=5 // pred_fallthru
      _
    %p735 = scmp.le.s32.totalorder 2, %s15
    // Predicated region
    $region53: #{kfnet_forward.5} parent=5 // pred_check
      %p736 = pneg %p735
    $region54: #{kfnet_forward.5} parent=5 // pred_check_branch
      %738 = sbr.rel (%p736) target = $region56
    $region55: #{kfnet_forward.5} parent=5 // pred_region
      %s739 = ssub.s32 %s15, 2
      // Predicated region
      $region57: #{kfnet_forward.5} parent=55 // pred_check
        %p740 = pneg %p201
      $region58: #{kfnet_forward.5} parent=55 // pred_check_branch
        %742 = sbr.rel (%p740) target = $region60
      $region59: #{kfnet_forward.5} parent=55 // pred_region
        %p743 = scmp.lt.s32.totalorder %s21, 1
        %s744 = scalar_select %p743, %s21, 1
        %s745 = smul.addr %s744, 8
        %s746 = scalar_lea.vmem %s7, %s745
      $region60: #{kfnet_forward.5} parent=55 // pred_fallthru
        _
    $region56: #{kfnet_forward.5} parent=5 // pred_fallthru
      _
  $region6: #{kfnet_forward.5} parent=0 // loop_footer
    %s19 = sadd.s32 1, %s15
  $region7: #{kfnet_forward.5} parent=0 // loop_footer_branch
    %14 = sbr.rel target = $region3
  $region8: #{kfnet_forward.5} parent=0 // loop_exit
    _

// kernel: kfnet_forward.4
$region0: #{kfnet_forward.4}
  #allocation0 [shape = 'u32[]', space=smem, size = 0x4, offset = 0x4, fixed_abs, tag = 'smem constant byte address 0x4 - core index']
  #allocation1 [shape = 'u32[144,128]{1,0:T(1,128)}', space=vmem, size = 0x12000, scoped, tag = 'internal scratch']
  %s0 = inlined_call_operand.vmem [shape: f32[2,8,32], index: 0, kind: input, shape index: {}]
  %s1 = inlined_call_operand.vmem [shape: f32[32,32], index: 1, kind: input, shape index: {}]
  %s2 = inlined_call_operand.vmem [shape: f32[32,32], index: 2, kind: input, shape index: {}]
  %s3 = inlined_call_operand.vmem [shape: f32[128,32], index: 3, kind: input, shape index: {}]
  %s4 = inlined_call_operand.vmem [shape: f32[2,1,32], index: 4, kind: input, shape index: {}]
  %s5 = inlined_call_operand.vmem [shape: f32[2,1,32], index: 5, kind: input, shape index: {}]
  %s6 = inlined_call_operand.vmem [shape: bf16[2,32,32], index: 6, kind: input, shape index: {}]
  %s7 = inlined_call_operand.vmem [shape: f32[2,1,32], index: 7, kind: input, shape index: {}]
  %s8 = inlined_call_operand.vmem [shape: bf16[2,32,32], index: 8, kind: input, shape index: {}]
  %s9 = inlined_call_operand.vmem [shape: f32[2,1,32], index: 9, kind: input, shape index: {}]
  %s10 = inlined_call_operand.vmem [shape: bf16[2,32,32], index: 10, kind: input, shape index: {}]
  %s11 = inlined_call_operand.vmem [shape: f32[2,1,32], index: 11, kind: input, shape index: {}]
  %s12 = inlined_call_operand.vmem [shape: bf16[2,32,128], index: 12, kind: input, shape index: {}]
  %s13 = inlined_call_operand.vmem [shape: f32[2,1,128], index: 13, kind: input, shape index: {}]
  %s14 = inlined_call_operand.vmem [shape: bf16[2,32,32], index: 14, kind: input, shape index: {}]
  %s15 = inlined_call_operand.vmem [shape: f32[2,1,32], index: 15, kind: input, shape index: {}]
  %s16 = inlined_call_operand.vmem [shape: f32[2,1,32], index: 16, kind: input, shape index: {}]
  %s17 = inlined_call_operand.vmem [shape: f32[2,1,32], index: 17, kind: input, shape index: {}]
  %s18 = inlined_call_operand.vmem [shape: bf16[2,32,128], index: 18, kind: input, shape index: {}]
  %s19 = inlined_call_operand.vmem [shape: f32[2,1,128], index: 19, kind: input, shape index: {}]
  %s20 = inlined_call_operand.vmem [shape: bf16[2,128,32], index: 20, kind: input, shape index: {}]
  %s21 = inlined_call_operand.vmem [shape: f32[2,1,32], index: 21, kind: input, shape index: {}]
  %s22 = inlined_call_operand.vmem [shape: f32[32,32], index: 22, kind: input, shape index: {}]
  %s23 = inlined_call_operand.vmem [shape: f32[1,32], index: 23, kind: input, shape index: {}]
  %s24 = inlined_call_operand.vmem [shape: f32[2,8,32], index: 24, kind: output, shape index: {}]
  %s25 = sld [smem:[#allocation0]]
  $region141: #{kfnet_forward.4} parent=0
    _
  %s27 = ssub.s32 1, %s25
  %s28 = scalar_select 0, %s27, %s25
  loop: start=0, step=1, limit=6
  $region2: #{kfnet_forward.4} parent=0 // loop_pre_header
    _
  $region3: #{kfnet_forward.4} parent=0 // loop_header
    %s30 = sphi 0, %s34
    %p31 = scmp.ge.s32.totalorder %s30, 6
    %s37 = sphi 0, %s49
    %s38 = sphi 0, %s45
    %s39 = sphi 0, %s37
    %s40 = sphi 0, %s38
    %s41 = sphi 0, %s39
    %s42 = sphi 0, %s40
    %s52 = sphi 0, %s54
    %s55 = sphi 0, %s52
    %s56 = sphi 0, %s55
    %s72 = sphi 0, %s56
    %s76 = sphi 0, %s76
    %s78 = sphi 0, %s76
    %s79 = sphi 0, %s78
    %s93 = sphi 0, %s79
    %s97 = sphi 0, %s97
    %s99 = sphi 0, %s97
    %s100 = sphi 0, %s99
    %s114 = sphi 0, %s100
    %s118 = sphi 0, %s118
    %s120 = sphi 0, %s118
    %s121 = sphi 0, %s120
    %s135 = sphi 0, %s121
    %s141 = sphi 0, %s143
    %s144 = sphi 0, %s141
    %s145 = sphi 0, %s144
    %s161 = sphi 0, %s145
    %s167 = sphi 0, %s169
    %s170 = sphi 0, %s167
    %s171 = sphi 0, %s170
    %s187 = sphi 0, %s171
    %s193 = sphi 0, %s195
    %s196 = sphi 0, %s193
    %s197 = sphi 0, %s196
    %s213 = sphi 0, %s197
    %s219 = sphi 0, %s221
    %s222 = sphi 0, %s219
    %s223 = sphi 0, %s222
    %s239 = sphi 0, %s223
    %s245 = sphi 0, %s247
    %s248 = sphi 0, %s245
    %s249 = sphi 0, %s248
    %s265 = sphi 0, %s249
    %s271 = sphi 0, %s273
    %s274 = sphi 0, %s271
    %s275 = sphi 0, %s274
    %s291 = sphi 0, %s275
    %s297 = sphi 0, %s299
    %s300 = sphi 0, %s297
    %s301 = sphi 0, %s300
    %s317 = sphi 0, %s301
    %s323 = sphi 0, %s325
    %s326 = sphi 0, %s323
    %s327 = sphi 0, %s326
    %s343 = sphi 0, %s327
    %s349 = sphi 0, %s351
    %s352 = sphi 0, %s349
    %s353 = sphi 0, %s352
    %s369 = sphi 0, %s353
    %s375 = sphi 0, %s377
    %s378 = sphi 0, %s375
    %s379 = sphi 0, %s378
    %s395 = sphi 0, %s379
    %s401 = sphi 0, %s403
    %s404 = sphi 0, %s401
    %s405 = sphi 0, %s404
    %s421 = sphi 0, %s405
    %s427 = sphi 0, %s429
    %s430 = sphi 0, %s427
    %s431 = sphi 0, %s430
    %s447 = sphi 0, %s431
    %s453 = sphi 0, %s455
    %s456 = sphi 0, %s453
    %s457 = sphi 0, %s456
    %s473 = sphi 0, %s457
    %s479 = sphi 0, %s481
    %s482 = sphi 0, %s479
    %s483 = sphi 0, %s482
    %s499 = sphi 0, %s483
    %s505 = sphi 0, %s507
    %s508 = sphi 0, %s505
    %s509 = sphi 0, %s508
    %s525 = sphi 0, %s509
    %s531 = sphi 0, %s533
    %s534 = sphi 0, %s531
    %s535 = sphi 0, %s534
    %s551 = sphi 0, %s535
    %s557 = sphi 0, %s559
    %s560 = sphi 0, %s557
    %s561 = sphi 0, %s560
    %s577 = sphi 0, %s561
    %s583 = sphi 0, %s585
    %s586 = sphi 0, %s583
    %s587 = sphi 0, %s586
    %s603 = sphi 0, %s587
    %s607 = sphi 0, %s607
    %s609 = sphi 0, %s607
    %s610 = sphi 0, %s609
    %s624 = sphi 0, %s610
    %s628 = sphi 0, %s628
    %s630 = sphi 0, %s628
    %s631 = sphi 0, %s630
    %s645 = sphi 0, %s631
    %s651 = sphi 0, %s653
    %s654 = sphi 0, %s651
    %s655 = sphi 0, %s654
    %s671 = sphi 0, %s655
  $region4: #{kfnet_forward.4} parent=0 // loop_header_branch
    %33 = sbr.rel (%p31) target = $region8
  $region5: #{kfnet_forward.4} parent=0 // loop_body
    %s35 = ssub.s32 %s30, 1
    %s36 = ssub.s32 %s30, 2
    %s43 = sadd.s32 1, %s38
    %p44 = scmp.ge.s32.totalorder %s43, 2
    %s45 = scalar_select %p44, 0, %s43
    %s46 = sadd.s32 1, %s37
    %s47 = scalar_select %p44, %s46, %s37
    %p48 = scmp.ge.s32.totalorder %s47, 2
    %s49 = scalar_select %p48, 0, %s47
    %s50 = ssub.s32 %s37, %s49
    %p51 = scmp.eq.s32.totalorder %s50, 0
    %s53 = sadd.s32 %s52, 1
    %s54 = scalar_select %p51, %s52, %s53
    %p57 = pneg %p51
    %p58 = scmp.eq.s32.totalorder %s30, 3
    %p59 = por %p57, %p58
    %p60 = scmp.ne.s32.totalorder %s52, %s55
    %p61 = scmp.eq.s32.totalorder %s30, 0
    %p62 = por %p60, %p61
    %p63 = scmp.ne.s32.totalorder %s52, %s55
    %p64 = scmp.eq.s32.totalorder %s35, 3
    %p65 = por %p63, %p64
    %p66 = scmp.ne.s32.totalorder %s55, %s56
    %p67 = scmp.eq.s32.totalorder %s35, 0
    %p68 = por %p66, %p67
    %p69 = scmp.ne.s32.totalorder %s55, %s56
    %p70 = scmp.eq.s32.totalorder %s36, 3
    %p71 = por %p69, %p70
    %p73 = scmp.ne.s32.totalorder %s56, %s72
    %p74 = scmp.eq.s32.totalorder %s36, 0
    %p75 = por %p73, %p74
    %s77 = sadd.s32 %s76, 1
    %p80 = scmp.eq.s32.totalorder %s30, 3
    %p81 = scmp.ne.s32.totalorder %s76, %s78
    %p82 = scmp.eq.s32.totalorder %s30, 0
    %p83 = por %p81, %p82
    %p84 = scmp.ne.s32.totalorder %s76, %s78
    %p85 = scmp.eq.s32.totalorder %s35, 3
    %p86 = por %p84, %p85
    %p87 = scmp.ne.s32.totalorder %s78, %s79
    %p88 = scmp.eq.s32.totalorder %s35, 0
    %p89 = por %p87, %p88
    %p90 = scmp.ne.s32.totalorder %s78, %s79
    %p91 = scmp.eq.s32.totalorder %s36, 3
    %p92 = por %p90, %p91
    %p94 = scmp.ne.s32.totalorder %s79, %s93
    %p95 = scmp.eq.s32.totalorder %s36, 0
    %p96 = por %p94, %p95
    %s98 = sadd.s32 %s97, 1
    %p101 = scmp.eq.s32.totalorder %s30, 3
    %p102 = scmp.ne.s32.totalorder %s97, %s99
    %p103 = scmp.eq.s32.totalorder %s30, 0
    %p104 = por %p102, %p103
    %p105 = scmp.ne.s32.totalorder %s97, %s99
    %p106 = scmp.eq.s32.totalorder %s35, 3
    %p107 = por %p105, %p106
    %p108 = scmp.ne.s32.totalorder %s99, %s100
    %p109 = scmp.eq.s32.totalorder %s35, 0
    %p110 = por %p108, %p109
    %p111 = scmp.ne.s32.totalorder %s99, %s100
    %p112 = scmp.eq.s32.totalorder %s36, 3
    %p113 = por %p111, %p112
    %p115 = scmp.ne.s32.totalorder %s100, %s114
    %p116 = scmp.eq.s32.totalorder %s36, 0
    %p117 = por %p115, %p116
    %s119 = sadd.s32 %s118, 1
    %p122 = scmp.eq.s32.totalorder %s30, 3
    %p123 = scmp.ne.s32.totalorder %s118, %s120
    %p124 = scmp.eq.s32.totalorder %s30, 0
    %p125 = por %p123, %p124
    %p126 = scmp.ne.s32.totalorder %s118, %s120
    %p127 = scmp.eq.s32.totalorder %s35, 3
    %p128 = por %p126, %p127
    %p129 = scmp.ne.s32.totalorder %s120, %s121
    %p130 = scmp.eq.s32.totalorder %s35, 0
    %p131 = por %p129, %p130
    %p132 = scmp.ne.s32.totalorder %s120, %s121
    %p133 = scmp.eq.s32.totalorder %s36, 3
    %p134 = por %p132, %p133
    %p136 = scmp.ne.s32.totalorder %s121, %s135
    %p137 = scmp.eq.s32.totalorder %s36, 0
    %p138 = por %p136, %p137
    %s139 = ssub.s32 %s38, %s45
    %p140 = scmp.eq.s32.totalorder %s139, 0
    %s142 = sadd.s32 %s141, 1
    %s143 = scalar_select %p140, %s141, %s142
    %p146 = pneg %p140
    %p147 = scmp.eq.s32.totalorder %s30, 3
    %p148 = por %p146, %p147
    %p149 = scmp.ne.s32.totalorder %s141, %s144
    %p150 = scmp.eq.s32.totalorder %s30, 0
    %p151 = por %p149, %p150
    %p152 = scmp.ne.s32.totalorder %s141, %s144
    %p153 = scmp.eq.s32.totalorder %s35, 3
    %p154 = por %p152, %p153
    %p155 = scmp.ne.s32.totalorder %s144, %s145
    %p156 = scmp.eq.s32.totalorder %s35, 0
    %p157 = por %p155, %p156
    %p158 = scmp.ne.s32.totalorder %s144, %s145
    %p159 = scmp.eq.s32.totalorder %s36, 3
    %p160 = por %p158, %p159
    %p162 = scmp.ne.s32.totalorder %s145, %s161
    %p163 = scmp.eq.s32.totalorder %s36, 0
    %p164 = por %p162, %p163
    %s165 = ssub.s32 %s38, %s45
    %p166 = scmp.eq.s32.totalorder %s165, 0
    %s168 = sadd.s32 %s167, 1
    %s169 = scalar_select %p166, %s167, %s168
    %p172 = pneg %p166
    %p173 = scmp.eq.s32.totalorder %s30, 3
    %p174 = por %p172, %p173
    %p175 = scmp.ne.s32.totalorder %s167, %s170
    %p176 = scmp.eq.s32.totalorder %s30, 0
    %p177 = por %p175, %p176
    %p178 = scmp.ne.s32.totalorder %s167, %s170
    %p179 = scmp.eq.s32.totalorder %s35, 3
    %p180 = por %p178, %p179
    %p181 = scmp.ne.s32.totalorder %s170, %s171
    %p182 = scmp.eq.s32.totalorder %s35, 0
    %p183 = por %p181, %p182
    %p184 = scmp.ne.s32.totalorder %s170, %s171
    %p185 = scmp.eq.s32.totalorder %s36, 3
    %p186 = por %p184, %p185
    %p188 = scmp.ne.s32.totalorder %s171, %s187
    %p189 = scmp.eq.s32.totalorder %s36, 0
    %p190 = por %p188, %p189
    %s191 = ssub.s32 %s38, %s45
    %p192 = scmp.eq.s32.totalorder %s191, 0
    %s194 = sadd.s32 %s193, 1
    %s195 = scalar_select %p192, %s193, %s194
    %p198 = pneg %p192
    %p199 = scmp.eq.s32.totalorder %s30, 3
    %p200 = por %p198, %p199
    %p201 = scmp.ne.s32.totalorder %s193, %s196
    %p202 = scmp.eq.s32.totalorder %s30, 0
    %p203 = por %p201, %p202
    %p204 = scmp.ne.s32.totalorder %s193, %s196
    %p205 = scmp.eq.s32.totalorder %s35, 3
    %p206 = por %p204, %p205
    %p207 = scmp.ne.s32.totalorder %s196, %s197
    %p208 = scmp.eq.s32.totalorder %s35, 0
    %p209 = por %p207, %p208
    %p210 = scmp.ne.s32.totalorder %s196, %s197
    %p211 = scmp.eq.s32.totalorder %s36, 3
    %p212 = por %p210, %p211
    %p214 = scmp.ne.s32.totalorder %s197, %s213
    %p215 = scmp.eq.s32.totalorder %s36, 0
    %p216 = por %p214, %p215
    %s217 = ssub.s32 %s38, %s45
    %p218 = scmp.eq.s32.totalorder %s217, 0
    %s220 = sadd.s32 %s219, 1
    %s221 = scalar_select %p218, %s219, %s220
    %p224 = pneg %p218
    %p225 = scmp.eq.s32.totalorder %s30, 3
    %p226 = por %p224, %p225
    %p227 = scmp.ne.s32.totalorder %s219, %s222
    %p228 = scmp.eq.s32.totalorder %s30, 0
    %p229 = por %p227, %p228
    %p230 = scmp.ne.s32.totalorder %s219, %s222
    %p231 = scmp.eq.s32.totalorder %s35, 3
    %p232 = por %p230, %p231
    %p233 = scmp.ne.s32.totalorder %s222, %s223
    %p234 = scmp.eq.s32.totalorder %s35, 0
    %p235 = por %p233, %p234
    %p236 = scmp.ne.s32.totalorder %s222, %s223
    %p237 = scmp.eq.s32.totalorder %s36, 3
    %p238 = por %p236, %p237
    %p240 = scmp.ne.s32.totalorder %s223, %s239
    %p241 = scmp.eq.s32.totalorder %s36, 0
    %p242 = por %p240, %p241
    %s243 = ssub.s32 %s38, %s45
    %p244 = scmp.eq.s32.totalorder %s243, 0
    %s246 = sadd.s32 %s245, 1
    %s247 = scalar_select %p244, %s245, %s246
    %p250 = pneg %p244
    %p251 = scmp.eq.s32.totalorder %s30, 3
    %p252 = por %p250, %p251
    %p253 = scmp.ne.s32.totalorder %s245, %s248
    %p254 = scmp.eq.s32.totalorder %s30, 0
    %p255 = por %p253, %p254
    %p256 = scmp.ne.s32.totalorder %s245, %s248
    %p257 = scmp.eq.s32.totalorder %s35, 3
    %p258 = por %p256, %p257
    %p259 = scmp.ne.s32.totalorder %s248, %s249
    %p260 = scmp.eq.s32.totalorder %s35, 0
    %p261 = por %p259, %p260
    %p262 = scmp.ne.s32.totalorder %s248, %s249
    %p263 = scmp.eq.s32.totalorder %s36, 3
    %p264 = por %p262, %p263
    %p266 = scmp.ne.s32.totalorder %s249, %s265
    %p267 = scmp.eq.s32.totalorder %s36, 0
    %p268 = por %p266, %p267
    %s269 = ssub.s32 %s38, %s45
    %p270 = scmp.eq.s32.totalorder %s269, 0
    %s272 = sadd.s32 %s271, 1
    %s273 = scalar_select %p270, %s271, %s272
    %p276 = pneg %p270
    %p277 = scmp.eq.s32.totalorder %s30, 3
    %p278 = por %p276, %p277
    %p279 = scmp.ne.s32.totalorder %s271, %s274
    %p280 = scmp.eq.s32.totalorder %s30, 0
    %p281 = por %p279, %p280
    %p282 = scmp.ne.s32.totalorder %s271, %s274
    %p283 = scmp.eq.s32.totalorder %s35, 3
    %p284 = por %p282, %p283
    %p285 = scmp.ne.s32.totalorder %s274, %s275
    %p286 = scmp.eq.s32.totalorder %s35, 0
    %p287 = por %p285, %p286
    %p288 = scmp.ne.s32.totalorder %s274, %s275
    %p289 = scmp.eq.s32.totalorder %s36, 3
    %p290 = por %p288, %p289
    %p292 = scmp.ne.s32.totalorder %s275, %s291
    %p293 = scmp.eq.s32.totalorder %s36, 0
    %p294 = por %p292, %p293
    %s295 = ssub.s32 %s38, %s45
    %p296 = scmp.eq.s32.totalorder %s295, 0
    %s298 = sadd.s32 %s297, 1
    %s299 = scalar_select %p296, %s297, %s298
    %p302 = pneg %p296
    %p303 = scmp.eq.s32.totalorder %s30, 3
    %p304 = por %p302, %p303
    %p305 = scmp.ne.s32.totalorder %s297, %s300
    %p306 = scmp.eq.s32.totalorder %s30, 0
    %p307 = por %p305, %p306
    %p308 = scmp.ne.s32.totalorder %s297, %s300
    %p309 = scmp.eq.s32.totalorder %s35, 3
    %p310 = por %p308, %p309
    %p311 = scmp.ne.s32.totalorder %s300, %s301
    %p312 = scmp.eq.s32.totalorder %s35, 0
    %p313 = por %p311, %p312
    %p314 = scmp.ne.s32.totalorder %s300, %s301
    %p315 = scmp.eq.s32.totalorder %s36, 3
    %p316 = por %p314, %p315
    %p318 = scmp.ne.s32.totalorder %s301, %s317
    %p319 = scmp.eq.s32.totalorder %s36, 0
    %p320 = por %p318, %p319
    %s321 = ssub.s32 %s38, %s45
    %p322 = scmp.eq.s32.totalorder %s321, 0
    %s324 = sadd.s32 %s323, 1
    %s325 = scalar_select %p322, %s323, %s324
    %p328 = pneg %p322
    %p329 = scmp.eq.s32.totalorder %s30, 3
    %p330 = por %p328, %p329
    %p331 = scmp.ne.s32.totalorder %s323, %s326
    %p332 = scmp.eq.s32.totalorder %s30, 0
    %p333 = por %p331, %p332
    %p334 = scmp.ne.s32.totalorder %s323, %s326
    %p335 = scmp.eq.s32.totalorder %s35, 3
    %p336 = por %p334, %p335
    %p337 = scmp.ne.s32.totalorder %s326, %s327
    %p338 = scmp.eq.s32.totalorder %s35, 0
    %p339 = por %p337, %p338
    %p340 = scmp.ne.s32.totalorder %s326, %s327
    %p341 = scmp.eq.s32.totalorder %s36, 3
    %p342 = por %p340, %p341
    %p344 = scmp.ne.s32.totalorder %s327, %s343
    %p345 = scmp.eq.s32.totalorder %s36, 0
    %p346 = por %p344, %p345
    %s347 = ssub.s32 %s38, %s45
    %p348 = scmp.eq.s32.totalorder %s347, 0
    %s350 = sadd.s32 %s349, 1
    %s351 = scalar_select %p348, %s349, %s350
    %p354 = pneg %p348
    %p355 = scmp.eq.s32.totalorder %s30, 3
    %p356 = por %p354, %p355
    %p357 = scmp.ne.s32.totalorder %s349, %s352
    %p358 = scmp.eq.s32.totalorder %s30, 0
    %p359 = por %p357, %p358
    %p360 = scmp.ne.s32.totalorder %s349, %s352
    %p361 = scmp.eq.s32.totalorder %s35, 3
    %p362 = por %p360, %p361
    %p363 = scmp.ne.s32.totalorder %s352, %s353
    %p364 = scmp.eq.s32.totalorder %s35, 0
    %p365 = por %p363, %p364
    %p366 = scmp.ne.s32.totalorder %s352, %s353
    %p367 = scmp.eq.s32.totalorder %s36, 3
    %p368 = por %p366, %p367
    %p370 = scmp.ne.s32.totalorder %s353, %s369
    %p371 = scmp.eq.s32.totalorder %s36, 0
    %p372 = por %p370, %p371
    %s373 = ssub.s32 %s38, %s45
    %p374 = scmp.eq.s32.totalorder %s373, 0
    %s376 = sadd.s32 %s375, 1
    %s377 = scalar_select %p374, %s375, %s376
    %p380 = pneg %p374
    %p381 = scmp.eq.s32.totalorder %s30, 3
    %p382 = por %p380, %p381
    %p383 = scmp.ne.s32.totalorder %s375, %s378
    %p384 = scmp.eq.s32.totalorder %s30, 0
    %p385 = por %p383, %p384
    %p386 = scmp.ne.s32.totalorder %s375, %s378
    %p387 = scmp.eq.s32.totalorder %s35, 3
    %p388 = por %p386, %p387
    %p389 = scmp.ne.s32.totalorder %s378, %s379
    %p390 = scmp.eq.s32.totalorder %s35, 0
    %p391 = por %p389, %p390
    %p392 = scmp.ne.s32.totalorder %s378, %s379
    %p393 = scmp.eq.s32.totalorder %s36, 3
    %p394 = por %p392, %p393
    %p396 = scmp.ne.s32.totalorder %s379, %s395
    %p397 = scmp.eq.s32.totalorder %s36, 0
    %p398 = por %p396, %p397
    %s399 = ssub.s32 %s38, %s45
    %p400 = scmp.eq.s32.totalorder %s399, 0
    %s402 = sadd.s32 %s401, 1
    %s403 = scalar_select %p400, %s401, %s402
    %p406 = pneg %p400
    %p407 = scmp.eq.s32.totalorder %s30, 3
    %p408 = por %p406, %p407
    %p409 = scmp.ne.s32.totalorder %s401, %s404
    %p410 = scmp.eq.s32.totalorder %s30, 0
    %p411 = por %p409, %p410
    %p412 = scmp.ne.s32.totalorder %s401, %s404
    %p413 = scmp.eq.s32.totalorder %s35, 3
    %p414 = por %p412, %p413
    %p415 = scmp.ne.s32.totalorder %s404, %s405
    %p416 = scmp.eq.s32.totalorder %s35, 0
    %p417 = por %p415, %p416
    %p418 = scmp.ne.s32.totalorder %s404, %s405
    %p419 = scmp.eq.s32.totalorder %s36, 3
    %p420 = por %p418, %p419
    %p422 = scmp.ne.s32.totalorder %s405, %s421
    %p423 = scmp.eq.s32.totalorder %s36, 0
    %p424 = por %p422, %p423
    %s425 = ssub.s32 %s38, %s45
    %p426 = scmp.eq.s32.totalorder %s425, 0
    %s428 = sadd.s32 %s427, 1
    %s429 = scalar_select %p426, %s427, %s428
    %p432 = pneg %p426
    %p433 = scmp.eq.s32.totalorder %s30, 3
    %p434 = por %p432, %p433
    %p435 = scmp.ne.s32.totalorder %s427, %s430
    %p436 = scmp.eq.s32.totalorder %s30, 0
    %p437 = por %p435, %p436
    %p438 = scmp.ne.s32.totalorder %s427, %s430
    %p439 = scmp.eq.s32.totalorder %s35, 3
    %p440 = por %p438, %p439
    %p441 = scmp.ne.s32.totalorder %s430, %s431
    %p442 = scmp.eq.s32.totalorder %s35, 0
    %p443 = por %p441, %p442
    %p444 = scmp.ne.s32.totalorder %s430, %s431
    %p445 = scmp.eq.s32.totalorder %s36, 3
    %p446 = por %p444, %p445
    %p448 = scmp.ne.s32.totalorder %s431, %s447
    %p449 = scmp.eq.s32.totalorder %s36, 0
    %p450 = por %p448, %p449
    %s451 = ssub.s32 %s38, %s45
    %p452 = scmp.eq.s32.totalorder %s451, 0
    %s454 = sadd.s32 %s453, 1
    %s455 = scalar_select %p452, %s453, %s454
    %p458 = pneg %p452
    %p459 = scmp.eq.s32.totalorder %s30, 3
    %p460 = por %p458, %p459
    %p461 = scmp.ne.s32.totalorder %s453, %s456
    %p462 = scmp.eq.s32.totalorder %s30, 0
    %p463 = por %p461, %p462
    %p464 = scmp.ne.s32.totalorder %s453, %s456
    %p465 = scmp.eq.s32.totalorder %s35, 3
    %p466 = por %p464, %p465
    %p467 = scmp.ne.s32.totalorder %s456, %s457
    %p468 = scmp.eq.s32.totalorder %s35, 0
    %p469 = por %p467, %p468
    %p470 = scmp.ne.s32.totalorder %s456, %s457
    %p471 = scmp.eq.s32.totalorder %s36, 3
    %p472 = por %p470, %p471
    %p474 = scmp.ne.s32.totalorder %s457, %s473
    %p475 = scmp.eq.s32.totalorder %s36, 0
    %p476 = por %p474, %p475
    %s477 = ssub.s32 %s38, %s45
    %p478 = scmp.eq.s32.totalorder %s477, 0
    %s480 = sadd.s32 %s479, 1
    %s481 = scalar_select %p478, %s479, %s480
    %p484 = pneg %p478
    %p485 = scmp.eq.s32.totalorder %s30, 3
    %p486 = por %p484, %p485
    %p487 = scmp.ne.s32.totalorder %s479, %s482
    %p488 = scmp.eq.s32.totalorder %s30, 0
    %p489 = por %p487, %p488
    %p490 = scmp.ne.s32.totalorder %s479, %s482
    %p491 = scmp.eq.s32.totalorder %s35, 3
    %p492 = por %p490, %p491
    %p493 = scmp.ne.s32.totalorder %s482, %s483
    %p494 = scmp.eq.s32.totalorder %s35, 0
    %p495 = por %p493, %p494
    %p496 = scmp.ne.s32.totalorder %s482, %s483
    %p497 = scmp.eq.s32.totalorder %s36, 3
    %p498 = por %p496, %p497
    %p500 = scmp.ne.s32.totalorder %s483, %s499
    %p501 = scmp.eq.s32.totalorder %s36, 0
    %p502 = por %p500, %p501
    %s503 = ssub.s32 %s38, %s45
    %p504 = scmp.eq.s32.totalorder %s503, 0
    %s506 = sadd.s32 %s505, 1
    %s507 = scalar_select %p504, %s505, %s506
    %p510 = pneg %p504
    %p511 = scmp.eq.s32.totalorder %s30, 3
    %p512 = por %p510, %p511
    %p513 = scmp.ne.s32.totalorder %s505, %s508
    %p514 = scmp.eq.s32.totalorder %s30, 0
    %p515 = por %p513, %p514
    %p516 = scmp.ne.s32.totalorder %s505, %s508
    %p517 = scmp.eq.s32.totalorder %s35, 3
    %p518 = por %p516, %p517
    %p519 = scmp.ne.s32.totalorder %s508, %s509
    %p520 = scmp.eq.s32.totalorder %s35, 0
    %p521 = por %p519, %p520
    %p522 = scmp.ne.s32.totalorder %s508, %s509
    %p523 = scmp.eq.s32.totalorder %s36, 3
    %p524 = por %p522, %p523
    %p526 = scmp.ne.s32.totalorder %s509, %s525
    %p527 = scmp.eq.s32.totalorder %s36, 0
    %p528 = por %p526, %p527
    %s529 = ssub.s32 %s38, %s45
    %p530 = scmp.eq.s32.totalorder %s529, 0
    %s532 = sadd.s32 %s531, 1
    %s533 = scalar_select %p530, %s531, %s532
    %p536 = pneg %p530
    %p537 = scmp.eq.s32.totalorder %s30, 3
    %p538 = por %p536, %p537
    %p539 = scmp.ne.s32.totalorder %s531, %s534
    %p540 = scmp.eq.s32.totalorder %s30, 0
    %p541 = por %p539, %p540
    %p542 = scmp.ne.s32.totalorder %s531, %s534
    %p543 = scmp.eq.s32.totalorder %s35, 3
    %p544 = por %p542, %p543
    %p545 = scmp.ne.s32.totalorder %s534, %s535
    %p546 = scmp.eq.s32.totalorder %s35, 0
    %p547 = por %p545, %p546
    %p548 = scmp.ne.s32.totalorder %s534, %s535
    %p549 = scmp.eq.s32.totalorder %s36, 3
    %p550 = por %p548, %p549
    %p552 = scmp.ne.s32.totalorder %s535, %s551
    %p553 = scmp.eq.s32.totalorder %s36, 0
    %p554 = por %p552, %p553
    %s555 = ssub.s32 %s38, %s45
    %p556 = scmp.eq.s32.totalorder %s555, 0
    %s558 = sadd.s32 %s557, 1
    %s559 = scalar_select %p556, %s557, %s558
    %p562 = pneg %p556
    %p563 = scmp.eq.s32.totalorder %s30, 3
    %p564 = por %p562, %p563
    %p565 = scmp.ne.s32.totalorder %s557, %s560
    %p566 = scmp.eq.s32.totalorder %s30, 0
    %p567 = por %p565, %p566
    %p568 = scmp.ne.s32.totalorder %s557, %s560
    %p569 = scmp.eq.s32.totalorder %s35, 3
    %p570 = por %p568, %p569
    %p571 = scmp.ne.s32.totalorder %s560, %s561
    %p572 = scmp.eq.s32.totalorder %s35, 0
    %p573 = por %p571, %p572
    %p574 = scmp.ne.s32.totalorder %s560, %s561
    %p575 = scmp.eq.s32.totalorder %s36, 3
    %p576 = por %p574, %p575
    %p578 = scmp.ne.s32.totalorder %s561, %s577
    %p579 = scmp.eq.s32.totalorder %s36, 0
    %p580 = por %p578, %p579
    %s581 = ssub.s32 %s38, %s45
    %p582 = scmp.eq.s32.totalorder %s581, 0
    %s584 = sadd.s32 %s583, 1
    %s585 = scalar_select %p582, %s583, %s584
    %p588 = pneg %p582
    %p589 = scmp.eq.s32.totalorder %s30, 3
    %p590 = por %p588, %p589
    %p591 = scmp.ne.s32.totalorder %s583, %s586
    %p592 = scmp.eq.s32.totalorder %s30, 0
    %p593 = por %p591, %p592
    %p594 = scmp.ne.s32.totalorder %s583, %s586
    %p595 = scmp.eq.s32.totalorder %s35, 3
    %p596 = por %p594, %p595
    %p597 = scmp.ne.s32.totalorder %s586, %s587
    %p598 = scmp.eq.s32.totalorder %s35, 0
    %p599 = por %p597, %p598
    %p600 = scmp.ne.s32.totalorder %s586, %s587
    %p601 = scmp.eq.s32.totalorder %s36, 3
    %p602 = por %p600, %p601
    %p604 = scmp.ne.s32.totalorder %s587, %s603
    %p605 = scmp.eq.s32.totalorder %s36, 0
    %p606 = por %p604, %p605
    %s608 = sadd.s32 %s607, 1
    %p611 = scmp.eq.s32.totalorder %s30, 3
    %p612 = scmp.ne.s32.totalorder %s607, %s609
    %p613 = scmp.eq.s32.totalorder %s30, 0
    %p614 = por %p612, %p613
    %p615 = scmp.ne.s32.totalorder %s607, %s609
    %p616 = scmp.eq.s32.totalorder %s35, 3
    %p617 = por %p615, %p616
    %p618 = scmp.ne.s32.totalorder %s609, %s610
    %p619 = scmp.eq.s32.totalorder %s35, 0
    %p620 = por %p618, %p619
    %p621 = scmp.ne.s32.totalorder %s609, %s610
    %p622 = scmp.eq.s32.totalorder %s36, 3
    %p623 = por %p621, %p622
    %p625 = scmp.ne.s32.totalorder %s610, %s624
    %p626 = scmp.eq.s32.totalorder %s36, 0
    %p627 = por %p625, %p626
    %s629 = sadd.s32 %s628, 1
    %p632 = scmp.eq.s32.totalorder %s30, 3
    %p633 = scmp.ne.s32.totalorder %s628, %s630
    %p634 = scmp.eq.s32.totalorder %s30, 0
    %p635 = por %p633, %p634
    %p636 = scmp.ne.s32.totalorder %s628, %s630
    %p637 = scmp.eq.s32.totalorder %s35, 3
    %p638 = por %p636, %p637
    %p639 = scmp.ne.s32.totalorder %s630, %s631
    %p640 = scmp.eq.s32.totalorder %s35, 0
    %p641 = por %p639, %p640
    %p642 = scmp.ne.s32.totalorder %s630, %s631
    %p643 = scmp.eq.s32.totalorder %s36, 3
    %p644 = por %p642, %p643
    %p646 = scmp.ne.s32.totalorder %s631, %s645
    %p647 = scmp.eq.s32.totalorder %s36, 0
    %p648 = por %p646, %p647
    %s649 = ssub.s32 %s37, %s49
    %p650 = scmp.eq.s32.totalorder %s649, 0
    %s652 = sadd.s32 %s651, 1
    %s653 = scalar_select %p650, %s651, %s652
    %p656 = pneg %p650
    %p657 = scmp.eq.s32.totalorder %s30, 3
    %p658 = por %p656, %p657
    %p659 = scmp.ne.s32.totalorder %s651, %s654
    %p660 = scmp.eq.s32.totalorder %s30, 0
    %p661 = por %p659, %p660
    %p662 = scmp.ne.s32.totalorder %s651, %s654
    %p663 = scmp.eq.s32.totalorder %s35, 3
    %p664 = por %p662, %p663
    %p665 = scmp.ne.s32.totalorder %s654, %s655
    %p666 = scmp.eq.s32.totalorder %s35, 0
    %p667 = por %p665, %p666
    %p668 = scmp.ne.s32.totalorder %s654, %s655
    %p669 = scmp.eq.s32.totalorder %s36, 3
    %p670 = por %p668, %p669
    %p672 = scmp.ne.s32.totalorder %s655, %s671
    %p673 = scmp.eq.s32.totalorder %s36, 0
    %p674 = por %p672, %p673
    %p675 = scmp.le.s32.totalorder 1, %s30
    %p676 = scmp.lt.s32.totalorder %s30, 5
    %p677 = pnand %p675, %p676
    %p678 = pneg %p677
    // Predicated region
    $region9: #{kfnet_forward.4} parent=5 // pred_check
      _
    $region10: #{kfnet_forward.4} parent=5 // pred_check_branch
      %680 = sbr.rel (%p677) target = $region12
    $region11: #{kfnet_forward.4} parent=5 // pred_region
      %s681 = ssub.s32 %s30, 1
      // Predicated region
      $region13: #{kfnet_forward.4} parent=11 // pred_check
        %p682 = pneg %p89
      $region14: #{kfnet_forward.4} parent=11 // pred_check_branch
        %684 = sbr.rel (%p682) target = $region16
      $region15: #{kfnet_forward.4} parent=11 // pred_region
        _
      $region16: #{kfnet_forward.4} parent=11 // pred_fallthru
        _
      // Predicated region
      $region17: #{kfnet_forward.4} parent=11 // pred_check
        %p685 = pneg %p110
      $region18: #{kfnet_forward.4} parent=11 // pred_check_branch
        %687 = sbr.rel (%p685) target = $region20
      $region19: #{kfnet_forward.4} parent=11 // pred_region
        _
      $region20: #{kfnet_forward.4} parent=11 // pred_fallthru
        _
      // Predicated region
      $region21: #{kfnet_forward.4} parent=11 // pred_check
        %p688 = pneg %p131
      $region22: #{kfnet_forward.4} parent=11 // pred_check_branch
        %690 = sbr.rel (%p688) target = $region24
      $region23: #{kfnet_forward.4} parent=11 // pred_region
        _
      $region24: #{kfnet_forward.4} parent=11 // pred_fallthru
        _
      // Predicated region
      $region25: #{kfnet_forward.4} parent=11 // pred_check
        %p691 = pneg %p620
      $region26: #{kfnet_forward.4} parent=11 // pred_check_branch
        %693 = sbr.rel (%p691) target = $region28
      $region27: #{kfnet_forward.4} parent=11 // pred_region
        _
      $region28: #{kfnet_forward.4} parent=11 // pred_fallthru
        _
      // Predicated region
      $region29: #{kfnet_forward.4} parent=11 // pred_check
        %p694 = pneg %p641
      $region30: #{kfnet_forward.4} parent=11 // pred_check_branch
        %696 = sbr.rel (%p694) target = $region32
      $region31: #{kfnet_forward.4} parent=11 // pred_region
        _
      $region32: #{kfnet_forward.4} parent=11 // pred_fallthru
        _
    $region12: #{kfnet_forward.4} parent=5 // pred_fallthru
      _
    %p697 = scmp.lt.s32.totalorder %s30, 4
    // Predicated region
    $region33: #{kfnet_forward.4} parent=5 // pred_check
      %p698 = pneg %p697
    $region34: #{kfnet_forward.4} parent=5 // pred_check_branch
      %700 = sbr.rel (%p698) target = $region36
    $region35: #{kfnet_forward.4} parent=5 // pred_region
      // Predicated region
      $region37: #{kfnet_forward.4} parent=35 // pred_check
        %p701 = pneg %p62
      $region38: #{kfnet_forward.4} parent=35 // pred_check_branch
        %703 = sbr.rel (%p701) target = $region40
      $region39: #{kfnet_forward.4} parent=35 // pred_region
        %p704 = scmp.lt.s32.totalorder %s37, 1
        %s705 = scalar_select %p704, %s37, 1
        %s706 = smul.addr %s705, 8
        %s707 = scalar_lea.vmem %s0, %s706
      $region40: #{kfnet_forward.4} parent=35 // pred_fallthru
        _
      // Predicated region
      $region41: #{kfnet_forward.4} parent=35 // pred_check
        %p708 = pneg %p151
      $region42: #{kfnet_forward.4} parent=35 // pred_check_branch
        %710 = sbr.rel (%p708) target = $region44
      $region43: #{kfnet_forward.4} parent=35 // pred_region
        %p711 = scmp.lt.s32.totalorder %s38, 1
        %s712 = scalar_select %p711, %s38, 1
        %s713 = scalar_lea.vmem %s4, %s712
      $region44: #{kfnet_forward.4} parent=35 // pred_fallthru
        _
      // Predicated region
      $region45: #{kfnet_forward.4} parent=35 // pred_check
        %p714 = pneg %p177
      $region46: #{kfnet_forward.4} parent=35 // pred_check_branch
        %716 = sbr.rel (%p714) target = $region48
      $region47: #{kfnet_forward.4} parent=35 // pred_region
        %p717 = scmp.lt.s32.totalorder %s38, 1
        %s718 = scalar_select %p717, %s38, 1
        %s719 = scalar_lea.vmem %s5, %s718
      $region48: #{kfnet_forward.4} parent=35 // pred_fallthru
        _
      // Predicated region
      $region49: #{kfnet_forward.4} parent=35 // pred_check
        %p720 = pneg %p203
      $region50: #{kfnet_forward.4} parent=35 // pred_check_branch
        %722 = sbr.rel (%p720) target = $region52
      $region51: #{kfnet_forward.4} parent=35 // pred_region
        %p723 = scmp.lt.s32.totalorder %s38, 1
        %s724 = scalar_select %p723, %s38, 1
        %s725 = smul.addr %s724, 4
        %s726 = smul.addr %s725, 4
        %s727 = scalar_lea.vmem %s6, %s726
      $region52: #{kfnet_forward.4} parent=35 // pred_fallthru
        _
      // Predicated region
      $region53: #{kfnet_forward.4} parent=35 // pred_check
        %p728 = pneg %p229
      $region54: #{kfnet_forward.4} parent=35 // pred_check_branch
        %730 = sbr.rel (%p728) target = $region56
      $region55: #{kfnet_forward.4} parent=35 // pred_region
        %p731 = scmp.lt.s32.totalorder %s38, 1
        %s732 = scalar_select %p731, %s38, 1
        %s733 = scalar_lea.vmem %s7, %s732
      $region56: #{kfnet_forward.4} parent=35 // pred_fallthru
        _
      // Predicated region
      $region57: #{kfnet_forward.4} parent=35 // pred_check
        %p734 = pneg %p255
      $region58: #{kfnet_forward.4} parent=35 // pred_check_branch
        %736 = sbr.rel (%p734) target = $region60
      $region59: #{kfnet_forward.4} parent=35 // pred_region
        %p737 = scmp.lt.s32.totalorder %s38, 1
        %s738 = scalar_select %p737, %s38, 1
        %s739 = smul.addr %s738, 4
        %s740 = smul.addr %s739, 4
        %s741 = scalar_lea.vmem %s8, %s740
      $region60: #{kfnet_forward.4} parent=35 // pred_fallthru
        _
      // Predicated region
      $region61: #{kfnet_forward.4} parent=35 // pred_check
        %p742 = pneg %p281
      $region62: #{kfnet_forward.4} parent=35 // pred_check_branch
        %744 = sbr.rel (%p742) target = $region64
      $region63: #{kfnet_forward.4} parent=35 // pred_region
        %p745 = scmp.lt.s32.totalorder %s38, 1
        %s746 = scalar_select %p745, %s38, 1
        %s747 = scalar_lea.vmem %s9, %s746
      $region64: #{kfnet_forward.4} parent=35 // pred_fallthru
        _
      // Predicated region
      $region65: #{kfnet_forward.4} parent=35 // pred_check
        %p748 = pneg %p307
      $region66: #{kfnet_forward.4} parent=35 // pred_check_branch
        %750 = sbr.rel (%p748) target = $region68
      $region67: #{kfnet_forward.4} parent=35 // pred_region
        %p751 = scmp.lt.s32.totalorder %s38, 1
        %s752 = scalar_select %p751, %s38, 1
        %s753 = smul.addr %s752, 4
        %s754 = smul.addr %s753, 4
        %s755 = scalar_lea.vmem %s10, %s754
      $region68: #{kfnet_forward.4} parent=35 // pred_fallthru
        _
      // Predicated region
      $region69: #{kfnet_forward.4} parent=35 // pred_check
        %p756 = pneg %p333
      $region70: #{kfnet_forward.4} parent=35 // pred_check_branch
        %758 = sbr.rel (%p756) target = $region72
      $region71: #{kfnet_forward.4} parent=35 // pred_region
        %p759 = scmp.lt.s32.totalorder %s38, 1
        %s760 = scalar_select %p759, %s38, 1
        %s761 = scalar_lea.vmem %s11, %s760
      $region72: #{kfnet_forward.4} parent=35 // pred_fallthru
        _
      // Predicated region
      $region73: #{kfnet_forward.4} parent=35 // pred_check
        %p762 = pneg %p359
      $region74: #{kfnet_forward.4} parent=35 // pred_check_branch
        %764 = sbr.rel (%p762) target = $region76
      $region75: #{kfnet_forward.4} parent=35 // pred_region
        %p765 = scmp.lt.s32.totalorder %s38, 1
        %s766 = scalar_select %p765, %s38, 1
        %s767 = smul.addr %s766, 4
        %s768 = smul.addr %s767, 4
        %s769 = scalar_lea.vmem %s12, %s768
      $region76: #{kfnet_forward.4} parent=35 // pred_fallthru
        _
      // Predicated region
      $region77: #{kfnet_forward.4} parent=35 // pred_check
        %p770 = pneg %p385
      $region78: #{kfnet_forward.4} parent=35 // pred_check_branch
        %772 = sbr.rel (%p770) target = $region80
      $region79: #{kfnet_forward.4} parent=35 // pred_region
        %p773 = scmp.lt.s32.totalorder %s38, 1
        %s774 = scalar_select %p773, %s38, 1
        %s775 = scalar_lea.vmem %s13, %s774
      $region80: #{kfnet_forward.4} parent=35 // pred_fallthru
        _
      // Predicated region
      $region81: #{kfnet_forward.4} parent=35 // pred_check
        %p776 = pneg %p411
      $region82: #{kfnet_forward.4} parent=35 // pred_check_branch
        %778 = sbr.rel (%p776) target = $region84
      $region83: #{kfnet_forward.4} parent=35 // pred_region
        %p779 = scmp.lt.s32.totalorder %s38, 1
        %s780 = scalar_select %p779, %s38, 1
        %s781 = smul.addr %s780, 4
        %s782 = smul.addr %s781, 4
        %s783 = scalar_lea.vmem %s14, %s782
      $region84: #{kfnet_forward.4} parent=35 // pred_fallthru
        _
      // Predicated region
      $region85: #{kfnet_forward.4} parent=35 // pred_check
        %p784 = pneg %p437
      $region86: #{kfnet_forward.4} parent=35 // pred_check_branch
        %786 = sbr.rel (%p784) target = $region88
      $region87: #{kfnet_forward.4} parent=35 // pred_region
        %p787 = scmp.lt.s32.totalorder %s38, 1
        %s788 = scalar_select %p787, %s38, 1
        %s789 = scalar_lea.vmem %s15, %s788
      $region88: #{kfnet_forward.4} parent=35 // pred_fallthru
        _
      // Predicated region
      $region89: #{kfnet_forward.4} parent=35 // pred_check
        %p790 = pneg %p463
      $region90: #{kfnet_forward.4} parent=35 // pred_check_branch
        %792 = sbr.rel (%p790) target = $region92
      $region91: #{kfnet_forward.4} parent=35 // pred_region
        %p793 = scmp.lt.s32.totalorder %s38, 1
        %s794 = scalar_select %p793, %s38, 1
        %s795 = scalar_lea.vmem %s16, %s794
      $region92: #{kfnet_forward.4} parent=35 // pred_fallthru
        _
      // Predicated region
      $region93: #{kfnet_forward.4} parent=35 // pred_check
        %p796 = pneg %p489
      $region94: #{kfnet_forward.4} parent=35 // pred_check_branch
        %798 = sbr.rel (%p796) target = $region96
      $region95: #{kfnet_forward.4} parent=35 // pred_region
        %p799 = scmp.lt.s32.totalorder %s38, 1
        %s800 = scalar_select %p799, %s38, 1
        %s801 = scalar_lea.vmem %s17, %s800
      $region96: #{kfnet_forward.4} parent=35 // pred_fallthru
        _
      // Predicated region
      $region97: #{kfnet_forward.4} parent=35 // pred_check
        %p802 = pneg %p515
      $region98: #{kfnet_forward.4} parent=35 // pred_check_branch
        %804 = sbr.rel (%p802) target = $region100
      $region99: #{kfnet_forward.4} parent=35 // pred_region
        %p805 = scmp.lt.s32.totalorder %s38, 1
        %s806 = scalar_select %p805, %s38, 1
        %s807 = smul.addr %s806, 4
        %s808 = smul.addr %s807, 4
        %s809 = scalar_lea.vmem %s18, %s808
      $region100: #{kfnet_forward.4} parent=35 // pred_fallthru
        _
      // Predicated region
      $region101: #{kfnet_forward.4} parent=35 // pred_check
        %p810 = pneg %p541
      $region102: #{kfnet_forward.4} parent=35 // pred_check_branch
        %812 = sbr.rel (%p810) target = $region104
      $region103: #{kfnet_forward.4} parent=35 // pred_region
        %p813 = scmp.lt.s32.totalorder %s38, 1
        %s814 = scalar_select %p813, %s38, 1
        %s815 = scalar_lea.vmem %s19, %s814
      $region104: #{kfnet_forward.4} parent=35 // pred_fallthru
        _
      // Predicated region
      $region105: #{kfnet_forward.4} parent=35 // pred_check
        %p816 = pneg %p567
      $region106: #{kfnet_forward.4} parent=35 // pred_check_branch
        %818 = sbr.rel (%p816) target = $region108
      $region107: #{kfnet_forward.4} parent=35 // pred_region
        %p819 = scmp.lt.s32.totalorder %s38, 1
        %s820 = scalar_select %p819, %s38, 1
        %s821 = smul.addr %s820, 16
        %s822 = smul.addr %s821, 4
        %s823 = scalar_lea.vmem %s20, %s822
      $region108: #{kfnet_forward.4} parent=35 // pred_fallthru
        _
      // Predicated region
      $region109: #{kfnet_forward.4} parent=35 // pred_check
        %p824 = pneg %p593
      $region110: #{kfnet_forward.4} parent=35 // pred_check_branch
        %826 = sbr.rel (%p824) target = $region112
      $region111: #{kfnet_forward.4} parent=35 // pred_region
        %p827 = scmp.lt.s32.totalorder %s38, 1
        %s828 = scalar_select %p827, %s38, 1
        %s829 = scalar_lea.vmem %s21, %s828
      $region112: #{kfnet_forward.4} parent=35 // pred_fallthru
        _
    $region36: #{kfnet_forward.4} parent=5 // pred_fallthru
      _
    %p830 = scmp.le.s32.totalorder 1, %s30
    %p831 = scmp.lt.s32.totalorder %s30, 5
    %p832 = pnand %p830, %p831
    %p833 = pneg %p832
    // Predicated region
    $region113: #{kfnet_forward.4} parent=5 // pred_check
      _
    $region114: #{kfnet_forward.4} parent=5 // pred_check_branch
      %835 = sbr.rel (%p832) target = $region116
    $region115: #{kfnet_forward.4} parent=5 // pred_region
      %s836 = ssub.s32 %s30, 1
      %p837 = scmp.lt.s32.totalorder %s39, 1
      %s838 = scalar_select %p837, %s39, 1
      %s839 = smul.addr %s838, 8
      %s840 = scalar_lea.vmem %s0, %s839
      %p841 = pneg %p68
      %p842 = pneg %p65
      %p843 = pneg %p89
      %p844 = pneg %p86
      %p845 = pneg %p110
      %p846 = pneg %p107
      %p847 = pneg %p131
      %p848 = pneg %p128
      %p849 = scmp.lt.s32.totalorder %s40, 1
      %s850 = scalar_select %p849, %s40, 1
      %s851 = scalar_lea.vmem %s4, %s850
      %p852 = pneg %p157
      %p853 = pneg %p154
      %p854 = scmp.lt.s32.totalorder %s40, 1
      %s855 = scalar_select %p854, %s40, 1
      %s856 = scalar_lea.vmem %s5, %s855
      %p857 = pneg %p183
      %p858 = pneg %p180
      %p859 = scmp.lt.s32.totalorder %s40, 1
      %s860 = scalar_select %p859, %s40, 1
      %s861 = smul.addr %s860, 4
      %s862 = smul.addr %s861, 4
      %s863 = scalar_lea.vmem %s6, %s862
      %p864 = pneg %p209
      %p865 = pneg %p206
      %p866 = scmp.lt.s32.totalorder %s40, 1
      %s867 = scalar_select %p866, %s40, 1
      %s868 = scalar_lea.vmem %s7, %s867
      %p869 = pneg %p235
      %p870 = pneg %p232
      %p871 = scmp.lt.s32.totalorder %s40, 1
      %s872 = scalar_select %p871, %s40, 1
      %s873 = smul.addr %s872, 4
      %s874 = smul.addr %s873, 4
      %s875 = scalar_lea.vmem %s8, %s874
      %p876 = pneg %p261
      %p877 = pneg %p258
      %p878 = scmp.lt.s32.totalorder %s40, 1
      %s879 = scalar_select %p878, %s40, 1
      %s880 = scalar_lea.vmem %s9, %s879
      %p881 = pneg %p287
      %p882 = pneg %p284
      %p883 = scmp.lt.s32.totalorder %s40, 1
      %s884 = scalar_select %p883, %s40, 1
      %s885 = smul.addr %s884, 4
      %s886 = smul.addr %s885, 4
      %s887 = scalar_lea.vmem %s10, %s886
      %p888 = pneg %p313
      %p889 = pneg %p310
      %p890 = scmp.lt.s32.totalorder %s40, 1
      %s891 = scalar_select %p890, %s40, 1
      %s892 = scalar_lea.vmem %s11, %s891
      %p893 = pneg %p339
      %p894 = pneg %p336
      %p895 = scmp.lt.s32.totalorder %s40, 1
      %s896 = scalar_select %p895, %s40, 1
      %s897 = smul.addr %s896, 4
      %s898 = smul.addr %s897, 4
      %s899 = scalar_lea.vmem %s12, %s898
      %p900 = pneg %p365
      %p901 = pneg %p362
      %p902 = scmp.lt.s32.totalorder %s40, 1
      %s903 = scalar_select %p902, %s40, 1
      %s904 = scalar_lea.vmem %s13, %s903
      %p905 = pneg %p391
      %p906 = pneg %p388
      %p907 = scmp.lt.s32.totalorder %s40, 1
      %s908 = scalar_select %p907, %s40, 1
      %s909 = smul.addr %s908, 4
      %s910 = smul.addr %s909, 4
      %s911 = scalar_lea.vmem %s14, %s910
      %p912 = pneg %p417
      %p913 = pneg %p414
      %p914 = scmp.lt.s32.totalorder %s40, 1
      %s915 = scalar_select %p914, %s40, 1
      %s916 = scalar_lea.vmem %s15, %s915
      %p917 = pneg %p443
      %p918 = pneg %p440
      %p919 = scmp.lt.s32.totalorder %s40, 1
      %s920 = scalar_select %p919, %s40, 1
      %s921 = scalar_lea.vmem %s16, %s920
      %p922 = pneg %p469
      %p923 = pneg %p466
      %p924 = scmp.lt.s32.totalorder %s40, 1
      %s925 = scalar_select %p924, %s40, 1
      %s926 = scalar_lea.vmem %s17, %s925
      %p927 = pneg %p495
      %p928 = pneg %p492
      %p929 = scmp.lt.s32.totalorder %s40, 1
      %s930 = scalar_select %p929, %s40, 1
      %s931 = smul.addr %s930, 4
      %s932 = smul.addr %s931, 4
      %s933 = scalar_lea.vmem %s18, %s932
      %p934 = pneg %p521
      %p935 = pneg %p518
      %p936 = scmp.lt.s32.totalorder %s40, 1
      %s937 = scalar_select %p936, %s40, 1
      %s938 = scalar_lea.vmem %s19, %s937
      %p939 = pneg %p547
      %p940 = pneg %p544
      %p941 = scmp.lt.s32.totalorder %s40, 1
      %s942 = scalar_select %p941, %s40, 1
      %s943 = smul.addr %s942, 16
      %s944 = smul.addr %s943, 4
      %s945 = scalar_lea.vmem %s20, %s944
      %p946 = pneg %p573
      %p947 = pneg %p570
      %p948 = scmp.lt.s32.totalorder %s40, 1
      %s949 = scalar_select %p948, %s40, 1
      %s950 = scalar_lea.vmem %s21, %s949
      %p951 = pneg %p599
      %p952 = pneg %p596
      %p953 = pneg %p620
      %p954 = pneg %p617
      %p955 = pneg %p641
      %p956 = pneg %p638
      %p957 = pneg %p667
      %p958 = pneg %p664
      %p959 = scmp.lt.s32.totalorder %s39, 1
      %s960 = scalar_select %p959, %s39, 1
      %s961 = smul.addr %s960, 8
      %s962 = scalar_lea.vmem %s24, %s961
      %p963 = scmp.lt.s32.totalorder %s39, 1
      %s964 = scalar_select %p963, %s39, 1
      %s965 = smul.addr %s964, 8
      %s966 = scalar_lea.vmem %s0, %s965
      %p967 = scmp.lt.s32.totalorder %s40, 1
      %s968 = scalar_select %p967, %s40, 1
      %s969 = scalar_lea.vmem %s4, %s968
      %p970 = scmp.lt.s32.totalorder %s40, 1
      %s971 = scalar_select %p970, %s40, 1
      %s972 = scalar_lea.vmem %s5, %s971
      %p973 = scmp.lt.s32.totalorder %s40, 1
      %s974 = scalar_select %p973, %s40, 1
      %s975 = smul.addr %s974, 4
      %s976 = smul.addr %s975, 4
      %s977 = scalar_lea.vmem %s6, %s976
      %p978 = scmp.lt.s32.totalorder %s40, 1
      %s979 = scalar_select %p978, %s40, 1
      %s980 = scalar_lea.vmem %s7, %s979
      %p981 = scmp.lt.s32.totalorder %s40, 1
      %s982 = scalar_select %p981, %s40, 1
      %s983 = smul.addr %s982, 4
      %s984 = smul.addr %s983, 4
      %s985 = scalar_lea.vmem %s8, %s984
      %p986 = scmp.lt.s32.totalorder %s40, 1
      %s987 = scalar_select %p986, %s40, 1
      %s988 = scalar_lea.vmem %s9, %s987
      %p989 = scmp.lt.s32.totalorder %s40, 1
      %s990 = scalar_select %p989, %s40, 1
      %s991 = smul.addr %s990, 4
      %s992 = smul.addr %s991, 4
      %s993 = scalar_lea.vmem %s10, %s992
      %p994 = scmp.lt.s32.totalorder %s40, 1
      %s995 = scalar_select %p994, %s40, 1
      %s996 = scalar_lea.vmem %s11, %s995
      %p997 = scmp.lt.s32.totalorder %s40, 1
      %s998 = scalar_select %p997, %s40, 1
      %s999 = smul.addr %s998, 4
      %s1000 = smul.addr %s999, 4
      %s1001 = scalar_lea.vmem %s12, %s1000
      %p1002 = scmp.lt.s32.totalorder %s40, 1
      %s1003 = scalar_select %p1002, %s40, 1
      %s1004 = scalar_lea.vmem %s13, %s1003
      %p1005 = scmp.lt.s32.totalorder %s40, 1
      %s1006 = scalar_select %p1005, %s40, 1
      %s1007 = smul.addr %s1006, 4
      %s1008 = smul.addr %s1007, 4
      %s1009 = scalar_lea.vmem %s14, %s1008
      %p1010 = scmp.lt.s32.totalorder %s40, 1
      %s1011 = scalar_select %p1010, %s40, 1
      %s1012 = scalar_lea.vmem %s15, %s1011
      %p1013 = scmp.lt.s32.totalorder %s40, 1
      %s1014 = scalar_select %p1013, %s40, 1
      %s1015 = scalar_lea.vmem %s16, %s1014
      %p1016 = scmp.lt.s32.totalorder %s40, 1
      %s1017 = scalar_select %p1016, %s40, 1
      %s1018 = scalar_lea.vmem %s17, %s1017
      %p1019 = scmp.lt.s32.totalorder %s40, 1
      %s1020 = scalar_select %p1019, %s40, 1
      %s1021 = smul.addr %s1020, 4
      %s1022 = smul.addr %s1021, 4
      %s1023 = scalar_lea.vmem %s18, %s1022
      %p1024 = scmp.lt.s32.totalorder %s40, 1
      %s1025 = scalar_select %p1024, %s40, 1
      %s1026 = scalar_lea.vmem %s19, %s1025
      %p1027 = scmp.lt.s32.totalorder %s40, 1
      %s1028 = scalar_select %p1027, %s40, 1
      %s1029 = smul.addr %s1028, 16
      %s1030 = smul.addr %s1029, 4
      %s1031 = scalar_lea.vmem %s20, %s1030
      %p1032 = scmp.lt.s32.totalorder %s40, 1
      %s1033 = scalar_select %p1032, %s40, 1
      %s1034 = scalar_lea.vmem %s21, %s1033
      %p1035 = scmp.lt.s32.totalorder %s39, 1
      %s1036 = scalar_select %p1035, %s39, 1
      %s1037 = smul.addr %s1036, 8
      %s1038 = scalar_lea.vmem %s24, %s1037
      %p1040 = scmp.eq.s32.totalorder %s40, 0
      // Predicated region
      $region117: #{kfnet_forward.4} parent=115 // pred_check
        %p1041 = pneg %p1040
      $region118: #{kfnet_forward.4} parent=115 // pred_check_branch
        %1043 = sbr.rel (%p1041) target = $region120
      $region119: #{kfnet_forward.4} parent=115 // pred_region
        %v1044 = vld [vmem:[%s966] sm:$0xff]
        %vm1045 = vcmask 261120
        %1046 = vst.msk [vmem:[%s1038] sm:$0xff] %vm1045, %v1044
      $region120: #{kfnet_forward.4} parent=115 // pred_fallthru
        _
      %v1047 = vld [vmem:[%s1038] sm:$0xff]
      %v1048 = vld [vmem:[%s969] sm:$0x1]
      %v1049 = vld [vmem:[%s972] sm:$0x1]
      %vm1050 = vcmask 261120
      %v1051 = vsel %vm1050, %v1047, 0.0
      %1052 = vadd.xlane.f32.xlu0 %v1051
      %v1053 = vpop.xlane.xlu0 %1052
      %v1054 = vrcp.pop 32.0
      %v1055 = vmul.f32 %v1053, %v1054
      %v1056 = vsub.f32 %v1047, %v1055
      %v1057 = vmul.f32 %v1056, %v1056
      %v1058 = vsel %vm1050, %v1057, 0.0
      %1059 = vadd.xlane.f32.xlu0 %v1058
      %v1060 = vpop.xlane.xlu0 %1059
      %v1061 = vmul.f32 %v1060, %v1054
      %v1062 = vadd.f32 %v1061, 1e-05
      %v1063 = vrsqrt.pop %v1062
      %v1064 = vmul.f32 %v1056, %v1063
      %v1066 = vlaneseq
      %v1067 = vshrl.u32 %v1066, 7
      %v1068 = vsub.s32 0, %v1067
      %v1069 = vrot.slane %v1048, %v1068
      %v1071 = vmul.f32 %v1064, %v1069
      %v1073 = vlaneseq
      %v1074 = vshrl.u32 %v1073, 7
      %v1075 = vsub.s32 0, %v1074
      %v1076 = vrot.slane %v1049, %v1075
      %v1078 = vadd.f32 %v1071, %v1076
      %v1079 = vld [vmem:[%s1] sm:$0xff]
      %v1080 = vld [vmem:[%s1 + $0x8] sm:$0xff]
      %v1081 = vld [vmem:[%s1 + $0x10] sm:$0xff]
      %v1082 = vld [vmem:[%s1 + $0x18] sm:$0xff]
      %v1084 = vsel %vm1050, %v1078, 0
      %1086 = vmatprep.subr.mxu0 0.0
      %1087 = vmatpush1.msra.mxu0 %v1079
      %1088 = vmatprep.subr.mxu0 0.0
      %1089 = vmatpush1.msra.mxu0 %v1080
      %1090 = vmatprep.subr.mxu0 0.0
      %1091 = vmatpush1.msra.mxu0 %v1081
      %1092 = vmatprep.subr.mxu0 0.0
      %1093 = vmatpush1.msra.mxu0 %v1082
      %1094 = vmatprep.subr.mxu0 0.0
      %1095 = vmatpush1.msra.mxu0 0.0
      %1096 = vmatprep.subr.mxu0 0.0
      %1097 = vmatpush1.msra.mxu0 0.0
      %1098 = vmatprep.subr.mxu0 0.0
      %1099 = vmatpush1.msra.mxu0 0.0
      %1100 = vmatprep.subr.mxu0 0.0
      %1101 = vmatpush1.msra.mxu0 0.0
      %1102 = vmatprep.subr.mxu0 0.0
      %1103 = vmatpush1.msra.mxu0 0.0
      %1104 = vmatprep.subr.mxu0 0.0
      %1105 = vmatpush1.msra.mxu0 0.0
      %1106 = vmatprep.subr.mxu0 0.0
      %1107 = vmatpush1.msra.mxu0 0.0
      %1108 = vmatprep.subr.mxu0 0.0
      %1109 = vmatpush1.msra.mxu0 0.0
      %1110 = vmatprep.subr.mxu0 0.0
      %1111 = vmatpush1.msra.mxu0 0.0
      %1112 = vmatprep.subr.mxu0 0.0
      %1113 = vmatpush1.msra.mxu0 0.0
      %1114 = vmatprep.subr.mxu0 0.0
      %1115 = vmatpush1.msra.mxu0 0.0
      %1116 = vmatprep.subr.mxu0 0.0
      %1117 = vmatpush1.msra.mxu0 0.0
      %1118 = vmatprep.subr.mxu0 0.0
      %1119 = vmatpush1.msra.mxu0 0.0
      %1120 = vmatprep.subr.mxu0 0.0
      %1121 = vmatpush1.msra.mxu0 0.0
      %1122 = vmatprep.subr.mxu0 0.0
      %1123 = vmatpush1.msra.mxu0 0.0
      %1124 = vmatprep.subr.mxu0 0.0
      %1125 = vmatpush1.msra.mxu0 0.0
      %1126 = vmatprep.subr.mxu0 0.0
      %1127 = vmatpush1.msra.mxu0 0.0
      %1128 = vmatprep.subr.mxu0 0.0
      %1129 = vmatpush1.msra.mxu0 0.0
      %1130 = vmatprep.subr.mxu0 0.0
      %1131 = vmatpush1.msra.mxu0 0.0
      %1132 = vmatprep.subr.mxu0 0.0
      %1133 = vmatpush1.msra.mxu0 0.0
      %1134 = vmatprep.subr.mxu0 0.0
      %1135 = vmatpush1.msra.mxu0 0.0
      %1136 = vmatprep.subr.mxu0 0.0
      %1137 = vmatpush1.msra.mxu0 0.0
      %1138 = vmatprep.subr.mxu0 0.0
      %1139 = vmatpush1.msra.mxu0 0.0
      %1140 = vmatprep.subr.mxu0 0.0
      %1141 = vmatpush1.msra.mxu0 0.0
      %1142 = vmatprep.subr.mxu0 0.0
      %1143 = vmatpush1.msra.mxu0 0.0
      %1144 = vmatprep.subr.mxu0 0.0
      %1145 = vmatpush1.msra.mxu0 0.0
      %1146 = vmatprep.subr.mxu0 0.0
      %1147 = vmatpush1.msra.mxu0 0.0
      %1148 = vmatprep.subr.mxu0 0.0
      %1149 = vmatpush1.msra.mxu0 0.0
      %1150 = vmatprep.mubr.f32.mxu0 0.0
      %1151 = vmatmul.mubr.f32.gmra.mrb[0].mxu0 %v1084
      %v1152 = vpop.f32.mrb[0].mxu0
      %v1153 = vadd.f32 0.0, %v1152
      %v1154 = vpop.f32.mrb[0].mxu0
      %1155 = vdwg.mxu0
      %v1156 = vpack.c.bf16 %v1153, %v1153
      %v1157 = vld [vmem:[%s977] sm:$0xf]
      %v1158 = vld [vmem:[%s977 + $0x4] sm:$0xf]
      %v1159 = vld [vmem:[%s977 + $0x8] sm:$0xf]
      %v1160 = vld [vmem:[%s977 + $0xc] sm:$0xf]
      %v1161 = vld [vmem:[%s980] sm:$0x1]
      %v1163 = vlaneseq
      %v1164 = vshrl.u32 %v1163, 7
      %v1165 = vsub.s32 0, %v1164
      %v1166 = vrot.slane %v1161, %v1165
      %v1172 = vunpack.c.l.b16 %v1157
      %v1173 = vunpack.c.l.b16 %v1158
      %v1174 = vunpack.c.l.b16 %v1159
      %v1175 = vunpack.c.l.b16 %v1160
      %v1176 = vpack.c.b16 %v1173, %v1172
      %v1177 = vpack.c.b16 %v1175, %v1174
      %v1181 = vsel %vm1050, %v1156, 0
      %1183 = vmatprep.subr.bf16.mxu0 0
      %1184 = vmatpush1.bf16.msra.mxu0 %v1176
      %1185 = vmatprep.subr.bf16.mxu0 0
      %1186 = vmatpush1.bf16.msra.mxu0 %v1177
      %1187 = vmatprep.subr.bf16.mxu0 0
      %1188 = vmatpush1.bf16.msra.mxu0 0
      %1189 = vmatprep.subr.bf16.mxu0 0
      %1190 = vmatpush1.bf16.msra.mxu0 0
      %1191 = vmatprep.subr.bf16.mxu0 0
      %1192 = vmatpush1.bf16.msra.mxu0 0
      %1193 = vmatprep.subr.bf16.mxu0 0
      %1194 = vmatpush1.bf16.msra.mxu0 0
      %1195 = vmatprep.subr.bf16.mxu0 0
      %1196 = vmatpush1.bf16.msra.mxu0 0
      %1197 = vmatprep.subr.bf16.mxu0 0
      %1198 = vmatpush1.bf16.msra.mxu0 0
      %1199 = vmatprep.subr.bf16.mxu0 0
      %1200 = vmatpush1.bf16.msra.mxu0 0
      %1201 = vmatprep.subr.bf16.mxu0 0
      %1202 = vmatpush1.bf16.msra.mxu0 0
      %1203 = vmatprep.subr.bf16.mxu0 0
      %1204 = vmatpush1.bf16.msra.mxu0 0
      %1205 = vmatprep.subr.bf16.mxu0 0
      %1206 = vmatpush1.bf16.msra.mxu0 0
      %1207 = vmatprep.subr.bf16.mxu0 0
      %1208 = vmatpush1.bf16.msra.mxu0 0
      %1209 = vmatprep.subr.bf16.mxu0 0
      %1210 = vmatpush1.bf16.msra.mxu0 0
      %1211 = vmatprep.subr.bf16.mxu0 0
      %1212 = vmatpush1.bf16.msra.mxu0 0
      %1213 = vmatprep.subr.bf16.mxu0 0
      %1214 = vmatpush1.bf16.msra.mxu0 0
      %1215 = vmatprep.mubr.bf16.mxu0 0
      %1216 = vmatmul.mubr.bf16.gmra.mrb[0].mxu0 %v1181
      %v1217 = vpop.f32.mrb[0].mxu0
      %v1218 = vadd.f32 %v1166, %v1217
      %v1219 = vpop.f32.mrb[0].mxu0
      %v1220 = vpop.f32.mrb[0].mxu0
      %v1221 = vpop.f32.mrb[0].mxu0
      %1222 = vdwg.mxu0
      %v1223 = vld [vmem:[%s985] sm:$0xf]
      %v1224 = vld [vmem:[%s985 + $0x4] sm:$0xf]
      %v1225 = vld [vmem:[%s985 + $0x8] sm:$0xf]
      %v1226 = vld [vmem:[%s985 + $0xc] sm:$0xf]
      %v1227 = vld [vmem:[%s988] sm:$0x1]
      %v1229 = vlaneseq
      %v1230 = vshrl.u32 %v1229, 7
      %v1231 = vsub.s32 0, %v1230
      %v1232 = vrot.slane %v1227, %v1231
      %v1238 = vunpack.c.l.b16 %v1223
      %v1239 = vunpack.c.l.b16 %v1224
      %v1240 = vunpack.c.l.b16 %v1225
      %v1241 = vunpack.c.l.b16 %v1226
      %v1242 = vpack.c.b16 %v1239, %v1238
      %v1243 = vpack.c.b16 %v1241, %v1240
      %1246 = vmatprep.subr.bf16.mxu0 0
      %1247 = vmatpush1.bf16.msra.mxu0 %v1242
      %1248 = vmatprep.subr.bf16.mxu0 0
      %1249 = vmatpush1.bf16.msra.mxu0 %v1243
      %1250 = vmatprep.subr.bf16.mxu0 0
      %1251 = vmatpush1.bf16.msra.mxu0 0
      %1252 = vmatprep.subr.bf16.mxu0 0
      %1253 = vmatpush1.bf16.msra.mxu0 0
      %1254 = vmatprep.subr.bf16.mxu0 0
      %1255 = vmatpush1.bf16.msra.mxu0 0
      %1256 = vmatprep.subr.bf16.mxu0 0
      %1257 = vmatpush1.bf16.msra.mxu0 0
      %1258 = vmatprep.subr.bf16.mxu0 0
      %1259 = vmatpush1.bf16.msra.mxu0 0
      %1260 = vmatprep.subr.bf16.mxu0 0
      %1261 = vmatpush1.bf16.msra.mxu0 0
      %1262 = vmatprep.subr.bf16.mxu0 0
      %1263 = vmatpush1.bf16.msra.mxu0 0
      %1264 = vmatprep.subr.bf16.mxu0 0
      %1265 = vmatpush1.bf16.msra.mxu0 0
      %1266 = vmatprep.subr.bf16.mxu0 0
      %1267 = vmatpush1.bf16.msra.mxu0 0
      %1268 = vmatprep.subr.bf16.mxu0 0
      %1269 = vmatpush1.bf16.msra.mxu0 0
      %1270 = vmatprep.subr.bf16.mxu0 0
      %1271 = vmatpush1.bf16.msra.mxu0 0
      %1272 = vmatprep.subr.bf16.mxu0 0
      %1273 = vmatpush1.bf16.msra.mxu0 0
      %1274 = vmatprep.subr.bf16.mxu0 0
      %1275 = vmatpush1.bf16.msra.mxu0 0
      %1276 = vmatprep.subr.bf16.mxu0 0
      %1277 = vmatpush1.bf16.msra.mxu0 0
      %1278 = vmatprep.mubr.bf16.mxu0 0
      %1279 = vmatmul.mubr.bf16.gmra.mrb[0].mxu0 %v1181
      %v1280 = vpop.f32.mrb[0].mxu0
      %v1281 = vadd.f32 %v1232, %v1280
      %v1282 = vpop.f32.mrb[0].mxu0
      %v1283 = vpop.f32.mrb[0].mxu0
      %v1284 = vpop.f32.mrb[0].mxu0
      %1285 = vdwg.mxu0
      %v1286 = vld [vmem:[%s993] sm:$0xf]
      %v1287 = vld [vmem:[%s993 + $0x4] sm:$0xf]
      %v1288 = vld [vmem:[%s993 + $0x8] sm:$0xf]
      %v1289 = vld [vmem:[%s993 + $0xc] sm:$0xf]
      %v1290 = vld [vmem:[%s996] sm:$0x1]
      %v1292 = vlaneseq
      %v1293 = vshrl.u32 %v1292, 7
      %v1294 = vsub.s32 0, %v1293
      %v1295 = vrot.slane %v1290, %v1294
      %v1301 = vunpack.c.l.b16 %v1286
      %v1302 = vunpack.c.l.b16 %v1287
      %v1303 = vunpack.c.l.b16 %v1288
      %v1304 = vunpack.c.l.b16 %v1289
      %v1305 = vpack.c.b16 %v1302, %v1301
      %v1306 = vpack.c.b16 %v1304, %v1303
      %1309 = vmatprep.subr.bf16.mxu0 0
      %1310 = vmatpush1.bf16.msra.mxu0 %v1305
      %1311 = vmatprep.subr.bf16.mxu0 0
      %1312 = vmatpush1.bf16.msra.mxu0 %v1306
      %1313 = vmatprep.subr.bf16.mxu0 0
      %1314 = vmatpush1.bf16.msra.mxu0 0
      %1315 = vmatprep.subr.bf16.mxu0 0
      %1316 = vmatpush1.bf16.msra.mxu0 0
      %1317 = vmatprep.subr.bf16.mxu0 0
      %1318 = vmatpush1.bf16.msra.mxu0 0
      %1319 = vmatprep.subr.bf16.mxu0 0
      %1320 = vmatpush1.bf16.msra.mxu0 0
      %1321 = vmatprep.subr.bf16.mxu0 0
      %1322 = vmatpush1.bf16.msra.mxu0 0
      %1323 = vmatprep.subr.bf16.mxu0 0
      %1324 = vmatpush1.bf16.msra.mxu0 0
      %1325 = vmatprep.subr.bf16.mxu0 0
      %1326 = vmatpush1.bf16.msra.mxu0 0
      %1327 = vmatprep.subr.bf16.mxu0 0
      %1328 = vmatpush1.bf16.msra.mxu0 0
      %1329 = vmatprep.subr.bf16.mxu0 0
      %1330 = vmatpush1.bf16.msra.mxu0 0
      %1331 = vmatprep.subr.bf16.mxu0 0
      %1332 = vmatpush1.bf16.msra.mxu0 0
      %1333 = vmatprep.subr.bf16.mxu0 0
      %1334 = vmatpush1.bf16.msra.mxu0 0
      %1335 = vmatprep.subr.bf16.mxu0 0
      %1336 = vmatpush1.bf16.msra.mxu0 0
      %1337 = vmatprep.subr.bf16.mxu0 0
      %1338 = vmatpush1.bf16.msra.mxu0 0
      %1339 = vmatprep.subr.bf16.mxu0 0
      %1340 = vmatpush1.bf16.msra.mxu0 0
      %1341 = vmatprep.mubr.bf16.mxu0 0
      %1342 = vmatmul.mubr.bf16.gmra.mrb[0].mxu0 %v1181
      %v1343 = vpop.f32.mrb[0].mxu0
      %v1344 = vadd.f32 %v1295, %v1343
      %v1345 = vpop.f32.mrb[0].mxu0
      %v1346 = vpop.f32.mrb[0].mxu0
      %v1347 = vpop.f32.mrb[0].mxu0
      %1348 = vdwg.mxu0
      %v1349 = vpack.c.bf16 %v1218, %v1218
      %v1350 = vld [vmem:[%s1001] sm:$0xf]
      %v1351 = vld [vmem:[%s1001 + $0x4] sm:$0xf]
      %v1352 = vld [vmem:[%s1001 + $0x8] sm:$0xf]
      %v1353 = vld [vmem:[%s1001 + $0xc] sm:$0xf]
      %v1354 = vld [vmem:[%s1004] sm:$0x1]
      %v1356 = vlaneseq
      %v1357 = vshrl.u32 %v1356, 7
      %v1358 = vsub.s32 0, %v1357
      %v1359 = vrot.slane %v1354, %v1358
      %v1365 = vunpack.c.l.b16 %v1350
      %v1366 = vunpack.c.l.b16 %v1351
      %v1367 = vunpack.c.l.b16 %v1352
      %v1368 = vunpack.c.l.b16 %v1353
      %v1369 = vpack.c.b16 %v1366, %v1365
      %v1370 = vpack.c.b16 %v1368, %v1367
      %v1374 = vsel %vm1050, %v1349, 0
      %1376 = vmatprep.subr.bf16.mxu0 0
      %1377 = vmatpush1.bf16.msra.mxu0 %v1369
      %1378 = vmatprep.subr.bf16.mxu0 0
      %1379 = vmatpush1.bf16.msra.mxu0 %v1370
      %1380 = vmatprep.subr.bf16.mxu0 0
      %1381 = vmatpush1.bf16.msra.mxu0 0
      %1382 = vmatprep.subr.bf16.mxu0 0
      %1383 = vmatpush1.bf16.msra.mxu0 0
      %1384 = vmatprep.subr.bf16.mxu0 0
      %1385 = vmatpush1.bf16.msra.mxu0 0
      %1386 = vmatprep.subr.bf16.mxu0 0
      %1387 = vmatpush1.bf16.msra.mxu0 0
      %1388 = vmatprep.subr.bf16.mxu0 0
      %1389 = vmatpush1.bf16.msra.mxu0 0
      %1390 = vmatprep.subr.bf16.mxu0 0
      %1391 = vmatpush1.bf16.msra.mxu0 0
      %1392 = vmatprep.subr.bf16.mxu0 0
      %1393 = vmatpush1.bf16.msra.mxu0 0
      %1394 = vmatprep.subr.bf16.mxu0 0
      %1395 = vmatpush1.bf16.msra.mxu0 0
      %1396 = vmatprep.subr.bf16.mxu0 0
      %1397 = vmatpush1.bf16.msra.mxu0 0
      %1398 = vmatprep.subr.bf16.mxu0 0
      %1399 = vmatpush1.bf16.msra.mxu0 0
      %1400 = vmatprep.subr.bf16.mxu0 0
      %1401 = vmatpush1.bf16.msra.mxu0 0
      %1402 = vmatprep.subr.bf16.mxu0 0
      %1403 = vmatpush1.bf16.msra.mxu0 0
      %1404 = vmatprep.subr.bf16.mxu0 0
      %1405 = vmatpush1.bf16.msra.mxu0 0
      %1406 = vmatprep.subr.bf16.mxu0 0
      %1407 = vmatpush1.bf16.msra.mxu0 0
      %1408 = vmatprep.mubr.bf16.mxu0 0
      %1409 = vmatmul.mubr.bf16.gmra.mrb[0].mxu0 %v1374
      %v1410 = vpop.f32.mrb[0].mxu0
      %v1411 = vadd.f32 %v1359, %v1410
      %v1412 = vpop.f32.mrb[0].mxu0
      %v1413 = vpop.f32.mrb[0].mxu0
      %v1414 = vpop.f32.mrb[0].mxu0
      %1415 = vdwg.mxu0
      %v1416 = vpack.c.bf16 %v1281, %v1281
      %v1418 = vsel %vm1050, %v1416, 0
      %1420 = vmatprep.subr.bf16.mxu0 0
      %1421 = vmatpush1.bf16.msra.mxu0 %v1369
      %1422 = vmatprep.subr.bf16.mxu0 0
      %1423 = vmatpush1.bf16.msra.mxu0 %v1370
      %1424 = vmatprep.subr.bf16.mxu0 0
      %1425 = vmatpush1.bf16.msra.mxu0 0
      %1426 = vmatprep.subr.bf16.mxu0 0
      %1427 = vmatpush1.bf16.msra.mxu0 0
      %1428 = vmatprep.subr.bf16.mxu0 0
      %1429 = vmatpush1.bf16.msra.mxu0 0
      %1430 = vmatprep.subr.bf16.mxu0 0
      %1431 = vmatpush1.bf16.msra.mxu0 0
      %1432 = vmatprep.subr.bf16.mxu0 0
      %1433 = vmatpush1.bf16.msra.mxu0 0
      %1434 = vmatprep.subr.bf16.mxu0 0
      %1435 = vmatpush1.bf16.msra.mxu0 0
      %1436 = vmatprep.subr.bf16.mxu0 0
      %1437 = vmatpush1.bf16.msra.mxu0 0
      %1438 = vmatprep.subr.bf16.mxu0 0
      %1439 = vmatpush1.bf16.msra.mxu0 0
      %1440 = vmatprep.subr.bf16.mxu0 0
      %1441 = vmatpush1.bf16.msra.mxu0 0
      %1442 = vmatprep.subr.bf16.mxu0 0
      %1443 = vmatpush1.bf16.msra.mxu0 0
      %1444 = vmatprep.subr.bf16.mxu0 0
      %1445 = vmatpush1.bf16.msra.mxu0 0
      %1446 = vmatprep.subr.bf16.mxu0 0
      %1447 = vmatpush1.bf16.msra.mxu0 0
      %1448 = vmatprep.subr.bf16.mxu0 0
      %1449 = vmatpush1.bf16.msra.mxu0 0
      %1450 = vmatprep.subr.bf16.mxu0 0
      %1451 = vmatpush1.bf16.msra.mxu0 0
      %1452 = vmatprep.mubr.bf16.mxu0 0
      %1453 = vmatmul.mubr.bf16.gmra.mrb[0].mxu0 %v1418
      %v1454 = vpop.f32.mrb[0].mxu0
      %v1455 = vadd.f32 %v1359, %v1454
      %v1456 = vpop.f32.mrb[0].mxu0
      %v1457 = vpop.f32.mrb[0].mxu0
      %v1458 = vpop.f32.mrb[0].mxu0
      %1459 = vdwg.mxu0
      %v1460 = vand.u32 2147483647, %v1411
      %vm1461 = vcmp.le.f32.partialorder %v1460, 0.7853982
      %vm1462 = vcmp.lt.s32.totalorder %v1411, 0
      %v1463 = vand.u32 %v1411, 2139095040
      %v1464 = vshrl.u32 %v1463, 23
      %v1465 = vsub.s32 %v1464, 127
      %v1466 = vand.u32 2147483647, %v1411
      %v1467 = vand.u32 %v1466, 8388607
      %v1468 = vor.u32 %v1467, 8388608
      %v1469 = vsub.s32 0, %v1468
      %v1470 = vadd.s32 %v1465, 1
      %vm1471 = vcmp.gt.s32.totalorder %v1470, 0
      %v1472 = vsel %vm1471, %v1470, 0
      %v1473 = vshrl.u32 %v1472, 5
      %v1474 = vand.u32 %v1472, 31
      %v1475 = vsub.s32 32, %v1474
      %v1476 = vshrl.u32 683565275, %v1475
      %v1477 = vshll.u32 683565275, %v1474
      %v1478 = vshrl.u32 2475754826, %v1475
      %v1479 = vor.u32 %v1477, %v1478
      %v1480 = vshll.u32 2475754826, %v1474
      %v1481 = vshrl.u32 2131351028, %v1475
      %v1482 = vor.u32 %v1480, %v1481
      %v1483 = vshll.u32 2131351028, %v1474
      %v1484 = vshrl.u32 2102212464, %v1475
      %v1485 = vor.u32 %v1483, %v1484
      %v1486 = vshll.u32 2102212464, %v1474
      %v1487 = vshrl.u32 920167782, %v1475
      %v1488 = vor.u32 %v1486, %v1487
      %v1489 = vshll.u32 920167782, %v1474
      %v1490 = vshrl.u32 1326507024, %v1475
      %v1491 = vor.u32 %v1489, %v1490
      %vm1492 = vcmp.lt.s32.totalorder %v1473, 1
      %vm1493 = vcmp.lt.s32.totalorder %v1473, 2
      %vm1494 = vcmp.lt.s32.totalorder %v1473, 3
      %vm1495 = vcmp.lt.s32.totalorder %v1473, 4
      %v1496 = vsel %vm1492, %v1476, %v1479
      %v1497 = vsel %vm1495, %v1485, 2102212464
      %v1498 = vsel %vm1494, %v1482, %v1497
      %v1499 = vsel %vm1493, %v1496, %v1498
      %v1500 = vsel %vm1492, %v1479, %v1482
      %v1501 = vsel %vm1495, %v1488, 920167782
      %v1502 = vsel %vm1494, %v1485, %v1501
      %v1503 = vsel %vm1493, %v1500, %v1502
      %v1504 = vsel %vm1492, %v1482, %v1485
      %v1505 = vsel %vm1495, %v1491, 1326507024
      %v1506 = vsel %vm1494, %v1488, %v1505
      %v1507 = vsel %vm1493, %v1504, %v1506
      %v1508 = vshll.u32 %v1468, 8
      %v1509 = vmul.u32.u64.compose %v1508, %v1507
      %v1510 = vextract.low.u32 %v1509
      %v1511 = vextract.high.u32 %v1509
      %v1512 = vmul.u32.u64.compose %v1508, %v1503
      %v1513 = vextract.low.u32 %v1512
      %v1514 = vextract.high.u32 %v1512
      %v1515 = vmul.u32 %v1508, %v1499
      %v1516 = vadd.s32 %v1511, %v1513
      %vm1517 = vc.u32 %v1511, %v1513
      %v1518 = vadd.s32 %v1514, 1
      %v1519 = vsel %vm1517, %v1518, %v1514
      %v1520 = vadd.s32 %v1515, %v1519
      %v1521 = vadd.s32 %v1520, 536870912
      %v1522 = vshrl.u32 %v1521, 30
      %v1523 = vshll.u32 %v1522, 30
      %v1524 = vsub.s32 %v1520, %v1523
      %vm1525 = vcmp.lt.s32.totalorder %v1524, 0
      %v1526 = vsub.s32 0, %v1524
      %v1527 = vsel %vm1525, %v1526, %v1524
      %v1528 = vclz %v1527
      %v1529 = vsub.s32 %v1528, 2
      %vm1530 = vcmp.gt.s32.totalorder 0, %v1529
      %v1531 = vsel %vm1530, 0, %v1529
      %v1532 = vsub.s32 32, %v1531
      %v1533 = vshll.u32 %v1524, %v1531
      %v1534 = vshrl.u32 %v1516, %v1532
      %v1535 = vor.u32 %v1533, %v1534
      %v1536 = vsub.s32 4294967266, %v1531
      %v1537 = vadd.s32 %v1536, 127
      %v1538 = vshll.u32 %v1537, 23
      %v1539 = vor.u32 4788187, %v1538
      %v1540 = vand.u32 2147483647, %v1539
      %v1542 = vcvt.s32.f32 %v1535
      %v1543 = vmul.f32 %v1542, %v1540
      %v1544 = vxor.u32 %v1543, 2147483648
      %v1545 = vsel %vm1462, %v1544, %v1543
      %v1546 = vsub.s32 4, %v1522
      %v1547 = vsel %vm1462, %v1546, %v1522
      %v1548 = vsel %vm1461, %v1411, %v1545
      %v1549 = vsel %vm1461, 0, %v1547
      %v1550 = vcosq.f32.pop %v1548
      %v1551 = vsinq.f32.pop %v1548
      %vm1552 = vweird.f32 %v1411
      %v1553 = vand.u32 %v1549, 3
      %vm1554 = vcmp.lt.s32.totalorder %v1553, 2
      %vm1555 = vcmp.eq.s32.totalorder %v1553, 0
      %v1556 = vxor.u32 %v1551, 2147483648
      %v1557 = vsel %vm1555, %v1550, %v1556
      %vm1558 = vcmp.eq.s32.totalorder %v1553, 2
      %v1559 = vxor.u32 %v1550, 2147483648
      %v1560 = vsel %vm1558, %v1559, %v1551
      %v1561 = vsel %vm1554, %v1557, %v1560
      %v1562 = vsel %vm1552, nan, %v1561
      %v1563 = vmul.f32 %v1562, 0.17677669
      %v1564 = vand.u32 2147483647, %v1411
      %vm1565 = vcmp.le.f32.partialorder %v1564, 0.7853982
      %vm1566 = vcmp.lt.s32.totalorder %v1411, 0
      %v1567 = vand.u32 %v1411, 2139095040
      %v1568 = vshrl.u32 %v1567, 23
      %v1569 = vsub.s32 %v1568, 127
      %v1570 = vand.u32 2147483647, %v1411
      %v1571 = vand.u32 %v1570, 8388607
      %v1572 = vor.u32 %v1571, 8388608
      %v1573 = vsub.s32 0, %v1572
      %v1574 = vadd.s32 %v1569, 1
      %vm1575 = vcmp.gt.s32.totalorder %v1574, 0
      %v1576 = vsel %vm1575, %v1574, 0
      %v1577 = vshrl.u32 %v1576, 5
      %v1578 = vand.u32 %v1576, 31
      %v1579 = vsub.s32 32, %v1578
      %v1580 = vshrl.u32 683565275, %v1579
      %v1581 = vshll.u32 683565275, %v1578
      %v1582 = vshrl.u32 2475754826, %v1579
      %v1583 = vor.u32 %v1581, %v1582
      %v1584 = vshll.u32 2475754826, %v1578
      %v1585 = vshrl.u32 2131351028, %v1579
      %v1586 = vor.u32 %v1584, %v1585
      %v1587 = vshll.u32 2131351028, %v1578
      %v1588 = vshrl.u32 2102212464, %v1579
      %v1589 = vor.u32 %v1587, %v1588
      %v1590 = vshll.u32 2102212464, %v1578
      %v1591 = vshrl.u32 920167782, %v1579
      %v1592 = vor.u32 %v1590, %v1591
      %v1593 = vshll.u32 920167782, %v1578
      %v1594 = vshrl.u32 1326507024, %v1579
      %v1595 = vor.u32 %v1593, %v1594
      %vm1596 = vcmp.lt.s32.totalorder %v1577, 1
      %vm1597 = vcmp.lt.s32.totalorder %v1577, 2
      %vm1598 = vcmp.lt.s32.totalorder %v1577, 3
      %vm1599 = vcmp.lt.s32.totalorder %v1577, 4
      %v1600 = vsel %vm1596, %v1580, %v1583
      %v1601 = vsel %vm1599, %v1589, 2102212464
      %v1602 = vsel %vm1598, %v1586, %v1601
      %v1603 = vsel %vm1597, %v1600, %v1602
      %v1604 = vsel %vm1596, %v1583, %v1586
      %v1605 = vsel %vm1599, %v1592, 920167782
      %v1606 = vsel %vm1598, %v1589, %v1605
      %v1607 = vsel %vm1597, %v1604, %v1606
      %v1608 = vsel %vm1596, %v1586, %v1589
      %v1609 = vsel %vm1599, %v1595, 1326507024
      %v1610 = vsel %vm1598, %v1592, %v1609
      %v1611 = vsel %vm1597, %v1608, %v1610
      %v1612 = vshll.u32 %v1572, 8
      %v1613 = vmul.u32.u64.compose %v1612, %v1611
      %v1614 = vextract.low.u32 %v1613
      %v1615 = vextract.high.u32 %v1613
      %v1616 = vmul.u32.u64.compose %v1612, %v1607
      %v1617 = vextract.low.u32 %v1616
      %v1618 = vextract.high.u32 %v1616
      %v1619 = vmul.u32 %v1612, %v1603
      %v1620 = vadd.s32 %v1615, %v1617
      %vm1621 = vc.u32 %v1615, %v1617
      %v1622 = vadd.s32 %v1618, 1
      %v1623 = vsel %vm1621, %v1622, %v1618
      %v1624 = vadd.s32 %v1619, %v1623
      %v1625 = vadd.s32 %v1624, 536870912
      %v1626 = vshrl.u32 %v1625, 30
      %v1627 = vshll.u32 %v1626, 30
      %v1628 = vsub.s32 %v1624, %v1627
      %vm1629 = vcmp.lt.s32.totalorder %v1628, 0
      %v1630 = vsub.s32 0, %v1628
      %v1631 = vsel %vm1629, %v1630, %v1628
      %v1632 = vclz %v1631
      %v1633 = vsub.s32 %v1632, 2
      %vm1634 = vcmp.gt.s32.totalorder 0, %v1633
      %v1635 = vsel %vm1634, 0, %v1633
      %v1636 = vsub.s32 32, %v1635
      %v1637 = vshll.u32 %v1628, %v1635
      %v1638 = vshrl.u32 %v1620, %v1636
      %v1639 = vor.u32 %v1637, %v1638
      %v1640 = vsub.s32 4294967266, %v1635
      %v1641 = vadd.s32 %v1640, 127
      %v1642 = vshll.u32 %v1641, 23
      %v1643 = vor.u32 4788187, %v1642
      %v1644 = vand.u32 2147483647, %v1643
      %v1646 = vcvt.s32.f32 %v1639
      %v1647 = vmul.f32 %v1646, %v1644
      %v1648 = vxor.u32 %v1647, 2147483648
      %v1649 = vsel %vm1566, %v1648, %v1647
      %v1650 = vsub.s32 4, %v1626
      %v1651 = vsel %vm1566, %v1650, %v1626
      %v1652 = vsel %vm1565, %v1411, %v1649
      %v1653 = vsel %vm1565, 0, %v1651
      %v1654 = vcosq.f32.pop %v1652
      %v1655 = vsinq.f32.pop %v1652
      %vm1656 = vweird.f32 %v1411
      %v1657 = vadd.s32 %v1653, 3
      %v1658 = vand.u32 %v1657, 3
      %vm1659 = vcmp.lt.s32.totalorder %v1658, 2
      %vm1660 = vcmp.eq.s32.totalorder %v1658, 0
      %v1661 = vxor.u32 %v1655, 2147483648
      %v1662 = vsel %vm1660, %v1654, %v1661
      %vm1663 = vcmp.eq.s32.totalorder %v1658, 2
      %v1664 = vxor.u32 %v1654, 2147483648
      %v1665 = vsel %vm1663, %v1664, %v1655
      %v1666 = vsel %vm1659, %v1662, %v1665
      %v1667 = vsel %vm1656, nan, %v1666
      %v1668 = vmul.f32 %v1667, 0.17677669
      %v1669 = vand.u32 2147483647, %v1455
      %vm1670 = vcmp.le.f32.partialorder %v1669, 0.7853982
      %vm1671 = vcmp.lt.s32.totalorder %v1455, 0
      %v1672 = vand.u32 %v1455, 2139095040
      %v1673 = vshrl.u32 %v1672, 23
      %v1674 = vsub.s32 %v1673, 127
      %v1675 = vand.u32 2147483647, %v1455
      %v1676 = vand.u32 %v1675, 8388607
      %v1677 = vor.u32 %v1676, 8388608
      %v1678 = vsub.s32 0, %v1677
      %v1679 = vadd.s32 %v1674, 1
      %vm1680 = vcmp.gt.s32.totalorder %v1679, 0
      %v1681 = vsel %vm1680, %v1679, 0
      %v1682 = vshrl.u32 %v1681, 5
      %v1683 = vand.u32 %v1681, 31
      %v1684 = vsub.s32 32, %v1683
      %v1685 = vshrl.u32 683565275, %v1684
      %v1686 = vshll.u32 683565275, %v1683
      %v1687 = vshrl.u32 2475754826, %v1684
      %v1688 = vor.u32 %v1686, %v1687
      %v1689 = vshll.u32 2475754826, %v1683
      %v1690 = vshrl.u32 2131351028, %v1684
      %v1691 = vor.u32 %v1689, %v1690
      %v1692 = vshll.u32 2131351028, %v1683
      %v1693 = vshrl.u32 2102212464, %v1684
      %v1694 = vor.u32 %v1692, %v1693
      %v1695 = vshll.u32 2102212464, %v1683
      %v1696 = vshrl.u32 920167782, %v1684
      %v1697 = vor.u32 %v1695, %v1696
      %v1698 = vshll.u32 920167782, %v1683
      %v1699 = vshrl.u32 1326507024, %v1684
      %v1700 = vor.u32 %v1698, %v1699
      %vm1701 = vcmp.lt.s32.totalorder %v1682, 1
      %vm1702 = vcmp.lt.s32.totalorder %v1682, 2
      %vm1703 = vcmp.lt.s32.totalorder %v1682, 3
      %vm1704 = vcmp.lt.s32.totalorder %v1682, 4
      %v1705 = vsel %vm1701, %v1685, %v1688
      %v1706 = vsel %vm1704, %v1694, 2102212464
      %v1707 = vsel %vm1703, %v1691, %v1706
      %v1708 = vsel %vm1702, %v1705, %v1707
      %v1709 = vsel %vm1701, %v1688, %v1691
      %v1710 = vsel %vm1704, %v1697, 920167782
      %v1711 = vsel %vm1703, %v1694, %v1710
      %v1712 = vsel %vm1702, %v1709, %v1711
      %v1713 = vsel %vm1701, %v1691, %v1694
      %v1714 = vsel %vm1704, %v1700, 1326507024
      %v1715 = vsel %vm1703, %v1697, %v1714
      %v1716 = vsel %vm1702, %v1713, %v1715
      %v1717 = vshll.u32 %v1677, 8
      %v1718 = vmul.u32.u64.compose %v1717, %v1716
      %v1719 = vextract.low.u32 %v1718
      %v1720 = vextract.high.u32 %v1718
      %v1721 = vmul.u32.u64.compose %v1717, %v1712
      %v1722 = vextract.low.u32 %v1721
      %v1723 = vextract.high.u32 %v1721
      %v1724 = vmul.u32 %v1717, %v1708
      %v1725 = vadd.s32 %v1720, %v1722
      %vm1726 = vc.u32 %v1720, %v1722
      %v1727 = vadd.s32 %v1723, 1
      %v1728 = vsel %vm1726, %v1727, %v1723
      %v1729 = vadd.s32 %v1724, %v1728
      %v1730 = vadd.s32 %v1729, 536870912
      %v1731 = vshrl.u32 %v1730, 30
      %v1732 = vshll.u32 %v1731, 30
      %v1733 = vsub.s32 %v1729, %v1732
      %vm1734 = vcmp.lt.s32.totalorder %v1733, 0
      %v1735 = vsub.s32 0, %v1733
      %v1736 = vsel %vm1734, %v1735, %v1733
      %v1737 = vclz %v1736
      %v1738 = vsub.s32 %v1737, 2
      %vm1739 = vcmp.gt.s32.totalorder 0, %v1738
      %v1740 = vsel %vm1739, 0, %v1738
      %v1741 = vsub.s32 32, %v1740
      %v1742 = vshll.u32 %v1733, %v1740
      %v1743 = vshrl.u32 %v1725, %v1741
      %v1744 = vor.u32 %v1742, %v1743
      %v1745 = vsub.s32 4294967266, %v1740
      %v1746 = vadd.s32 %v1745, 127
      %v1747 = vshll.u32 %v1746, 23
      %v1748 = vor.u32 4788187, %v1747
      %v1749 = vand.u32 2147483647, %v1748
      %v1751 = vcvt.s32.f32 %v1744
      %v1752 = vmul.f32 %v1751, %v1749
      %v1753 = vxor.u32 %v1752, 2147483648
      %v1754 = vsel %vm1671, %v1753, %v1752
      %v1755 = vsub.s32 4, %v1731
      %v1756 = vsel %vm1671, %v1755, %v1731
      %v1757 = vsel %vm1670, %v1455, %v1754
      %v1758 = vsel %vm1670, 0, %v1756
      %v1759 = vcosq.f32.pop %v1757
      %v1760 = vsinq.f32.pop %v1757
      %vm1761 = vweird.f32 %v1455
      %v1762 = vand.u32 %v1758, 3
      %vm1763 = vcmp.lt.s32.totalorder %v1762, 2
      %vm1764 = vcmp.eq.s32.totalorder %v1762, 0
      %v1765 = vxor.u32 %v1760, 2147483648
      %v1766 = vsel %vm1764, %v1759, %v1765
      %vm1767 = vcmp.eq.s32.totalorder %v1762, 2
      %v1768 = vxor.u32 %v1759, 2147483648
      %v1769 = vsel %vm1767, %v1768, %v1760
      %v1770 = vsel %vm1763, %v1766, %v1769
      %v1771 = vsel %vm1761, nan, %v1770
      %v1772 = vmul.f32 %v1771, 0.17677669
      %v1773 = vand.u32 2147483647, %v1455
      %vm1774 = vcmp.le.f32.partialorder %v1773, 0.7853982
      %vm1775 = vcmp.lt.s32.totalorder %v1455, 0
      %v1776 = vand.u32 %v1455, 2139095040
      %v1777 = vshrl.u32 %v1776, 23
      %v1778 = vsub.s32 %v1777, 127
      %v1779 = vand.u32 2147483647, %v1455
      %v1780 = vand.u32 %v1779, 8388607
      %v1781 = vor.u32 %v1780, 8388608
      %v1782 = vsub.s32 0, %v1781
      %v1783 = vadd.s32 %v1778, 1
      %vm1784 = vcmp.gt.s32.totalorder %v1783, 0
      %v1785 = vsel %vm1784, %v1783, 0
      %v1786 = vshrl.u32 %v1785, 5
      %v1787 = vand.u32 %v1785, 31
      %v1788 = vsub.s32 32, %v1787
      %v1789 = vshrl.u32 683565275, %v1788
      %v1790 = vshll.u32 683565275, %v1787
      %v1791 = vshrl.u32 2475754826, %v1788
      %v1792 = vor.u32 %v1790, %v1791
      %v1793 = vshll.u32 2475754826, %v1787
      %v1794 = vshrl.u32 2131351028, %v1788
      %v1795 = vor.u32 %v1793, %v1794
      %v1796 = vshll.u32 2131351028, %v1787
      %v1797 = vshrl.u32 2102212464, %v1788
      %v1798 = vor.u32 %v1796, %v1797
      %v1799 = vshll.u32 2102212464, %v1787
      %v1800 = vshrl.u32 920167782, %v1788
      %v1801 = vor.u32 %v1799, %v1800
      %v1802 = vshll.u32 920167782, %v1787
      %v1803 = vshrl.u32 1326507024, %v1788
      %v1804 = vor.u32 %v1802, %v1803
      %vm1805 = vcmp.lt.s32.totalorder %v1786, 1
      %vm1806 = vcmp.lt.s32.totalorder %v1786, 2
      %vm1807 = vcmp.lt.s32.totalorder %v1786, 3
      %vm1808 = vcmp.lt.s32.totalorder %v1786, 4
      %v1809 = vsel %vm1805, %v1789, %v1792
      %v1810 = vsel %vm1808, %v1798, 2102212464
      %v1811 = vsel %vm1807, %v1795, %v1810
      %v1812 = vsel %vm1806, %v1809, %v1811
      %v1813 = vsel %vm1805, %v1792, %v1795
      %v1814 = vsel %vm1808, %v1801, 920167782
      %v1815 = vsel %vm1807, %v1798, %v1814
      %v1816 = vsel %vm1806, %v1813, %v1815
      %v1817 = vsel %vm1805, %v1795, %v1798
      %v1818 = vsel %vm1808, %v1804, 1326507024
      %v1819 = vsel %vm1807, %v1801, %v1818
      %v1820 = vsel %vm1806, %v1817, %v1819
      %v1821 = vshll.u32 %v1781, 8
      %v1822 = vmul.u32.u64.compose %v1821, %v1820
      %v1823 = vextract.low.u32 %v1822
      %v1824 = vextract.high.u32 %v1822
      %v1825 = vmul.u32.u64.compose %v1821, %v1816
      %v1826 = vextract.low.u32 %v1825
      %v1827 = vextract.high.u32 %v1825
      %v1828 = vmul.u32 %v1821, %v1812
      %v1829 = vadd.s32 %v1824, %v1826
      %vm1830 = vc.u32 %v1824, %v1826
      %v1831 = vadd.s32 %v1827, 1
      %v1832 = vsel %vm1830, %v1831, %v1827
      %v1833 = vadd.s32 %v1828, %v1832
      %v1834 = vadd.s32 %v1833, 536870912
      %v1835 = vshrl.u32 %v1834, 30
      %v1836 = vshll.u32 %v1835, 30
      %v1837 = vsub.s32 %v1833, %v1836
      %vm1838 = vcmp.lt.s32.totalorder %v1837, 0
      %v1839 = vsub.s32 0, %v1837
      %v1840 = vsel %vm1838, %v1839, %v1837
      %v1841 = vclz %v1840
      %v1842 = vsub.s32 %v1841, 2
      %vm1843 = vcmp.gt.s32.totalorder 0, %v1842
      %v1844 = vsel %vm1843, 0, %v1842
      %v1845 = vsub.s32 32, %v1844
      %v1846 = vshll.u32 %v1837, %v1844
      %v1847 = vshrl.u32 %v1829, %v1845
      %v1848 = vor.u32 %v1846, %v1847
      %v1849 = vsub.s32 4294967266, %v1844
      %v1850 = vadd.s32 %v1849, 127
      %v1851 = vshll.u32 %v1850, 23
      %v1852 = vor.u32 4788187, %v1851
      %v1853 = vand.u32 2147483647, %v1852
      %v1855 = vcvt.s32.f32 %v1848
      %v1856 = vmul.f32 %v1855, %v1853
      %v1857 = vxor.u32 %v1856, 2147483648
      %v1858 = vsel %vm1775, %v1857, %v1856
      %v1859 = vsub.s32 4, %v1835
      %v1860 = vsel %vm1775, %v1859, %v1835
      %v1861 = vsel %vm1774, %v1455, %v1858
      %v1862 = vsel %vm1774, 0, %v1860
      %v1863 = vcosq.f32.pop %v1861
      %v1864 = vsinq.f32.pop %v1861
      %vm1865 = vweird.f32 %v1455
      %v1866 = vadd.s32 %v1862, 3
      %v1867 = vand.u32 %v1866, 3
      %vm1868 = vcmp.lt.s32.totalorder %v1867, 2
      %vm1869 = vcmp.eq.s32.totalorder %v1867, 0
      %v1870 = vxor.u32 %v1864, 2147483648
      %v1871 = vsel %vm1869, %v1863, %v1870
      %vm1872 = vcmp.eq.s32.totalorder %v1867, 2
      %v1873 = vxor.u32 %v1863, 2147483648
      %v1874 = vsel %vm1872, %v1873, %v1864
      %v1875 = vsel %vm1868, %v1871, %v1874
      %v1876 = vsel %vm1865, nan, %v1875
      %v1877 = vmul.f32 %v1876, 0.17677669
      %v1878 = vld [vmem:[%s3] sm:$0xff]
      %v1879 = vld [vmem:[%s3 + $0x8] sm:$0xff]
      %v1880 = vld [vmem:[%s3 + $0x10] sm:$0xff]
      %v1881 = vld [vmem:[%s3 + $0x18] sm:$0xff]
      %v1882 = vld [vmem:[%s3 + $0x20] sm:$0xff]
      %v1883 = vld [vmem:[%s3 + $0x28] sm:$0xff]
      %v1884 = vld [vmem:[%s3 + $0x30] sm:$0xff]
      %v1885 = vld [vmem:[%s3 + $0x38] sm:$0xff]
      %v1886 = vld [vmem:[%s3 + $0x40] sm:$0xff]
      %v1887 = vld [vmem:[%s3 + $0x48] sm:$0xff]
      %v1888 = vld [vmem:[%s3 + $0x50] sm:$0xff]
      %v1889 = vld [vmem:[%s3 + $0x58] sm:$0xff]
      %v1890 = vld [vmem:[%s3 + $0x60] sm:$0xff]
      %v1891 = vld [vmem:[%s3 + $0x68] sm:$0xff]
      %v1892 = vld [vmem:[%s3 + $0x70] sm:$0xff]
      %v1893 = vld [vmem:[%s3 + $0x78] sm:$0xff]
      %v1894 = vpack.c.bf16 %v1344, %v1344
      %v1895 = vpack.c.bf16 %v1772, %v1772
      %1896 = vxpose.xlu0.c.b16.start [1/8] %v1895, 128
      %1897 = vxpose.xlu0.c.b16.cont [2/8] 0, 128
      %1898 = vxpose.xlu0.c.b16.cont [3/8] 0, 128
      %1899 = vxpose.xlu0.c.b16.cont [4/8] 0, 128
      %1900 = vxpose.xlu0.c.b16.cont [5/8] 0, 128
      %1901 = vxpose.xlu0.c.b16.cont [6/8] 0, 128
      %1902 = vxpose.xlu0.c.b16.cont [7/8] 0, 128
      %1903 = vxpose.xlu0.c.b16.end [8/8] 0, 128
      %v1904 = vpop.trf.xlu0
      %v1905 = vpop.trf.xlu0
      %v1906 = vpop.trf.xlu0
      %v1907 = vpop.trf.xlu0
      %v1908 = vpop.trf.xlu0
      %v1909 = vpop.trf.xlu0
      %v1910 = vpop.trf.xlu0
      %v1911 = vpop.trf.xlu0
      %vm1912 = vcmask 64512
      %v1914 = vsel %vm1912, %v1904, 0
      %v1917 = vsel %vm1912, %v1905, 0
      %v1920 = vsel %vm1912, %v1906, 0
      %v1923 = vsel %vm1912, %v1907, 0
      %v1926 = vsel %vm1912, %v1908, 0
      %v1929 = vsel %vm1912, %v1909, 0
      %v1932 = vsel %vm1912, %v1910, 0
      %v1935 = vsel %vm1912, %v1911, 0
      %vm1937 = vcmask 1043456
      %v1939 = vsel %vm1937, %v1894, 0
      %1941 = vmatprep.subr.bf16.mxu0 0
      %1942 = vmatpush1.bf16.msra.mxu0 %v1939
      %1943 = vmatprep.subr.bf16.mxu0 0
      %1944 = vmatpush1.bf16.msra.mxu0 0
      %1945 = vmatprep.subr.bf16.mxu0 0
      %1946 = vmatpush1.bf16.msra.mxu0 0
      %1947 = vmatprep.subr.bf16.mxu0 0
      %1948 = vmatpush1.bf16.msra.mxu0 0
      %1949 = vmatprep.subr.bf16.mxu0 0
      %1950 = vmatpush1.bf16.msra.mxu0 0
      %1951 = vmatprep.subr.bf16.mxu0 0
      %1952 = vmatpush1.bf16.msra.mxu0 0
      %1953 = vmatprep.subr.bf16.mxu0 0
      %1954 = vmatpush1.bf16.msra.mxu0 0
      %1955 = vmatprep.subr.bf16.mxu0 0
      %1956 = vmatpush1.bf16.msra.mxu0 0
      %1957 = vmatprep.subr.bf16.mxu0 0
      %1958 = vmatpush1.bf16.msra.mxu0 0
      %1959 = vmatprep.subr.bf16.mxu0 0
      %1960 = vmatpush1.bf16.msra.mxu0 0
      %1961 = vmatprep.subr.bf16.mxu0 0
      %1962 = vmatpush1.bf16.msra.mxu0 0
      %1963 = vmatprep.subr.bf16.mxu0 0
      %1964 = vmatpush1.bf16.msra.mxu0 0
      %1965 = vmatprep.subr.bf16.mxu0 0
      %1966 = vmatpush1.bf16.msra.mxu0 0
      %1967 = vmatprep.subr.bf16.mxu0 0
      %1968 = vmatpush1.bf16.msra.mxu0 0
      %1969 = vmatprep.subr.bf16.mxu0 0
      %1970 = vmatpush1.bf16.msra.mxu0 0
      %1971 = vmatprep.subr.bf16.mxu0 0
      %1972 = vmatpush1.bf16.msra.mxu0 0
      %1973 = vmatprep.mubr.bf16.mxu0 0
      %1974 = vmatmul.mubr.bf16.gmra.mrb[0].mxu0 %v1914
      %v1975 = vpop.f32.mrb[0].mxu0
      %v1976 = vadd.f32 0.0, %v1975
      %v1977 = vpop.f32.mrb[0].mxu0
      %v1978 = vpop.f32.mrb[0].mxu0
      %v1979 = vadd.f32 0.0, %v1978
      %v1980 = vpop.f32.mrb[0].mxu0
      %1981 = vmatprep.mubr.bf16.mxu0 0
      %1982 = vmatmul.mubr.bf16.gmra.mrb[0].mxu0 %v1917
      %v1983 = vpop.f32.mrb[0].mxu0
      %v1984 = vadd.f32 0.0, %v1983
      %v1985 = vpop.f32.mrb[0].mxu0
      %v1986 = vpop.f32.mrb[0].mxu0
      %v1987 = vadd.f32 0.0, %v1986
      %v1988 = vpop.f32.mrb[0].mxu0
      %1989 = vmatprep.mubr.bf16.mxu0 0
      %1990 = vmatmul.mubr.bf16.gmra.mrb[0].mxu0 %v1920
      %v1991 = vpop.f32.mrb[0].mxu0
      %v1992 = vadd.f32 0.0, %v1991
      %v1993 = vpop.f32.mrb[0].mxu0
      %v1994 = vpop.f32.mrb[0].mxu0
      %v1995 = vadd.f32 0.0, %v1994
      %v1996 = vpop.f32.mrb[0].mxu0
      %1997 = vmatprep.mubr.bf16.mxu0 0
      %1998 = vmatmul.mubr.bf16.gmra.mrb[0].mxu0 %v1923
      %v1999 = vpop.f32.mrb[0].mxu0
      %v2000 = vadd.f32 0.0, %v1999
      %v2001 = vpop.f32.mrb[0].mxu0
      %v2002 = vpop.f32.mrb[0].mxu0
      %v2003 = vadd.f32 0.0, %v2002
      %v2004 = vpop.f32.mrb[0].mxu0
      %2005 = vmatprep.mubr.bf16.mxu0 0
      %2006 = vmatmul.mubr.bf16.gmra.mrb[0].mxu0 %v1926
      %v2007 = vpop.f32.mrb[0].mxu0
      %v2008 = vadd.f32 0.0, %v2007
      %v2009 = vpop.f32.mrb[0].mxu0
      %v2010 = vpop.f32.mrb[0].mxu0
      %v2011 = vadd.f32 0.0, %v2010
      %v2012 = vpop.f32.mrb[0].mxu0
      %2013 = vmatprep.mubr.bf16.mxu0 0
      %2014 = vmatmul.mubr.bf16.gmra.mrb[0].mxu0 %v1929
      %v2015 = vpop.f32.mrb[0].mxu0
      %v2016 = vadd.f32 0.0, %v2015
      %v2017 = vpop.f32.mrb[0].mxu0
      %v2018 = vpop.f32.mrb[0].mxu0
      %v2019 = vadd.f32 0.0, %v2018
      %v2020 = vpop.f32.mrb[0].mxu0
      %2021 = vmatprep.mubr.bf16.mxu0 0
      %2022 = vmatmul.mubr.bf16.gmra.mrb[0].mxu0 %v1932
      %v2023 = vpop.f32.mrb[0].mxu0
      %v2024 = vadd.f32 0.0, %v2023
      %v2025 = vpop.f32.mrb[0].mxu0
      %v2026 = vpop.f32.mrb[0].mxu0
      %v2027 = vadd.f32 0.0, %v2026
      %v2028 = vpop.f32.mrb[0].mxu0
      %2029 = vmatprep.mubr.bf16.mxu0 0
      %2030 = vmatmul.mubr.bf16.gmra.mrb[0].mxu0 %v1935
      %v2031 = vpop.f32.mrb[0].mxu0
      %v2032 = vadd.f32 0.0, %v2031
      %v2033 = vpop.f32.mrb[0].mxu0
      %v2034 = vpop.f32.mrb[0].mxu0
      %v2035 = vadd.f32 0.0, %v2034
      %v2036 = vpop.f32.mrb[0].mxu0
      %2037 = vdwg.mxu0
      %v2038 = vmul.f32 %v1976, %v1878
      %v2039 = vmul.f32 %v1979, %v1879
      %v2040 = vmul.f32 %v1984, %v1880
      %v2041 = vmul.f32 %v1987, %v1881
      %v2042 = vmul.f32 %v1992, %v1882
      %v2043 = vmul.f32 %v1995, %v1883
      %v2044 = vmul.f32 %v2000, %v1884
      %v2045 = vmul.f32 %v2003, %v1885
      %v2046 = vmul.f32 %v2008, %v1886
      %v2047 = vmul.f32 %v2011, %v1887
      %v2048 = vmul.f32 %v2016, %v1888
      %v2049 = vmul.f32 %v2019, %v1889
      %v2050 = vmul.f32 %v2024, %v1890
      %v2051 = vmul.f32 %v2027, %v1891
      %v2052 = vmul.f32 %v2032, %v1892
      %v2053 = vmul.f32 %v2035, %v1893
      %v2054 = vpack.c.bf16 %v1877, %v1877
      %2055 = vxpose.xlu0.c.b16.start [1/8] %v2054, 128
      %2056 = vxpose.xlu0.c.b16.cont [2/8] 0, 128
      %2057 = vxpose.xlu0.c.b16.cont [3/8] 0, 128
      %2058 = vxpose.xlu0.c.b16.cont [4/8] 0, 128
      %2059 = vxpose.xlu0.c.b16.cont [5/8] 0, 128
      %2060 = vxpose.xlu0.c.b16.cont [6/8] 0, 128
      %2061 = vxpose.xlu0.c.b16.cont [7/8] 0, 128
      %2062 = vxpose.xlu0.c.b16.end [8/8] 0, 128
      %v2063 = vpop.trf.xlu0
      %v2064 = vpop.trf.xlu0
      %v2065 = vpop.trf.xlu0
      %v2066 = vpop.trf.xlu0
      %v2067 = vpop.trf.xlu0
      %v2068 = vpop.trf.xlu0
      %v2069 = vpop.trf.xlu0
      %v2070 = vpop.trf.xlu0
      %v2072 = vsel %vm1912, %v2063, 0
      %v2075 = vsel %vm1912, %v2064, 0
      %v2078 = vsel %vm1912, %v2065, 0
      %v2081 = vsel %vm1912, %v2066, 0
      %v2084 = vsel %vm1912, %v2067, 0
      %v2087 = vsel %vm1912, %v2068, 0
      %v2090 = vsel %vm1912, %v2069, 0
      %v2093 = vsel %vm1912, %v2070, 0
      %2095 = vmatprep.subr.bf16.mxu0 0
      %2096 = vmatpush1.bf16.msra.mxu0 %v1939
      %2097 = vmatprep.subr.bf16.mxu0 0
      %2098 = vmatpush1.bf16.msra.mxu0 0
      %2099 = vmatprep.subr.bf16.mxu0 0
      %2100 = vmatpush1.bf16.msra.mxu0 0
      %2101 = vmatprep.subr.bf16.mxu0 0
      %2102 = vmatpush1.bf16.msra.mxu0 0
      %2103 = vmatprep.subr.bf16.mxu0 0
      %2104 = vmatpush1.bf16.msra.mxu0 0
      %2105 = vmatprep.subr.bf16.mxu0 0
      %2106 = vmatpush1.bf16.msra.mxu0 0
      %2107 = vmatprep.subr.bf16.mxu0 0
      %2108 = vmatpush1.bf16.msra.mxu0 0
      %2109 = vmatprep.subr.bf16.mxu0 0
      %2110 = vmatpush1.bf16.msra.mxu0 0
      %2111 = vmatprep.subr.bf16.mxu0 0
      %2112 = vmatpush1.bf16.msra.mxu0 0
      %2113 = vmatprep.subr.bf16.mxu0 0
      %2114 = vmatpush1.bf16.msra.mxu0 0
      %2115 = vmatprep.subr.bf16.mxu0 0
      %2116 = vmatpush1.bf16.msra.mxu0 0
      %2117 = vmatprep.subr.bf16.mxu0 0
      %2118 = vmatpush1.bf16.msra.mxu0 0
      %2119 = vmatprep.subr.bf16.mxu0 0
      %2120 = vmatpush1.bf16.msra.mxu0 0
      %2121 = vmatprep.subr.bf16.mxu0 0
      %2122 = vmatpush1.bf16.msra.mxu0 0
      %2123 = vmatprep.subr.bf16.mxu0 0
      %2124 = vmatpush1.bf16.msra.mxu0 0
      %2125 = vmatprep.subr.bf16.mxu0 0
      %2126 = vmatpush1.bf16.msra.mxu0 0
      %2127 = vmatprep.mubr.bf16.mxu0 0
      %2128 = vmatmul.mubr.bf16.gmra.mrb[0].mxu0 %v2072
      %v2129 = vpop.f32.mrb[0].mxu0
      %v2130 = vadd.f32 0.0, %v2129
      %v2131 = vpop.f32.mrb[0].mxu0
      %v2132 = vpop.f32.mrb[0].mxu0
      %v2133 = vadd.f32 0.0, %v2132
      %v2134 = vpop.f32.mrb[0].mxu0
      %2135 = vmatprep.mubr.bf16.mxu0 0
      %2136 = vmatmul.mubr.bf16.gmra.mrb[0].mxu0 %v2075
      %v2137 = vpop.f32.mrb[0].mxu0
      %v2138 = vadd.f32 0.0, %v2137
      %v2139 = vpop.f32.mrb[0].mxu0
      %v2140 = vpop.f32.mrb[0].mxu0
      %v2141 = vadd.f32 0.0, %v2140
      %v2142 = vpop.f32.mrb[0].mxu0
      %2143 = vmatprep.mubr.bf16.mxu0 0
      %2144 = vmatmul.mubr.bf16.gmra.mrb[0].mxu0 %v2078
      %v2145 = vpop.f32.mrb[0].mxu0
      %v2146 = vadd.f32 0.0, %v2145
      %v2147 = vpop.f32.mrb[0].mxu0
      %v2148 = vpop.f32.mrb[0].mxu0
      %v2149 = vadd.f32 0.0, %v2148
      %v2150 = vpop.f32.mrb[0].mxu0
      %2151 = vmatprep.mubr.bf16.mxu0 0
      %2152 = vmatmul.mubr.bf16.gmra.mrb[0].mxu0 %v2081
      %v2153 = vpop.f32.mrb[0].mxu0
      %v2154 = vadd.f32 0.0, %v2153
      %v2155 = vpop.f32.mrb[0].mxu0
      %v2156 = vpop.f32.mrb[0].mxu0
      %v2157 = vadd.f32 0.0, %v2156
      %v2158 = vpop.f32.mrb[0].mxu0
      %2159 = vmatprep.mubr.bf16.mxu0 0
      %2160 = vmatmul.mubr.bf16.gmra.mrb[0].mxu0 %v2084
      %v2161 = vpop.f32.mrb[0].mxu0
      %v2162 = vadd.f32 0.0, %v2161
      %v2163 = vpop.f32.mrb[0].mxu0
      %v2164 = vpop.f32.mrb[0].mxu0
      %v2165 = vadd.f32 0.0, %v2164
      %v2166 = vpop.f32.mrb[0].mxu0
      %2167 = vmatprep.mubr.bf16.mxu0 0
      %2168 = vmatmul.mubr.bf16.gmra.mrb[0].mxu0 %v2087
      %v2169 = vpop.f32.mrb[0].mxu0
      %v2170 = vadd.f32 0.0, %v2169
      %v2171 = vpop.f32.mrb[0].mxu0
      %v2172 = vpop.f32.mrb[0].mxu0
      %v2173 = vadd.f32 0.0, %v2172
      %v2174 = vpop.f32.mrb[0].mxu0
      %2175 = vmatprep.mubr.bf16.mxu0 0
      %2176 = vmatmul.mubr.bf16.gmra.mrb[0].mxu0 %v2090
      %v2177 = vpop.f32.mrb[0].mxu0
      %v2178 = vadd.f32 0.0, %v2177
      %v2179 = vpop.f32.mrb[0].mxu0
      %v2180 = vpop.f32.mrb[0].mxu0
      %v2181 = vadd.f32 0.0, %v2180
      %v2182 = vpop.f32.mrb[0].mxu0
      %2183 = vmatprep.mubr.bf16.mxu0 0
      %2184 = vmatmul.mubr.bf16.gmra.mrb[0].mxu0 %v2093
      %v2185 = vpop.f32.mrb[0].mxu0
      %v2186 = vadd.f32 0.0, %v2185
      %v2187 = vpop.f32.mrb[0].mxu0
      %v2188 = vpop.f32.mrb[0].mxu0
      %v2189 = vadd.f32 0.0, %v2188
      %v2190 = vpop.f32.mrb[0].mxu0
      %2191 = vdwg.mxu0
      %v2192 = vmul.f32 %v2130, %v1878
      %v2193 = vmul.f32 %v2133, %v1879
      %v2194 = vmul.f32 %v2138, %v1880
      %v2195 = vmul.f32 %v2141, %v1881
      %v2196 = vmul.f32 %v2146, %v1882
      %v2197 = vmul.f32 %v2149, %v1883
      %v2198 = vmul.f32 %v2154, %v1884
      %v2199 = vmul.f32 %v2157, %v1885
      %v2200 = vmul.f32 %v2162, %v1886
      %v2201 = vmul.f32 %v2165, %v1887
      %v2202 = vmul.f32 %v2170, %v1888
      %v2203 = vmul.f32 %v2173, %v1889
      %v2204 = vmul.f32 %v2178, %v1890
      %v2205 = vmul.f32 %v2181, %v1891
      %v2206 = vmul.f32 %v2186, %v1892
      %v2207 = vmul.f32 %v2189, %v1893
      %v2208 = vpack.c.bf16 %v1563, %v1563
      %v2209 = vpack.c.bf16 %v2039, %v2038
      %v2210 = vpack.c.bf16 %v2041, %v2040
      %v2211 = vpack.c.bf16 %v2043, %v2042
      %v2212 = vpack.c.bf16 %v2045, %v2044
      %v2213 = vpack.c.bf16 %v2047, %v2046
      %v2214 = vpack.c.bf16 %v2049, %v2048
      %v2215 = vpack.c.bf16 %v2051, %v2050
      %v2216 = vpack.c.bf16 %v2053, %v2052
      %v2217 = vpack.c.bf16 %v1668, %v1668
      %v2218 = vpack.c.bf16 %v2193, %v2192
      %v2219 = vpack.c.bf16 %v2195, %v2194
      %v2220 = vpack.c.bf16 %v2197, %v2196
      %v2221 = vpack.c.bf16 %v2199, %v2198
      %v2222 = vpack.c.bf16 %v2201, %v2200
      %v2223 = vpack.c.bf16 %v2203, %v2202
      %v2224 = vpack.c.bf16 %v2205, %v2204
      %v2225 = vpack.c.bf16 %v2207, %v2206
      %2226 = vmatprep.subr.bf16.mxu0 0
      %2227 = vmatpush1.bf16.msra.mxu0 %v2218
      %2228 = vmatprep.subr.bf16.mxu0 0
      %2229 = vmatpush1.bf16.msra.mxu0 %v2219
      %2230 = vmatprep.subr.bf16.mxu0 0
      %2231 = vmatpush1.bf16.msra.mxu0 %v2220
      %2232 = vmatprep.subr.bf16.mxu0 0
      %2233 = vmatpush1.bf16.msra.mxu0 %v2221
      %2234 = vmatprep.subr.bf16.mxu0 0
      %2235 = vmatpush1.bf16.msra.mxu0 %v2222
      %2236 = vmatprep.subr.bf16.mxu0 0
      %2237 = vmatpush1.bf16.msra.mxu0 %v2223
      %2238 = vmatprep.subr.bf16.mxu0 0
      %2239 = vmatpush1.bf16.msra.mxu0 %v2224
      %2240 = vmatprep.subr.bf16.mxu0 0
      %2241 = vmatpush1.bf16.msra.mxu0 %v2225
      %2242 = vmatprep.subr.bf16.mxu0 0
      %2243 = vmatpush1.bf16.msra.mxu0 0
      %2244 = vmatprep.subr.bf16.mxu0 0
      %2245 = vmatpush1.bf16.msra.mxu0 0
      %2246 = vmatprep.subr.bf16.mxu0 0
      %2247 = vmatpush1.bf16.msra.mxu0 0
      %2248 = vmatprep.subr.bf16.mxu0 0
      %2249 = vmatpush1.bf16.msra.mxu0 0
      %2250 = vmatprep.subr.bf16.mxu0 0
      %2251 = vmatpush1.bf16.msra.mxu0 0
      %2252 = vmatprep.subr.bf16.mxu0 0
      %2253 = vmatpush1.bf16.msra.mxu0 0
      %2254 = vmatprep.subr.bf16.mxu0 0
      %2255 = vmatpush1.bf16.msra.mxu0 0
      %2256 = vmatprep.subr.bf16.mxu0 0
      %2257 = vmatpush1.bf16.msra.mxu0 0
      %2258 = vmatprep.mubr.bf16.mxu0 0
      %2259 = vmatmul.mubr.bf16.gmra.mrb[0].mxu0 %v2217
      %v2260 = vpop.f32.mrb[0].mxu0
      %v2261 = vadd.f32 0.0, %v2260
      %v2262 = vpop.f32.mrb[0].mxu0
      %v2263 = vpop.f32.mrb[0].mxu0
      %v2264 = vpop.f32.mrb[0].mxu0
      %2265 = vdwg.mxu0
      %2266 = vmatprep.subr.bf16.mxu0 0
      %2267 = vmatpush1.bf16.msra.mxu0 %v2209
      %2268 = vmatprep.subr.bf16.mxu0 0
      %2269 = vmatpush1.bf16.msra.mxu0 %v2210
      %2270 = vmatprep.subr.bf16.mxu0 0
      %2271 = vmatpush1.bf16.msra.mxu0 %v2211
      %2272 = vmatprep.subr.bf16.mxu0 0
      %2273 = vmatpush1.bf16.msra.mxu0 %v2212
      %2274 = vmatprep.subr.bf16.mxu0 0
      %2275 = vmatpush1.bf16.msra.mxu0 %v2213
      %2276 = vmatprep.subr.bf16.mxu0 0
      %2277 = vmatpush1.bf16.msra.mxu0 %v2214
      %2278 = vmatprep.subr.bf16.mxu0 0
      %2279 = vmatpush1.bf16.msra.mxu0 %v2215
      %2280 = vmatprep.subr.bf16.mxu0 0
      %2281 = vmatpush1.bf16.msra.mxu0 %v2216
      %2282 = vmatprep.subr.bf16.mxu0 0
      %2283 = vmatpush1.bf16.msra.mxu0 0
      %2284 = vmatprep.subr.bf16.mxu0 0
      %2285 = vmatpush1.bf16.msra.mxu0 0
      %2286 = vmatprep.subr.bf16.mxu0 0
      %2287 = vmatpush1.bf16.msra.mxu0 0
      %2288 = vmatprep.subr.bf16.mxu0 0
      %2289 = vmatpush1.bf16.msra.mxu0 0
      %2290 = vmatprep.subr.bf16.mxu0 0
      %2291 = vmatpush1.bf16.msra.mxu0 0
      %2292 = vmatprep.subr.bf16.mxu0 0
      %2293 = vmatpush1.bf16.msra.mxu0 0
      %2294 = vmatprep.subr.bf16.mxu0 0
      %2295 = vmatpush1.bf16.msra.mxu0 0
      %2296 = vmatprep.subr.bf16.mxu0 0
      %2297 = vmatpush1.bf16.msra.mxu0 0
      %2298 = vmatprep.mubr.bf16.mxu0 0
      %2299 = vmatmul.mubr.bf16.gmra.mrb[0].mxu0 %v2208
      %v2300 = vpop.f32.mrb[0].mxu0
      %v2301 = vadd.f32 %v2261, %v2300
      %v2302 = vpop.f32.mrb[0].mxu0
      %v2303 = vpop.f32.mrb[0].mxu0
      %v2304 = vpop.f32.mrb[0].mxu0
      %2305 = vdwg.mxu0
      %v2306 = vrot.slane %v1772, 4
      %v2307 = vadd.f32 %v1772, %v2306
      %v2308 = vrot.slane %v2307, 2
      %v2309 = vadd.f32 %v2307, %v2308
      %v2310 = vrot.slane %v2309, 1
      %v2311 = vadd.f32 %v2309, %v2310
      %v2312 = vmul.f32 %v1563, %v2311
      %v2313 = vrot.slane %v1877, 4
      %v2314 = vadd.f32 %v1877, %v2313
      %v2315 = vrot.slane %v2314, 2
      %v2316 = vadd.f32 %v2314, %v2315
      %v2317 = vrot.slane %v2316, 1
      %v2318 = vadd.f32 %v2316, %v2317
      %v2319 = vmul.f32 %v1668, %v2318
      %v2320 = vadd.f32 %v2312, %v2319
      %2321 = vmatprep.subr.mxu0 0.0
      %2322 = vmatpush1.msra.mxu0 %v1878
      %2323 = vmatprep.subr.mxu0 0.0
      %2324 = vmatpush1.msra.mxu0 %v1879
      %2325 = vmatprep.subr.mxu0 0.0
      %2326 = vmatpush1.msra.mxu0 %v1880
      %2327 = vmatprep.subr.mxu0 0.0
      %2328 = vmatpush1.msra.mxu0 %v1881
      %2329 = vmatprep.subr.mxu0 0.0
      %2330 = vmatpush1.msra.mxu0 %v1882
      %2331 = vmatprep.subr.mxu0 0.0
      %2332 = vmatpush1.msra.mxu0 %v1883
      %2333 = vmatprep.subr.mxu0 0.0
      %2334 = vmatpush1.msra.mxu0 %v1884
      %2335 = vmatprep.subr.mxu0 0.0
      %2336 = vmatpush1.msra.mxu0 %v1885
      %2337 = vmatprep.subr.mxu0 0.0
      %2338 = vmatpush1.msra.mxu0 %v1886
      %2339 = vmatprep.subr.mxu0 0.0
      %2340 = vmatpush1.msra.mxu0 %v1887
      %2341 = vmatprep.subr.mxu0 0.0
      %2342 = vmatpush1.msra.mxu0 %v1888
      %2343 = vmatprep.subr.mxu0 0.0
      %2344 = vmatpush1.msra.mxu0 %v1889
      %2345 = vmatprep.subr.mxu0 0.0
      %2346 = vmatpush1.msra.mxu0 %v1890
      %2347 = vmatprep.subr.mxu0 0.0
      %2348 = vmatpush1.msra.mxu0 %v1891
      %2349 = vmatprep.subr.mxu0 0.0
      %2350 = vmatpush1.msra.mxu0 %v1892
      %2351 = vmatprep.subr.mxu0 0.0
      %2352 = vmatpush1.msra.mxu0 %v1893
      %2353 = vmatprep.subr.mxu0 0.0
      %2354 = vmatpush1.msra.mxu0 0.0
      %2355 = vmatprep.subr.mxu0 0.0
      %2356 = vmatpush1.msra.mxu0 0.0
      %2357 = vmatprep.subr.mxu0 0.0
      %2358 = vmatpush1.msra.mxu0 0.0
      %2359 = vmatprep.subr.mxu0 0.0
      %2360 = vmatpush1.msra.mxu0 0.0
      %2361 = vmatprep.subr.mxu0 0.0
      %2362 = vmatpush1.msra.mxu0 0.0
      %2363 = vmatprep.subr.mxu0 0.0
      %2364 = vmatpush1.msra.mxu0 0.0
      %2365 = vmatprep.subr.mxu0 0.0
      %2366 = vmatpush1.msra.mxu0 0.0
      %2367 = vmatprep.subr.mxu0 0.0
      %2368 = vmatpush1.msra.mxu0 0.0
      %2369 = vmatprep.subr.mxu0 0.0
      %2370 = vmatpush1.msra.mxu0 0.0
      %2371 = vmatprep.subr.mxu0 0.0
      %2372 = vmatpush1.msra.mxu0 0.0
      %2373 = vmatprep.subr.mxu0 0.0
      %2374 = vmatpush1.msra.mxu0 0.0
      %2375 = vmatprep.subr.mxu0 0.0
      %2376 = vmatpush1.msra.mxu0 0.0
      %2377 = vmatprep.subr.mxu0 0.0
      %2378 = vmatpush1.msra.mxu0 0.0
      %2379 = vmatprep.subr.mxu0 0.0
      %2380 = vmatpush1.msra.mxu0 0.0
      %2381 = vmatprep.subr.mxu0 0.0
      %2382 = vmatpush1.msra.mxu0 0.0
      %2383 = vmatprep.subr.mxu0 0.0
      %2384 = vmatpush1.msra.mxu0 0.0
      %2385 = vmatprep.mubr.f32.mxu0 0.0
      %2386 = vmatmul.mubr.f32.gmra.mrb[0].mxu0 %v2320
      %v2387 = vpop.f32.mrb[0].mxu0
      %v2388 = vadd.f32 1e-06, %v2387
      %v2389 = vpop.f32.mrb[0].mxu0
      %2390 = vdwg.mxu0
      %v2391 = vrcp.pop %v2388
      %v2392 = vmul.f32 %v2301, %v2391
      %v2393 = vpack.c.bf16 %v2392, %v2392
      %v2394 = vld [vmem:[%s1009] sm:$0xf]
      %v2395 = vld [vmem:[%s1009 + $0x4] sm:$0xf]
      %v2396 = vld [vmem:[%s1009 + $0x8] sm:$0xf]
      %v2397 = vld [vmem:[%s1009 + $0xc] sm:$0xf]
      %v2398 = vld [vmem:[%s1012] sm:$0x1]
      %v2400 = vlaneseq
      %v2401 = vshrl.u32 %v2400, 7
      %v2402 = vsub.s32 0, %v2401
      %v2403 = vrot.slane %v2398, %v2402
      %v2409 = vunpack.c.l.b16 %v2394
      %v2410 = vunpack.c.l.b16 %v2395
      %v2411 = vunpack.c.l.b16 %v2396
      %v2412 = vunpack.c.l.b16 %v2397
      %v2413 = vpack.c.b16 %v2410, %v2409
      %v2414 = vpack.c.b16 %v2412, %v2411
      %v2418 = vsel %vm1050, %v2393, 0
      %2420 = vmatprep.subr.bf16.mxu0 0
      %2421 = vmatpush1.bf16.msra.mxu0 %v2413
      %2422 = vmatprep.subr.bf16.mxu0 0
      %2423 = vmatpush1.bf16.msra.mxu0 %v2414
      %2424 = vmatprep.subr.bf16.mxu0 0
      %2425 = vmatpush1.bf16.msra.mxu0 0
      %2426 = vmatprep.subr.bf16.mxu0 0
      %2427 = vmatpush1.bf16.msra.mxu0 0
      %2428 = vmatprep.subr.bf16.mxu0 0
      %2429 = vmatpush1.bf16.msra.mxu0 0
      %2430 = vmatprep.subr.bf16.mxu0 0
      %2431 = vmatpush1.bf16.msra.mxu0 0
      %2432 = vmatprep.subr.bf16.mxu0 0
      %2433 = vmatpush1.bf16.msra.mxu0 0
      %2434 = vmatprep.subr.bf16.mxu0 0
      %2435 = vmatpush1.bf16.msra.mxu0 0
      %2436 = vmatprep.subr.bf16.mxu0 0
      %2437 = vmatpush1.bf16.msra.mxu0 0
      %2438 = vmatprep.subr.bf16.mxu0 0
      %2439 = vmatpush1.bf16.msra.mxu0 0
      %2440 = vmatprep.subr.bf16.mxu0 0
      %2441 = vmatpush1.bf16.msra.mxu0 0
      %2442 = vmatprep.subr.bf16.mxu0 0
      %2443 = vmatpush1.bf16.msra.mxu0 0
      %2444 = vmatprep.subr.bf16.mxu0 0
      %2445 = vmatpush1.bf16.msra.mxu0 0
      %2446 = vmatprep.subr.bf16.mxu0 0
      %2447 = vmatpush1.bf16.msra.mxu0 0
      %2448 = vmatprep.subr.bf16.mxu0 0
      %2449 = vmatpush1.bf16.msra.mxu0 0
      %2450 = vmatprep.subr.bf16.mxu0 0
      %2451 = vmatpush1.bf16.msra.mxu0 0
      %2452 = vmatprep.mubr.bf16.mxu0 0
      %2453 = vmatmul.mubr.bf16.gmra.mrb[0].mxu0 %v2418
      %v2454 = vpop.f32.mrb[0].mxu0
      %v2455 = vadd.f32 %v2403, %v2454
      %v2456 = vpop.f32.mrb[0].mxu0
      %v2457 = vpop.f32.mrb[0].mxu0
      %v2458 = vpop.f32.mrb[0].mxu0
      %2459 = vdwg.mxu0
      %v2460 = vld [vmem:[%s2] sm:$0xff]
      %v2461 = vld [vmem:[%s2 + $0x8] sm:$0xff]
      %v2462 = vld [vmem:[%s2 + $0x10] sm:$0xff]
      %v2463 = vld [vmem:[%s2 + $0x18] sm:$0xff]
      %v2465 = vsel %vm1050, %v2455, 0
      %2467 = vmatprep.subr.mxu0 0.0
      %2468 = vmatpush1.msra.mxu0 %v2460
      %2469 = vmatprep.subr.mxu0 0.0
      %2470 = vmatpush1.msra.mxu0 %v2461
      %2471 = vmatprep.subr.mxu0 0.0
      %2472 = vmatpush1.msra.mxu0 %v2462
      %2473 = vmatprep.subr.mxu0 0.0
      %2474 = vmatpush1.msra.mxu0 %v2463
      %2475 = vmatprep.subr.mxu0 0.0
      %2476 = vmatpush1.msra.mxu0 0.0
      %2477 = vmatprep.subr.mxu0 0.0
      %2478 = vmatpush1.msra.mxu0 0.0
      %2479 = vmatprep.subr.mxu0 0.0
      %2480 = vmatpush1.msra.mxu0 0.0
      %2481 = vmatprep.subr.mxu0 0.0
      %2482 = vmatpush1.msra.mxu0 0.0
      %2483 = vmatprep.subr.mxu0 0.0
      %2484 = vmatpush1.msra.mxu0 0.0
      %2485 = vmatprep.subr.mxu0 0.0
      %2486 = vmatpush1.msra.mxu0 0.0
      %2487 = vmatprep.subr.mxu0 0.0
      %2488 = vmatpush1.msra.mxu0 0.0
      %2489 = vmatprep.subr.mxu0 0.0
      %2490 = vmatpush1.msra.mxu0 0.0
      %2491 = vmatprep.subr.mxu0 0.0
      %2492 = vmatpush1.msra.mxu0 0.0
      %2493 = vmatprep.subr.mxu0 0.0
      %2494 = vmatpush1.msra.mxu0 0.0
      %2495 = vmatprep.subr.mxu0 0.0
      %2496 = vmatpush1.msra.mxu0 0.0
      %2497 = vmatprep.subr.mxu0 0.0
      %2498 = vmatpush1.msra.mxu0 0.0
      %2499 = vmatprep.subr.mxu0 0.0
      %2500 = vmatpush1.msra.mxu0 0.0
      %2501 = vmatprep.subr.mxu0 0.0
      %2502 = vmatpush1.msra.mxu0 0.0
      %2503 = vmatprep.subr.mxu0 0.0
      %2504 = vmatpush1.msra.mxu0 0.0
      %2505 = vmatprep.subr.mxu0 0.0
      %2506 = vmatpush1.msra.mxu0 0.0
      %2507 = vmatprep.subr.mxu0 0.0
      %2508 = vmatpush1.msra.mxu0 0.0
      %2509 = vmatprep.subr.mxu0 0.0
      %2510 = vmatpush1.msra.mxu0 0.0
      %2511 = vmatprep.subr.mxu0 0.0
      %2512 = vmatpush1.msra.mxu0 0.0
      %2513 = vmatprep.subr.mxu0 0.0
      %2514 = vmatpush1.msra.mxu0 0.0
      %2515 = vmatprep.subr.mxu0 0.0
      %2516 = vmatpush1.msra.mxu0 0.0
      %2517 = vmatprep.subr.mxu0 0.0
      %2518 = vmatpush1.msra.mxu0 0.0
      %2519 = vmatprep.subr.mxu0 0.0
      %2520 = vmatpush1.msra.mxu0 0.0
      %2521 = vmatprep.subr.mxu0 0.0
      %2522 = vmatpush1.msra.mxu0 0.0
      %2523 = vmatprep.subr.mxu0 0.0
      %2524 = vmatpush1.msra.mxu0 0.0
      %2525 = vmatprep.subr.mxu0 0.0
      %2526 = vmatpush1.msra.mxu0 0.0
      %2527 = vmatprep.subr.mxu0 0.0
      %2528 = vmatpush1.msra.mxu0 0.0
      %2529 = vmatprep.subr.mxu0 0.0
      %2530 = vmatpush1.msra.mxu0 0.0
      %2531 = vmatprep.mubr.f32.mxu0 0.0
      %2532 = vmatmul.mubr.f32.gmra.mrb[0].mxu0 %v2465
      %v2533 = vpop.f32.mrb[0].mxu0
      %v2534 = vadd.f32 0.0, %v2533
      %v2535 = vpop.f32.mrb[0].mxu0
      %2536 = vdwg.mxu0
      %v2537 = vadd.f32 %v1047, %v2534
      %v2538 = vld [vmem:[%s1015] sm:$0x1]
      %v2539 = vld [vmem:[%s1018] sm:$0x1]
      %v2540 = vsel %vm1050, %v2537, 0.0
      %2541 = vadd.xlane.f32.xlu0 %v2540
      %v2542 = vpop.xlane.xlu0 %2541
      %v2543 = vmul.f32 %v2542, %v1054
      %v2544 = vsub.f32 %v2537, %v2543
      %v2545 = vmul.f32 %v2544, %v2544
      %v2546 = vsel %vm1050, %v2545, 0.0
      %2547 = vadd.xlane.f32.xlu0 %v2546
      %v2548 = vpop.xlane.xlu0 %2547
      %v2549 = vmul.f32 %v2548, %v1054
      %v2550 = vadd.f32 %v2549, 1e-05
      %v2551 = vrsqrt.pop %v2550
      %v2552 = vmul.f32 %v2544, %v2551
      %v2554 = vlaneseq
      %v2555 = vshrl.u32 %v2554, 7
      %v2556 = vsub.s32 0, %v2555
      %v2557 = vrot.slane %v2538, %v2556
      %v2559 = vmul.f32 %v2552, %v2557
      %v2561 = vlaneseq
      %v2562 = vshrl.u32 %v2561, 7
      %v2563 = vsub.s32 0, %v2562
      %v2564 = vrot.slane %v2539, %v2563
      %v2566 = vadd.f32 %v2559, %v2564
      %v2567 = vpack.c.bf16 %v2566, %v2566
      %v2568 = vld [vmem:[%s1023] sm:$0xf]
      %v2569 = vld [vmem:[%s1023 + $0x4] sm:$0xf]
      %v2570 = vld [vmem:[%s1023 + $0x8] sm:$0xf]
      %v2571 = vld [vmem:[%s1023 + $0xc] sm:$0xf]
      %v2572 = vld [vmem:[%s1026] sm:$0x1]
      %v2574 = vlaneseq
      %v2575 = vshrl.u32 %v2574, 7
      %v2576 = vsub.s32 0, %v2575
      %v2577 = vrot.slane %v2572, %v2576
      %v2583 = vunpack.c.l.b16 %v2568
      %v2584 = vunpack.c.l.b16 %v2569
      %v2585 = vunpack.c.l.b16 %v2570
      %v2586 = vunpack.c.l.b16 %v2571
      %v2587 = vpack.c.b16 %v2584, %v2583
      %v2588 = vpack.c.b16 %v2586, %v2585
      %v2592 = vsel %vm1050, %v2567, 0
      %2594 = vmatprep.subr.bf16.mxu0 0
      %2595 = vmatpush1.bf16.msra.mxu0 %v2587
      %2596 = vmatprep.subr.bf16.mxu0 0
      %2597 = vmatpush1.bf16.msra.mxu0 %v2588
      %2598 = vmatprep.subr.bf16.mxu0 0
      %2599 = vmatpush1.bf16.msra.mxu0 0
      %2600 = vmatprep.subr.bf16.mxu0 0
      %2601 = vmatpush1.bf16.msra.mxu0 0
      %2602 = vmatprep.subr.bf16.mxu0 0
      %2603 = vmatpush1.bf16.msra.mxu0 0
      %2604 = vmatprep.subr.bf16.mxu0 0
      %2605 = vmatpush1.bf16.msra.mxu0 0
      %2606 = vmatprep.subr.bf16.mxu0 0
      %2607 = vmatpush1.bf16.msra.mxu0 0
      %2608 = vmatprep.subr.bf16.mxu0 0
      %2609 = vmatpush1.bf16.msra.mxu0 0
      %2610 = vmatprep.subr.bf16.mxu0 0
      %2611 = vmatpush1.bf16.msra.mxu0 0
      %2612 = vmatprep.subr.bf16.mxu0 0
      %2613 = vmatpush1.bf16.msra.mxu0 0
      %2614 = vmatprep.subr.bf16.mxu0 0
      %2615 = vmatpush1.bf16.msra.mxu0 0
      %2616 = vmatprep.subr.bf16.mxu0 0
      %2617 = vmatpush1.bf16.msra.mxu0 0
      %2618 = vmatprep.subr.bf16.mxu0 0
      %2619 = vmatpush1.bf16.msra.mxu0 0
      %2620 = vmatprep.subr.bf16.mxu0 0
      %2621 = vmatpush1.bf16.msra.mxu0 0
      %2622 = vmatprep.subr.bf16.mxu0 0
      %2623 = vmatpush1.bf16.msra.mxu0 0
      %2624 = vmatprep.subr.bf16.mxu0 0
      %2625 = vmatpush1.bf16.msra.mxu0 0
      %2626 = vmatprep.mubr.bf16.mxu0 0
      %2627 = vmatmul.mubr.bf16.gmra.mrb[0].mxu0 %v2592
      %v2628 = vpop.f32.mrb[0].mxu0
      %v2629 = vadd.f32 %v2577, %v2628
      %v2630 = vpop.f32.mrb[0].mxu0
      %v2631 = vpop.f32.mrb[0].mxu0
      %v2632 = vpop.f32.mrb[0].mxu0
      %2633 = vdwg.mxu0
      %v2634 = vmax.f32 %v2629, 0.0
      %v2635 = vpack.c.bf16 %v2634, %v2634
      %v2636 = vld [vmem:[%s1031] sm:$0xf]
      %v2637 = vld [vmem:[%s1031 + $0x4] sm:$0xf]
      %v2638 = vld [vmem:[%s1031 + $0x8] sm:$0xf]
      %v2639 = vld [vmem:[%s1031 + $0xc] sm:$0xf]
      %v2640 = vld [vmem:[%s1031 + $0x10] sm:$0xf]
      %v2641 = vld [vmem:[%s1031 + $0x14] sm:$0xf]
      %v2642 = vld [vmem:[%s1031 + $0x18] sm:$0xf]
      %v2643 = vld [vmem:[%s1031 + $0x1c] sm:$0xf]
      %v2644 = vld [vmem:[%s1031 + $0x20] sm:$0xf]
      %v2645 = vld [vmem:[%s1031 + $0x24] sm:$0xf]
      %v2646 = vld [vmem:[%s1031 + $0x28] sm:$0xf]
      %v2647 = vld [vmem:[%s1031 + $0x2c] sm:$0xf]
      %v2648 = vld [vmem:[%s1031 + $0x30] sm:$0xf]
      %v2649 = vld [vmem:[%s1031 + $0x34] sm:$0xf]
      %v2650 = vld [vmem:[%s1031 + $0x38] sm:$0xf]
      %v2651 = vld [vmem:[%s1031 + $0x3c] sm:$0xf]
      %v2668 = vunpack.c.l.b16 %v2636
      %v2669 = vunpack.c.l.b16 %v2637
      %v2670 = vunpack.c.l.b16 %v2638
      %v2671 = vunpack.c.l.b16 %v2639
      %v2672 = vunpack.c.l.b16 %v2640
      %v2673 = vunpack.c.l.b16 %v2641
      %v2674 = vunpack.c.l.b16 %v2642
      %v2675 = vunpack.c.l.b16 %v2643
      %v2676 = vunpack.c.l.b16 %v2644
      %v2677 = vunpack.c.l.b16 %v2645
      %v2678 = vunpack.c.l.b16 %v2646
      %v2679 = vunpack.c.l.b16 %v2647
      %v2680 = vunpack.c.l.b16 %v2648
      %v2681 = vunpack.c.l.b16 %v2649
      %v2682 = vunpack.c.l.b16 %v2650
      %v2683 = vunpack.c.l.b16 %v2651
      %v2684 = vpack.c.b16 %v2669, %v2668
      %v2685 = vpack.c.b16 %v2671, %v2670
      %v2686 = vpack.c.b16 %v2673, %v2672
      %v2687 = vpack.c.b16 %v2675, %v2674
      %v2688 = vpack.c.b16 %v2677, %v2676
      %v2689 = vpack.c.b16 %v2679, %v2678
      %v2690 = vpack.c.b16 %v2681, %v2680
      %v2691 = vpack.c.b16 %v2683, %v2682
      %2700 = vmatprep.subr.bf16.mxu0 0
      %2701 = vmatpush1.bf16.msra.mxu0 %v2684
      %2702 = vmatprep.subr.bf16.mxu0 0
      %2703 = vmatpush1.bf16.msra.mxu0 %v2685
      %2704 = vmatprep.subr.bf16.mxu0 0
      %2705 = vmatpush1.bf16.msra.mxu0 %v2686
      %2706 = vmatprep.subr.bf16.mxu0 0
      %2707 = vmatpush1.bf16.msra.mxu0 %v2687
      %2708 = vmatprep.subr.bf16.mxu0 0
      %2709 = vmatpush1.bf16.msra.mxu0 %v2688
      %2710 = vmatprep.subr.bf16.mxu0 0
      %2711 = vmatpush1.bf16.msra.mxu0 %v2689
      %2712 = vmatprep.subr.bf16.mxu0 0
      %2713 = vmatpush1.bf16.msra.mxu0 %v2690
      %2714 = vmatprep.subr.bf16.mxu0 0
      %2715 = vmatpush1.bf16.msra.mxu0 %v2691
      %2716 = vmatprep.subr.bf16.mxu0 0
      %2717 = vmatpush1.bf16.msra.mxu0 0
      %2718 = vmatprep.subr.bf16.mxu0 0
      %2719 = vmatpush1.bf16.msra.mxu0 0
      %2720 = vmatprep.subr.bf16.mxu0 0
      %2721 = vmatpush1.bf16.msra.mxu0 0
      %2722 = vmatprep.subr.bf16.mxu0 0
      %2723 = vmatpush1.bf16.msra.mxu0 0
      %2724 = vmatprep.subr.bf16.mxu0 0
      %2725 = vmatpush1.bf16.msra.mxu0 0
      %2726 = vmatprep.subr.bf16.mxu0 0
      %2727 = vmatpush1.bf16.msra.mxu0 0
      %2728 = vmatprep.subr.bf16.mxu0 0
      %2729 = vmatpush1.bf16.msra.mxu0 0
      %2730 = vmatprep.subr.bf16.mxu0 0
      %2731 = vmatpush1.bf16.msra.mxu0 0
      %2732 = vmatprep.mubr.bf16.mxu0 0
      %2733 = vmatmul.mubr.bf16.gmra.mrb[0].mxu0 %v2635
      %v2734 = vpop.f32.mrb[0].mxu0
      %v2735 = vadd.f32 0.0, %v2734
      %v2736 = vpop.f32.mrb[0].mxu0
      %v2737 = vpop.f32.mrb[0].mxu0
      %v2738 = vpop.f32.mrb[0].mxu0
      %2739 = vdwg.mxu0
      %v2740 = vadd.f32 %v2537, %v2735
      %v2741 = vld [vmem:[%s1034] sm:$0x1]
      %v2743 = vlaneseq
      %v2744 = vshrl.u32 %v2743, 7
      %v2745 = vsub.s32 0, %v2744
      %v2746 = vrot.slane %v2741, %v2745
      %v2748 = vadd.f32 %v2740, %v2746
      %p2749 = scmp.ne.s32.totalorder %s40, 1
      // Predicated region
      $region121: #{kfnet_forward.4} parent=115 // pred_check
        %p2750 = pneg %p2749
      $region122: #{kfnet_forward.4} parent=115 // pred_check_branch
        %2752 = sbr.rel (%p2750) target = $region124
      $region123: #{kfnet_forward.4} parent=115 // pred_region
        %2753 = vst.msk [vmem:[%s1038] sm:$0xff] %vm1050, %v2748
      $region124: #{kfnet_forward.4} parent=115 // pred_fallthru
        _
      %p2754 = scmp.eq.s32.totalorder %s40, 1
      // Predicated region
      $region125: #{kfnet_forward.4} parent=115 // pred_check
        %p2755 = pneg %p2754
      $region126: #{kfnet_forward.4} parent=115 // pred_check_branch
        %2757 = sbr.rel (%p2755) target = $region128
      $region127: #{kfnet_forward.4} parent=115 // pred_region
        %v2758 = vld [vmem:[%s22] sm:$0xff]
        %v2759 = vld [vmem:[%s22 + $0x8] sm:$0xff]
        %v2760 = vld [vmem:[%s22 + $0x10] sm:$0xff]
        %v2761 = vld [vmem:[%s22 + $0x18] sm:$0xff]
        %v2762 = vld [vmem:[%s23] sm:$0x1]
        %v2764 = vlaneseq
        %v2765 = vshrl.u32 %v2764, 7
        %v2766 = vsub.s32 0, %v2765
        %v2767 = vrot.slane %v2762, %v2766
        %v2770 = vsel %vm1050, %v2748, 0
        %2772 = vmatprep.subr.mxu0 0.0
        %2773 = vmatpush1.msra.mxu0 %v2758
        %2774 = vmatprep.subr.mxu0 0.0
        %2775 = vmatpush1.msra.mxu0 %v2759
        %2776 = vmatprep.subr.mxu0 0.0
        %2777 = vmatpush1.msra.mxu0 %v2760
        %2778 = vmatprep.subr.mxu0 0.0
        %2779 = vmatpush1.msra.mxu0 %v2761
        %2780 = vmatprep.subr.mxu0 0.0
        %2781 = vmatpush1.msra.mxu0 0.0
        %2782 = vmatprep.subr.mxu0 0.0
        %2783 = vmatpush1.msra.mxu0 0.0
        %2784 = vmatprep.subr.mxu0 0.0
        %2785 = vmatpush1.msra.mxu0 0.0
        %2786 = vmatprep.subr.mxu0 0.0
        %2787 = vmatpush1.msra.mxu0 0.0
        %2788 = vmatprep.subr.mxu0 0.0
        %2789 = vmatpush1.msra.mxu0 0.0
        %2790 = vmatprep.subr.mxu0 0.0
        %2791 = vmatpush1.msra.mxu0 0.0
        %2792 = vmatprep.subr.mxu0 0.0
        %2793 = vmatpush1.msra.mxu0 0.0
        %2794 = vmatprep.subr.mxu0 0.0
        %2795 = vmatpush1.msra.mxu0 0.0
        %2796 = vmatprep.subr.mxu0 0.0
        %2797 = vmatpush1.msra.mxu0 0.0
        %2798 = vmatprep.subr.mxu0 0.0
        %2799 = vmatpush1.msra.mxu0 0.0
        %2800 = vmatprep.subr.mxu0 0.0
        %2801 = vmatpush1.msra.mxu0 0.0
        %2802 = vmatprep.subr.mxu0 0.0
        %2803 = vmatpush1.msra.mxu0 0.0
        %2804 = vmatprep.subr.mxu0 0.0
        %2805 = vmatpush1.msra.mxu0 0.0
        %2806 = vmatprep.subr.mxu0 0.0
        %2807 = vmatpush1.msra.mxu0 0.0
        %2808 = vmatprep.subr.mxu0 0.0
        %2809 = vmatpush1.msra.mxu0 0.0
        %2810 = vmatprep.subr.mxu0 0.0
        %2811 = vmatpush1.msra.mxu0 0.0
        %2812 = vmatprep.subr.mxu0 0.0
        %2813 = vmatpush1.msra.mxu0 0.0
        %2814 = vmatprep.subr.mxu0 0.0
        %2815 = vmatpush1.msra.mxu0 0.0
        %2816 = vmatprep.subr.mxu0 0.0
        %2817 = vmatpush1.msra.mxu0 0.0
        %2818 = vmatprep.subr.mxu0 0.0
        %2819 = vmatpush1.msra.mxu0 0.0
        %2820 = vmatprep.subr.mxu0 0.0
        %2821 = vmatpush1.msra.mxu0 0.0
        %2822 = vmatprep.subr.mxu0 0.0
        %2823 = vmatpush1.msra.mxu0 0.0
        %2824 = vmatprep.subr.mxu0 0.0
        %2825 = vmatpush1.msra.mxu0 0.0
        %2826 = vmatprep.subr.mxu0 0.0
        %2827 = vmatpush1.msra.mxu0 0.0
        %2828 = vmatprep.subr.mxu0 0.0
        %2829 = vmatpush1.msra.mxu0 0.0
        %2830 = vmatprep.subr.mxu0 0.0
        %2831 = vmatpush1.msra.mxu0 0.0
        %2832 = vmatprep.subr.mxu0 0.0
        %2833 = vmatpush1.msra.mxu0 0.0
        %2834 = vmatprep.subr.mxu0 0.0
        %2835 = vmatpush1.msra.mxu0 0.0
        %2836 = vmatprep.mubr.f32.mxu0 0.0
        %2837 = vmatmul.mubr.f32.gmra.mrb[0].mxu0 %v2770
        %v2838 = vpop.f32.mrb[0].mxu0
        %v2839 = vadd.f32 %v2767, %v2838
        %v2840 = vpop.f32.mrb[0].mxu0
        %2841 = vdwg.mxu0
        %2842 = vst.msk [vmem:[%s1038] sm:$0xff] %vm1050, %v2839
      $region128: #{kfnet_forward.4} parent=115 // pred_fallthru
        _
      %p2843 = scmp.lt.s32.totalorder %s39, 1
      %s2844 = scalar_select %p2843, %s39, 1
      %s2845 = smul.addr %s2844, 8
      %s2846 = scalar_lea.vmem %s24, %s2845
      // Predicated region
      $region129: #{kfnet_forward.4} parent=115 // pred_check
        %p2847 = pneg %p664
      $region130: #{kfnet_forward.4} parent=115 // pred_check_branch
        %2849 = sbr.rel (%p2847) target = $region132
      $region131: #{kfnet_forward.4} parent=115 // pred_region
        _
      $region132: #{kfnet_forward.4} parent=115 // pred_fallthru
        _
    $region116: #{kfnet_forward.4} parent=5 // pred_fallthru
      _
    %p2850 = scmp.le.s32.totalorder 2, %s30
    // Predicated region
    $region133: #{kfnet_forward.4} parent=5 // pred_check
      %p2851 = pneg %p2850
    $region134: #{kfnet_forward.4} parent=5 // pred_check_branch
      %2853 = sbr.rel (%p2851) target = $region136
    $region135: #{kfnet_forward.4} parent=5 // pred_region
      %s2854 = ssub.s32 %s30, 2
      // Predicated region
      $region137: #{kfnet_forward.4} parent=135 // pred_check
        %p2855 = pneg %p670
      $region138: #{kfnet_forward.4} parent=135 // pred_check_branch
        %2857 = sbr.rel (%p2855) target = $region140
      $region139: #{kfnet_forward.4} parent=135 // pred_region
        %p2858 = scmp.lt.s32.totalorder %s41, 1
        %s2859 = scalar_select %p2858, %s41, 1
        %s2860 = smul.addr %s2859, 8
        %s2861 = scalar_lea.vmem %s24, %s2860
      $region140: #{kfnet_forward.4} parent=135 // pred_fallthru
        _
    $region136: #{kfnet_forward.4} parent=5 // pred_fallthru
      _
  $region6: #{kfnet_forward.4} parent=0 // loop_footer
    %s34 = sadd.s32 1, %s30
  $region7: #{kfnet_forward.4} parent=0 // loop_footer_branch
    %29 = sbr.rel target = $region3
  $region8: #{kfnet_forward.4} parent=0 // loop_exit
    _

</llo_original>
